<compile_context>
chip_gen: v6e
topology: v6e:2x2x1
jax: 0.10.0
libtpu: 0.0.40
codegen_flags: <defaults>
</compile_context>

<pallas_src>
import functools

import jax
import jax.numpy as jnp
from jax.experimental import pallas as pl
from jax.experimental.pallas import tpu as pltpu

_VMEM_LIMIT = 48 * 1024 * 1024  # <= v7x 64 MiB, > v5e/v6e 16/32 MiB scoped defaults


# ----------------------------------------------------------------------------
# Tiling helpers
# ----------------------------------------------------------------------------

def _pick_tile(dim, target, multiple):
    """Largest tile <= target that divides `dim` and is a multiple of `multiple`;
    falls back to the full dim (always a legal block)."""
    if dim <= target:
        return dim
    t = (target // multiple) * multiple
    while t >= multiple:
        if dim % t == 0:
            return t
        t -= multiple
    return dim


# ----------------------------------------------------------------------------
# Pallas kernels
# ----------------------------------------------------------------------------

def _linear_kernel(x_ref, w_ref, b_ref, o_ref, acc_ref, *, activation):
    """Tiled y = x @ w (+b, optional ReLU). K-reduction over grid axis 2."""
    k = pl.program_id(2)

    @pl.when(k == 0)
    def _():
        acc_ref[...] = jnp.zeros_like(acc_ref)

    x = x_ref[...]
    if x.dtype != jnp.bfloat16:          # static: only the embedder sees f32 input
        x = x.astype(jnp.bfloat16)
    acc_ref[...] += jnp.dot(x, w_ref[...], preferred_element_type=jnp.float32)

    @pl.when(k == pl.num_programs(2) - 1)
    def _():
        y = acc_ref[...] + b_ref[...]          # f32 bias add
        if activation == "relu":
            y = jnp.maximum(y, 0.0)
        o_ref[...] = y.astype(o_ref.dtype)


def linear(x, w, b, activation=None, out_dtype=jnp.bfloat16):
    """y = x @ w + b, optionally ReLU.  x: (M, K) bf16/f32, w: (K, N) bf16, b: (N,) f32."""
    M, K = x.shape
    Kw, N = w.shape
    assert K == Kw
    tm = _pick_tile(M, 512, 8)
    tn = _pick_tile(N, 1024, 128)
    tk = _pick_tile(K, 1024, 128)
    grid = (M // tm, N // tn, K // tk)
    cost = pl.CostEstimate(
        flops=2 * M * N * K,
        transcendentals=0,
        bytes_accessed=int(M * K * x.dtype.itemsize + K * N * w.dtype.itemsize
                           + N * 4 + M * N * jnp.dtype(out_dtype).itemsize))
    return pl.pallas_call(
        functools.partial(_linear_kernel, activation=activation),
        out_shape=jax.ShapeDtypeStruct((M, N), out_dtype),
        grid=grid,
        in_specs=[
            pl.BlockSpec((tm, tk), lambda i, j, k: (i, k)),
            pl.BlockSpec((tk, tn), lambda i, j, k: (k, j)),
            pl.BlockSpec((1, tn), lambda i, j, k: (0, j)),
        ],
        out_specs=pl.BlockSpec((tm, tn), lambda i, j, k: (i, j)),
        scratch_shapes=[pltpu.VMEM((tm, tn), jnp.float32)],
        compiler_params=pltpu.CompilerParams(
            dimension_semantics=("parallel", "parallel", "arbitrary"),
            vmem_limit_bytes=_VMEM_LIMIT),
        cost_estimate=cost,
    )(x, w, b.reshape(1, N))


def _linear_add_ln_kernel(x_ref, w_ref, b_ref, r_ref, g_ref, bb_ref,
                          o_ref, acc_ref, *, eps):
    """Tiled y = LayerNorm(x @ w + b + residual).  Full feature row resident.
    Accumulator and LayerNorm statistics stay f32; output is bf16."""
    k = pl.program_id(1)

    @pl.when(k == 0)
    def _():
        acc_ref[...] = jnp.zeros_like(acc_ref)

    acc_ref[...] += jnp.dot(x_ref[...], w_ref[...],
                            preferred_element_type=jnp.float32)

    @pl.when(k == pl.num_programs(1) - 1)
    def _():
        y = acc_ref[...] + b_ref[...] + r_ref[...].astype(jnp.float32)
        mu = jnp.mean(y, axis=-1, keepdims=True)
        d = y - mu
        var = jnp.mean(d * d, axis=-1, keepdims=True)
        y = d * jax.lax.rsqrt(var + eps)
        y = y * g_ref[...] + bb_ref[...]
        o_ref[...] = y.astype(o_ref.dtype)


def linear_add_layernorm(x, w, b, residual, gamma, beta, eps=1e-5):
    """LayerNorm(x @ w + b + residual).  x: (M, K) bf16, w: (K, N) bf16; tn == N."""
    M, K = x.shape
    _, N = w.shape
    tm = _pick_tile(M, 256, 8)
    tk = _pick_tile(K, 1024, 128)
    grid = (M // tm, K // tk)
    cost = pl.CostEstimate(
        flops=2 * M * N * K,
        transcendentals=0,
        bytes_accessed=int(M * K * 2 + K * N * 2 + M * N * 2 + M * N * 2 + 3 * N * 4))
    return pl.pallas_call(
        functools.partial(_linear_add_ln_kernel, eps=eps),
        out_shape=jax.ShapeDtypeStruct((M, N), jnp.bfloat16),
        grid=grid,
        in_specs=[
            pl.BlockSpec((tm, tk), lambda i, k: (i, k)),
            pl.BlockSpec((tk, N), lambda i, k: (k, 0)),
            pl.BlockSpec((1, N), lambda i, k: (0, 0)),
            pl.BlockSpec((tm, N), lambda i, k: (i, 0)),
            pl.BlockSpec((1, N), lambda i, k: (0, 0)),
            pl.BlockSpec((1, N), lambda i, k: (0, 0)),
        ],
        out_specs=pl.BlockSpec((tm, N), lambda i, k: (i, 0)),
        scratch_shapes=[pltpu.VMEM((tm, N), jnp.float32)],
        compiler_params=pltpu.CompilerParams(
            dimension_semantics=("parallel", "arbitrary"),
            vmem_limit_bytes=_VMEM_LIMIT),
        cost_estimate=cost,
    )(x, w, b.reshape(1, N), residual, gamma.reshape(1, N), beta.reshape(1, N))


def _attn_kernel(q_ref, k_ref, v_ref, o_ref, *, scale):
    """One (batch, head) attention step.  Refs are (S, Dh) bf16 slices of qkv.
    Scale folded into q (O(S*Dh)); softmax statistics kept in f32."""
    q = (q_ref[...].astype(jnp.float32) * scale).astype(jnp.bfloat16)
    k = k_ref[...]
    v = v_ref[...]
    # contract last dims directly (no explicit k.T materialization)
    s = jnp.einsum("qd,kd->qk", q, k, preferred_element_type=jnp.float32)   # (S, S)
    m = jnp.max(s, axis=-1, keepdims=True)
    e = jnp.exp(s - m)
    denom = jnp.sum(e, axis=-1, keepdims=True)
    p = e * pl.reciprocal(denom, approx=True)                               # EUP slot
    o = jnp.dot(p.astype(jnp.bfloat16), v, preferred_element_type=jnp.float32)
    o_ref[...] = o.astype(o_ref.dtype)


def fused_multihead_attention(qkv, B, S, nhead, Dh, scale):
    """qkv: (B*S, 3H) bf16 laid out [q | k | v] per PyTorch in_proj.
    Returns (B*S, H) bf16 attention output already in flattened (B,S,H) layout —
    head splitting/merging is expressed purely through BlockSpec index maps."""
    H = nhead * Dh
    grid = (B, nhead)
    cost = pl.CostEstimate(
        flops=4 * B * nhead * S * S * Dh,
        transcendentals=B * nhead * S * S,
        bytes_accessed=int(3 * B * S * H * 2 + B * S * H * 2))
    return pl.pallas_call(
        functools.partial(_attn_kernel, scale=scale),
        out_shape=jax.ShapeDtypeStruct((B * S, H), jnp.bfloat16),
        grid=grid,
        in_specs=[
            pl.BlockSpec((S, Dh), lambda b, h: (b, h)),              # q columns
            pl.BlockSpec((S, Dh), lambda b, h: (b, nhead + h)),      # k columns
            pl.BlockSpec((S, Dh), lambda b, h: (b, 2 * nhead + h)),  # v columns
        ],
        out_specs=pl.BlockSpec((S, Dh), lambda b, h: (b, h)),
        compiler_params=pltpu.CompilerParams(
            dimension_semantics=("parallel", "parallel")),
        cost_estimate=cost,
    )(qkv, qkv, qkv)


def _seqmean_kernel(x_ref, o_ref, acc_ref, *, inv_s):
    s = pl.program_id(1)

    @pl.when(s == 0)
    def _():
        acc_ref[...] = jnp.zeros_like(acc_ref)

    acc_ref[...] += jnp.sum(x_ref[...].astype(jnp.float32), axis=1)

    @pl.when(s == pl.num_programs(1) - 1)
    def _():
        o_ref[...] = (acc_ref[...] * inv_s).astype(o_ref.dtype)


def seq_mean(x):
    """(B, S, H) bf16 -> mean over S -> (B, H) bf16, tiled over (batch, seq)."""
    B, S, H = x.shape
    tb = _pick_tile(B, 8, 8)
    ts = _pick_tile(S, 128, 8)
    grid = (B // tb, S // ts)
    return pl.pallas_call(
        functools.partial(_seqmean_kernel, inv_s=1.0 / S),
        out_shape=jax.ShapeDtypeStruct((B, H), jnp.bfloat16),
        grid=grid,
        in_specs=[pl.BlockSpec((tb, ts, H), lambda b, s: (b, s, 0))],
        out_specs=pl.BlockSpec((tb, H), lambda b, s: (b, 0)),
        scratch_shapes=[pltpu.VMEM((tb, H), jnp.float32)],
        compiler_params=pltpu.CompilerParams(
            dimension_semantics=("parallel", "arbitrary")),
    )(x)


# ----------------------------------------------------------------------------
# Model (glue code in plain JAX; all hot compute happens in the kernels above)
# ----------------------------------------------------------------------------

def encoder_layer_forward(x, p, nhead, ln_eps=1e-5):
    """One nn.TransformerEncoderLayer (post-norm, ReLU, batch_first, eval mode)."""
    B, S, H = x.shape
    Dh = H // nhead
    xf = x.reshape(B * S, H)

    # ---- self-attention block ------------------------------------------
    # PyTorch in_proj stored pre-transposed as (H, 3H) bf16:  qkv = x @ W + b
    qkv = linear(xf, p["in_proj_w"], p["in_proj_b"])              # (B*S, 3H) bf16
    # head split/merge handled inside the kernel's BlockSpecs — no XLA split/transpose
    attn = fused_multihead_attention(qkv, B, S, nhead, Dh,
                                     scale=1.0 / (Dh ** 0.5))     # (B*S, H) bf16
    # out_proj with fused residual-add + LayerNorm epilogue
    # TODO(synk): nn.Dropout(0.1) inside the encoder layer is identity in eval mode.
    x1 = linear_add_layernorm(attn, p["out_proj_w"], p["out_proj_b"],
                              xf, p["ln1_g"], p["ln1_b"], eps=ln_eps)

    # ---- feed-forward block ----------------------------------------------
    h1 = linear(x1, p["ff1_w"], p["ff1_b"], activation="relu")    # (B*S, F) bf16
    x2 = linear_add_layernorm(h1, p["ff2_w"], p["ff2_b"],
                              x1, p["ln2_g"], p["ln2_b"], eps=ln_eps)
    return x2.reshape(B, S, H)


def image_transformer_forward(x, params, nhead):
    """x: (B, S, vocab_size) f32  ->  (B, hidden_size) f32."""
    B, S, V = x.shape
    H = params["emb_w"].shape[1]

    # embedder (f32 input cast to bf16 per-tile inside the kernel)
    h = linear(x.reshape(B * S, V), params["emb_w"], params["emb_b"])
    h = h.reshape(B, S, H)

    # transformer encoder
    for lp in params["layers"]:
        h = encoder_layer_forward(h, lp, nhead)

    # mean over sequence dim (dim=1); fed bf16 activations.
    # TODO(synk): could be fused into the last layer's LayerNorm epilogue to save
    # one (B,S,H) HBM read; kept separate for clarity.
    pooled = seq_mean(h)                                          # (B, H) bf16

    # final FFN: Linear(H, 2H) -> ReLU -> Dropout(0.3) -> Linear(2H, H)
    # TODO(synk): nn.Dropout(0.3) is identity in eval mode.
    f1 = linear(pooled, params["ffn1_w"], params["ffn1_b"], activation="relu")
    out = linear(f1, params["ffn2_w"], params["ffn2_b"], out_dtype=jnp.float32)
    return out


# ----------------------------------------------------------------------------
# Deterministic parameter construction.
# Weights generated in PyTorch (out, in) convention, pre-transposed to
# (in, out) and pre-cast to bf16 ONCE.  Biases / LayerNorm params stay f32.
# ----------------------------------------------------------------------------

def init_params(key, vocab_size, hidden_size, num_layers, filter_size):
    def dense(k, out_dim, in_dim, scale=0.05):
        kw, kb = jax.random.split(k)
        w = jax.random.normal(kw, (out_dim, in_dim), jnp.float32) * scale
        b = jax.random.normal(kb, (out_dim,), jnp.float32) * scale
        return jnp.asarray(w.T, jnp.bfloat16), b   # stored (in, out) bf16

    keys = jax.random.split(key, 3 + num_layers)
    params = {}
    params["emb_w"], params["emb_b"] = dense(keys[0], hidden_size, vocab_size)

    layers = []
    for li in range(num_layers):
        lk = jax.random.split(keys[3 + li], 4)
        in_w, in_b = dense(lk[0], 3 * hidden_size, hidden_size)
        op_w, op_b = dense(lk[1], hidden_size, hidden_size)
        f1_w, f1_b = dense(lk[2], filter_size, hidden_size)
        f2_w, f2_b = dense(lk[3], hidden_size, filter_size)
        layers.append(dict(
            in_proj_w=in_w, in_proj_b=in_b,
            out_proj_w=op_w, out_proj_b=op_b,
            ff1_w=f1_w, ff1_b=f1_b,
            ff2_w=f2_w, ff2_b=f2_b,
            ln1_g=jnp.ones((hidden_size,), jnp.float32),
            ln1_b=jnp.zeros((hidden_size,), jnp.float32),
            ln2_g=jnp.ones((hidden_size,), jnp.float32),
            ln2_b=jnp.zeros((hidden_size,), jnp.float32),
        ))
    params["layers"] = layers

    params["ffn1_w"], params["ffn1_b"] = dense(keys[1], 2 * hidden_size, hidden_size)
    params["ffn2_w"], params["ffn2_b"] = dense(keys[2], hidden_size, 2 * hidden_size)
    return params


# ----------------------------------------------------------------------------

if __name__ == "__main__":
    # Small config consistent with the module's structure
    # (original: vocab=512, hidden=1024, layers=6, nhead=8, filter=4096).
    # Chosen so head_dim = hidden/nhead = 128 maps exactly onto the TPU lane dim.
    VOCAB, HIDDEN, LAYERS, NHEAD, FILTER = 128, 256, 2, 2, 512
    B, S = 2, 8

    key = jax.random.PRNGKey(0)
    kx, kp = jax.random.split(key)
    x = jax.random.normal(kx, (B, S, VOCAB), jnp.float32)
    params = init_params(kp, VOCAB, HIDDEN, LAYERS, FILTER)

    fwd = jax.jit(functools.partial(image_transformer_forward, nhead=NHEAD))
    out = fwd(x, params)
    out = jax.block_until_ready(out)

    assert out.shape == (B, HIDDEN), out.shape
    assert jnp.all(jnp.isfinite(out))
    print("KERNEL_OK")
</pallas_src>

<mosaic_0001>
module attributes {stable_mosaic.version = 11 : i64} {
  func.func @_linear_kernel(%arg0: i32, %arg1: i32, %arg2: i32, %arg3: memref<16x256xbf16, #tpu.memory_space<vmem>>, %arg4: memref<256x768xbf16, #tpu.memory_space<vmem>>, %arg5: memref<1x768xf32, #tpu.memory_space<vmem>>, %arg6: memref<16x768xbf16, #tpu.memory_space<vmem>>, %arg7: memref<16x768xf32, #tpu.memory_space<vmem>>) attributes {dimension_semantics = [#tpu.dimension_semantics<parallel>, #tpu.dimension_semantics<parallel>, #tpu.dimension_semantics<arbitrary>], iteration_bounds = array<i64: 1, 1, 1>, scalar_prefetch = 0 : i64, scratch_operands = 1 : i64, tpu.core_type = #tpu.core_type<tc>, window_params = [{transform_indices = @transform_0, window_bounds = array<i64: 16, 256>}, {transform_indices = @transform_1, window_bounds = array<i64: 256, 768>}, {transform_indices = @transform_2, window_bounds = array<i64: 1, 768>}, {transform_indices = @transform_3, window_bounds = array<i64: 16, 768>}]} {
    %c0_i32 = arith.constant 0 : i32
    %0 = arith.cmpi eq, %arg2, %c0_i32 : i32
    %1 = arith.extui %0 : i1 to i32
    %c0_i32_0 = arith.constant 0 : i32
    %2 = arith.cmpi ne, %1, %c0_i32_0 : i32
    scf.if %2 {
      %cst_10 = arith.constant 0.000000e+00 : f32
      %12 = vector.broadcast %cst_10 : f32 to vector<16x768xf32>
      %c0_11 = arith.constant 0 : index
      %c0_12 = arith.constant 0 : index
      %13 = vector.load %arg7[%c0_11, %c0_12] : memref<16x768xf32, #tpu.memory_space<vmem>>, vector<16x768xf32>
      tpu.vector_store %arg7[%c0_11, %c0_12], %12 {strides = array<i32>} : memref<16x768xf32, #tpu.memory_space<vmem>>, vector<16x768xf32>,
    } else {
    }
    %c0 = arith.constant 0 : index
    %c0_1 = arith.constant 0 : index
    %3 = vector.load %arg3[%c0, %c0_1] : memref<16x256xbf16, #tpu.memory_space<vmem>>, vector<16x256xbf16>
    %c0_2 = arith.constant 0 : index
    %c0_3 = arith.constant 0 : index
    %4 = vector.load %arg7[%c0_2, %c0_3] : memref<16x768xf32, #tpu.memory_space<vmem>>, vector<16x768xf32>
    %c0_4 = arith.constant 0 : index
    %c0_5 = arith.constant 0 : index
    %5 = vector.load %arg4[%c0_4, %c0_5] : memref<256x768xbf16, #tpu.memory_space<vmem>>, vector<256x768xbf16>
    %cst = arith.constant dense<0.000000e+00> : vector<16x768xf32>
    %6 = tpu.matmul %3, %5, %cst {dimension_numbers = #tpu.dot_dimension_numbers<[1], [0], [0], [1], [0, 0, 1, 1], [], []>} : vector<16x256xbf16>, vector<256x768xbf16>, vector<16x768xf32> -> vector<16x768xf32>
    %7 = arith.addf %4, %6 : vector<16x768xf32>
    %c0_6 = arith.constant 0 : index
    %c0_7 = arith.constant 0 : index
    %8 = vector.load %arg7[%c0_6, %c0_7] : memref<16x768xf32, #tpu.memory_space<vmem>>, vector<16x768xf32>
    tpu.vector_store %arg7[%c0_6, %c0_7], %7 {strides = array<i32>} : memref<16x768xf32, #tpu.memory_space<vmem>>, vector<16x768xf32>,
    %c0_i32_8 = arith.constant 0 : i32
    %9 = arith.cmpi eq, %arg2, %c0_i32_8 : i32
    %10 = arith.extui %9 : i1 to i32
    %c0_i32_9 = arith.constant 0 : i32
    %11 = arith.cmpi ne, %10, %c0_i32_9 : i32
    scf.if %11 {
      %c0_10 = arith.constant 0 : index
      %c0_11 = arith.constant 0 : index
      %12 = vector.load %arg7[%c0_10, %c0_11] : memref<16x768xf32, #tpu.memory_space<vmem>>, vector<16x768xf32>
      %c0_12 = arith.constant 0 : index
      %c0_13 = arith.constant 0 : index
      %13 = vector.load %arg5[%c0_12, %c0_13] : memref<1x768xf32, #tpu.memory_space<vmem>>, vector<1x768xf32>
      %14 = vector.broadcast %13 : vector<1x768xf32> to vector<16x768xf32>
      %15 = arith.addf %12, %14 : vector<16x768xf32>
      %16 = arith.truncf %15 : vector<16x768xf32> to vector<16x768xbf16>
      %c0_14 = arith.constant 0 : index
      %c0_15 = arith.constant 0 : index
      %17 = vector.load %arg6[%c0_14, %c0_15] : memref<16x768xbf16, #tpu.memory_space<vmem>>, vector<16x768xbf16>
      tpu.vector_store %arg6[%c0_14, %c0_15], %16 {strides = array<i32>} : memref<16x768xbf16, #tpu.memory_space<vmem>>, vector<16x768xbf16>,
    } else {
    }
    return
  }
  func.func @transform_0(%arg0: i32, %arg1: i32, %arg2: i32) -> (i32, i32) {
    %c0_i32 = arith.constant 0 : i32
    return %arg0, %arg2 : i32, i32
  }
  func.func @transform_1(%arg0: i32, %arg1: i32, %arg2: i32) -> (i32, i32) {
    %c0_i32 = arith.constant 0 : i32
    return %arg2, %arg1 : i32, i32
  }
  func.func @transform_2(%arg0: i32, %arg1: i32, %arg2: i32) -> (i32, i32) {
    %c0_i32 = arith.constant 0 : i32
    %c0_i32_0 = arith.constant 0 : i32
    return %c0_i32, %arg1 : i32, i32
  }
  func.func @transform_3(%arg0: i32, %arg1: i32, %arg2: i32) -> (i32, i32) {
    %c0_i32 = arith.constant 0 : i32
    return %arg0, %arg1 : i32, i32
  }
}

module attributes {stable_mosaic.version = 11 : i64} {
  func.func @_linear_kernel(%arg0: i32, %arg1: i32, %arg2: i32, %arg3: memref<16x128xf32, #tpu.memory_space<vmem>>, %arg4: memref<128x256xbf16, #tpu.memory_space<vmem>>, %arg5: memref<1x256xf32, #tpu.memory_space<vmem>>, %arg6: memref<16x256xbf16, #tpu.memory_space<vmem>>, %arg7: memref<16x256xf32, #tpu.memory_space<vmem>>) attributes {dimension_semantics = [#tpu.dimension_semantics<parallel>, #tpu.dimension_semantics<parallel>, #tpu.dimension_semantics<arbitrary>], iteration_bounds = array<i64: 1, 1, 1>, scalar_prefetch = 0 : i64, scratch_operands = 1 : i64, tpu.core_type = #tpu.core_type<tc>, window_params = [{transform_indices = @transform_0, window_bounds = array<i64: 16, 128>}, {transform_indices = @transform_1, window_bounds = array<i64: 128, 256>}, {transform_indices = @transform_2, window_bounds = array<i64: 1, 256>}, {transform_indices = @transform_3, window_bounds = array<i64: 16, 256>}]} {
    %c0_i32 = arith.constant 0 : i32
    %0 = arith.cmpi eq, %arg2, %c0_i32 : i32
    %1 = arith.extui %0 : i1 to i32
    %c0_i32_0 = arith.constant 0 : i32
    %2 = arith.cmpi ne, %1, %c0_i32_0 : i32
    scf.if %2 {
      %cst_10 = arith.constant 0.000000e+00 : f32
      %13 = vector.broadcast %cst_10 : f32 to vector<16x256xf32>
      %c0_11 = arith.constant 0 : index
      %c0_12 = arith.constant 0 : index
      %14 = vector.load %arg7[%c0_11, %c0_12] : memref<16x256xf32, #tpu.memory_space<vmem>>, vector<16x256xf32>
      tpu.vector_store %arg7[%c0_11, %c0_12], %13 {strides = array<i32>} : memref<16x256xf32, #tpu.memory_space<vmem>>, vector<16x256xf32>,
    } else {
    }
    %c0 = arith.constant 0 : index
    %c0_1 = arith.constant 0 : index
    %3 = vector.load %arg3[%c0, %c0_1] : memref<16x128xf32, #tpu.memory_space<vmem>>, vector<16x128xf32>
    %4 = arith.truncf %3 : vector<16x128xf32> to vector<16x128xbf16>
    %c0_2 = arith.constant 0 : index
    %c0_3 = arith.constant 0 : index
    %5 = vector.load %arg7[%c0_2, %c0_3] : memref<16x256xf32, #tpu.memory_space<vmem>>, vector<16x256xf32>
    %c0_4 = arith.constant 0 : index
    %c0_5 = arith.constant 0 : index
    %6 = vector.load %arg4[%c0_4, %c0_5] : memref<128x256xbf16, #tpu.memory_space<vmem>>, vector<128x256xbf16>
    %cst = arith.constant dense<0.000000e+00> : vector<16x256xf32>
    %7 = tpu.matmul %4, %6, %cst {dimension_numbers = #tpu.dot_dimension_numbers<[1], [0], [0], [1], [0, 0, 1, 1], [], []>} : vector<16x128xbf16>, vector<128x256xbf16>, vector<16x256xf32> -> vector<16x256xf32>
    %8 = arith.addf %5, %7 : vector<16x256xf32>
    %c0_6 = arith.constant 0 : index
    %c0_7 = arith.constant 0 : index
    %9 = vector.load %arg7[%c0_6, %c0_7] : memref<16x256xf32, #tpu.memory_space<vmem>>, vector<16x256xf32>
    tpu.vector_store %arg7[%c0_6, %c0_7], %8 {strides = array<i32>} : memref<16x256xf32, #tpu.memory_space<vmem>>, vector<16x256xf32>,
    %c0_i32_8 = arith.constant 0 : i32
    %10 = arith.cmpi eq, %arg2, %c0_i32_8 : i32
    %11 = arith.extui %10 : i1 to i32
    %c0_i32_9 = arith.constant 0 : i32
    %12 = arith.cmpi ne, %11, %c0_i32_9 : i32
    scf.if %12 {
      %c0_10 = arith.constant 0 : index
      %c0_11 = arith.constant 0 : index
      %13 = vector.load %arg7[%c0_10, %c0_11] : memref<16x256xf32, #tpu.memory_space<vmem>>, vector<16x256xf32>
      %c0_12 = arith.constant 0 : index
      %c0_13 = arith.constant 0 : index
      %14 = vector.load %arg5[%c0_12, %c0_13] : memref<1x256xf32, #tpu.memory_space<vmem>>, vector<1x256xf32>
      %15 = vector.broadcast %14 : vector<1x256xf32> to vector<16x256xf32>
      %16 = arith.addf %13, %15 : vector<16x256xf32>
      %17 = arith.truncf %16 : vector<16x256xf32> to vector<16x256xbf16>
      %c0_14 = arith.constant 0 : index
      %c0_15 = arith.constant 0 : index
      %18 = vector.load %arg6[%c0_14, %c0_15] : memref<16x256xbf16, #tpu.memory_space<vmem>>, vector<16x256xbf16>
      tpu.vector_store %arg6[%c0_14, %c0_15], %17 {strides = array<i32>} : memref<16x256xbf16, #tpu.memory_space<vmem>>, vector<16x256xbf16>,
    } else {
    }
    return
  }
  func.func @transform_0(%arg0: i32, %arg1: i32, %arg2: i32) -> (i32, i32) {
    %c0_i32 = arith.constant 0 : i32
    return %arg0, %arg2 : i32, i32
  }
  func.func @transform_1(%arg0: i32, %arg1: i32, %arg2: i32) -> (i32, i32) {
    %c0_i32 = arith.constant 0 : i32
    return %arg2, %arg1 : i32, i32
  }
  func.func @transform_2(%arg0: i32, %arg1: i32, %arg2: i32) -> (i32, i32) {
    %c0_i32 = arith.constant 0 : i32
    %c0_i32_0 = arith.constant 0 : i32
    return %c0_i32, %arg1 : i32, i32
  }
  func.func @transform_3(%arg0: i32, %arg1: i32, %arg2: i32) -> (i32, i32) {
    %c0_i32 = arith.constant 0 : i32
    return %arg0, %arg1 : i32, i32
  }
}

module attributes {stable_mosaic.version = 11 : i64} {
  func.func @_attn_kernel(%arg0: i32, %arg1: i32, %arg2: memref<8x128xbf16, #tpu.memory_space<vmem>>, %arg3: memref<8x128xbf16, #tpu.memory_space<vmem>>, %arg4: memref<8x128xbf16, #tpu.memory_space<vmem>>, %arg5: memref<8x128xbf16, #tpu.memory_space<vmem>>) attributes {dimension_semantics = [#tpu.dimension_semantics<parallel>, #tpu.dimension_semantics<parallel>], iteration_bounds = array<i64: 2, 2>, scalar_prefetch = 0 : i64, scratch_operands = 0 : i64, tpu.core_type = #tpu.core_type<tc>, window_params = [{transform_indices = @transform_0, window_bounds = array<i64: 8, 128>}, {transform_indices = @transform_1, window_bounds = array<i64: 8, 128>}, {transform_indices = @transform_2, window_bounds = array<i64: 8, 128>}, {transform_indices = @transform_3, window_bounds = array<i64: 8, 128>}]} {
    %c0 = arith.constant 0 : index
    %c0_0 = arith.constant 0 : index
    %0 = vector.load %arg2[%c0, %c0_0] : memref<8x128xbf16, #tpu.memory_space<vmem>>, vector<8x128xbf16>
    %1 = arith.extf %0 : vector<8x128xbf16> to vector<8x128xf32>
    %cst = arith.constant 0.0883883461 : f32
    %2 = vector.broadcast %cst : f32 to vector<8x128xf32>
    %3 = arith.mulf %1, %2 : vector<8x128xf32>
    %4 = arith.truncf %3 : vector<8x128xf32> to vector<8x128xbf16>
    %c0_1 = arith.constant 0 : index
    %c0_2 = arith.constant 0 : index
    %5 = vector.load %arg3[%c0_1, %c0_2] : memref<8x128xbf16, #tpu.memory_space<vmem>>, vector<8x128xbf16>
    %c0_3 = arith.constant 0 : index
    %c0_4 = arith.constant 0 : index
    %6 = vector.load %arg4[%c0_3, %c0_4] : memref<8x128xbf16, #tpu.memory_space<vmem>>, vector<8x128xbf16>
    "tpu.trace_start"() <{level = 10 : i32, message = "qd,kd->qk"}> : () -> ()
    %cst_5 = arith.constant dense<0.000000e+00> : vector<8x8xf32>
    %7 = tpu.matmul %4, %5, %cst_5 {dimension_numbers = #tpu.dot_dimension_numbers<[1], [1], [0], [0], [0, 0, 1, 0], [], []>} : vector<8x128xbf16>, vector<8x128xbf16>, vector<8x8xf32> -> vector<8x8xf32>
    "tpu.trace_stop"() : () -> ()
    %cst_6 = arith.constant dense<0xFF800000> : vector<8xf32>
    %8 = vector.multi_reduction <maximumf>, %7, %cst_6 [1] : vector<8x8xf32> to vector<8xf32>
    %9 = vector.shape_cast %8 : vector<8xf32> to vector<8x1xf32>
    %10 = vector.broadcast %9 : vector<8x1xf32> to vector<8x8xf32>
    %11 = arith.subf %7, %10 : vector<8x8xf32>
    %12 = math.exp %11 : vector<8x8xf32>
    %cst_7 = arith.constant dense<0.000000e+00> : vector<8xf32>
    %13 = vector.multi_reduction <add>, %12, %cst_7 [1] : vector<8x8xf32> to vector<8xf32>
    %14 = vector.shape_cast %13 : vector<8xf32> to vector<8x1xf32>
    %15 = tpu.reciprocal %14 {approx = true} : vector<8x1xf32> -> vector<8x1xf32>
    %16 = vector.broadcast %15 : vector<8x1xf32> to vector<8x8xf32>
    %17 = arith.mulf %12, %16 : vector<8x8xf32>
    %18 = arith.truncf %17 : vector<8x8xf32> to vector<8x8xbf16>
    %cst_8 = arith.constant dense<0.000000e+00> : vector<8x128xf32>
    %19 = tpu.matmul %18, %6, %cst_8 {dimension_numbers = #tpu.dot_dimension_numbers<[1], [0], [0], [1], [0, 0, 1, 1], [], []>} : vector<8x8xbf16>, vector<8x128xbf16>, vector<8x128xf32> -> vector<8x128xf32>
    %20 = arith.truncf %19 : vector<8x128xf32> to vector<8x128xbf16>
    %c0_9 = arith.constant 0 : index
    %c0_10 = arith.constant 0 : index
    %21 = vector.load %arg5[%c0_9, %c0_10] : memref<8x128xbf16, #tpu.memory_space<vmem>>, vector<8x128xbf16>
    tpu.vector_store %arg5[%c0_9, %c0_10], %20 {strides = array<i32>} : memref<8x128xbf16, #tpu.memory_space<vmem>>, vector<8x128xbf16>,
    return
  }
  func.func @transform_0(%arg0: i32, %arg1: i32) -> (i32, i32) {
    %c0_i32 = arith.constant 0 : i32
    return %arg0, %arg1 : i32, i32
  }
  func.func @transform_1(%arg0: i32, %arg1: i32) -> (i32, i32) {
    %c2_i32 = arith.constant 2 : i32
    %0 = arith.addi %c2_i32, %arg1 : i32
    %c0_i32 = arith.constant 0 : i32
    return %arg0, %0 : i32, i32
  }
  func.func @transform_2(%arg0: i32, %arg1: i32) -> (i32, i32) {
    %c4_i32 = arith.constant 4 : i32
    %0 = arith.addi %c4_i32, %arg1 : i32
    %c0_i32 = arith.constant 0 : i32
    return %arg0, %0 : i32, i32
  }
  func.func @transform_3(%arg0: i32, %arg1: i32) -> (i32, i32) {
    %c0_i32 = arith.constant 0 : i32
    return %arg0, %arg1 : i32, i32
  }
}

module attributes {stable_mosaic.version = 11 : i64} {
  func.func @_linear_add_ln_kernel(%arg0: i32, %arg1: i32, %arg2: memref<16x256xbf16, #tpu.memory_space<vmem>>, %arg3: memref<256x256xbf16, #tpu.memory_space<vmem>>, %arg4: memref<1x256xf32, #tpu.memory_space<vmem>>, %arg5: memref<16x256xbf16, #tpu.memory_space<vmem>>, %arg6: memref<1x256xf32, #tpu.memory_space<vmem>>, %arg7: memref<1x256xf32, #tpu.memory_space<vmem>>, %arg8: memref<16x256xbf16, #tpu.memory_space<vmem>>, %arg9: memref<16x256xf32, #tpu.memory_space<vmem>>) attributes {dimension_semantics = [#tpu.dimension_semantics<parallel>, #tpu.dimension_semantics<arbitrary>], iteration_bounds = array<i64: 1, 1>, scalar_prefetch = 0 : i64, scratch_operands = 1 : i64, tpu.core_type = #tpu.core_type<tc>, window_params = [{transform_indices = @transform_0, window_bounds = array<i64: 16, 256>}, {transform_indices = @transform_1, window_bounds = array<i64: 256, 256>}, {pipeline_mode = #tpu.pipeline_mode<synchronous>, transform_indices = @transform_2, window_bounds = array<i64: 1, 256>}, {transform_indices = @transform_3, window_bounds = array<i64: 16, 256>}, {pipeline_mode = #tpu.pipeline_mode<synchronous>, transform_indices = @transform_4, window_bounds = array<i64: 1, 256>}, {pipeline_mode = #tpu.pipeline_mode<synchronous>, transform_indices = @transform_5, window_bounds = array<i64: 1, 256>}, {transform_indices = @transform_6, window_bounds = array<i64: 16, 256>}]} {
    %c0_i32 = arith.constant 0 : i32
    %0 = arith.cmpi eq, %arg1, %c0_i32 : i32
    %1 = arith.extui %0 : i1 to i32
    %c0_i32_0 = arith.constant 0 : i32
    %2 = arith.cmpi ne, %1, %c0_i32_0 : i32
    scf.if %2 {
      %cst_10 = arith.constant 0.000000e+00 : f32
      %12 = vector.broadcast %cst_10 : f32 to vector<16x256xf32>
      %c0_11 = arith.constant 0 : index
      %c0_12 = arith.constant 0 : index
      %13 = vector.load %arg9[%c0_11, %c0_12] : memref<16x256xf32, #tpu.memory_space<vmem>>, vector<16x256xf32>
      tpu.vector_store %arg9[%c0_11, %c0_12], %12 {strides = array<i32>} : memref<16x256xf32, #tpu.memory_space<vmem>>, vector<16x256xf32>,
    } else {
    }
    %c0 = arith.constant 0 : index
    %c0_1 = arith.constant 0 : index
    %3 = vector.load %arg9[%c0, %c0_1] : memref<16x256xf32, #tpu.memory_space<vmem>>, vector<16x256xf32>
    %c0_2 = arith.constant 0 : index
    %c0_3 = arith.constant 0 : index
    %4 = vector.load %arg2[%c0_2, %c0_3] : memref<16x256xbf16, #tpu.memory_space<vmem>>, vector<16x256xbf16>
    %c0_4 = arith.constant 0 : index
    %c0_5 = arith.constant 0 : index
    %5 = vector.load %arg3[%c0_4, %c0_5] : memref<256x256xbf16, #tpu.memory_space<vmem>>, vector<256x256xbf16>
    %cst = arith.constant dense<0.000000e+00> : vector<16x256xf32>
    %6 = tpu.matmul %4, %5, %cst {dimension_numbers = #tpu.dot_dimension_numbers<[1], [0], [0], [1], [0, 0, 1, 1], [], []>} : vector<16x256xbf16>, vector<256x256xbf16>, vector<16x256xf32> -> vector<16x256xf32>
    %7 = arith.addf %3, %6 : vector<16x256xf32>
    %c0_6 = arith.constant 0 : index
    %c0_7 = arith.constant 0 : index
    %8 = vector.load %arg9[%c0_6, %c0_7] : memref<16x256xf32, #tpu.memory_space<vmem>>, vector<16x256xf32>
    tpu.vector_store %arg9[%c0_6, %c0_7], %7 {strides = array<i32>} : memref<16x256xf32, #tpu.memory_space<vmem>>, vector<16x256xf32>,
    %c0_i32_8 = arith.constant 0 : i32
    %9 = arith.cmpi eq, %arg1, %c0_i32_8 : i32
    %10 = arith.extui %9 : i1 to i32
    %c0_i32_9 = arith.constant 0 : i32
    %11 = arith.cmpi ne, %10, %c0_i32_9 : i32
    scf.if %11 {
      %c0_10 = arith.constant 0 : index
      %c0_11 = arith.constant 0 : index
      %12 = vector.load %arg9[%c0_10, %c0_11] : memref<16x256xf32, #tpu.memory_space<vmem>>, vector<16x256xf32>
      %c0_12 = arith.constant 0 : index
      %c0_13 = arith.constant 0 : index
      %13 = vector.load %arg4[%c0_12, %c0_13] : memref<1x256xf32, #tpu.memory_space<vmem>>, vector<1x256xf32>
      %14 = vector.broadcast %13 : vector<1x256xf32> to vector<16x256xf32>
      %15 = arith.addf %12, %14 : vector<16x256xf32>
      %c0_14 = arith.constant 0 : index
      %c0_15 = arith.constant 0 : index
      %16 = vector.load %arg5[%c0_14, %c0_15] : memref<16x256xbf16, #tpu.memory_space<vmem>>, vector<16x256xbf16>
      %17 = arith.extf %16 : vector<16x256xbf16> to vector<16x256xf32>
      %18 = arith.addf %15, %17 : vector<16x256xf32>
      %cst_16 = arith.constant dense<0.000000e+00> : vector<16xf32>
      %19 = vector.multi_reduction <add>, %18, %cst_16 [1] : vector<16x256xf32> to vector<16xf32>
      %20 = vector.shape_cast %19 : vector<16xf32> to vector<16x1xf32>
      %cst_17 = arith.constant 2.560000e+02 : f32
      %21 = vector.broadcast %cst_17 : f32 to vector<16x1xf32>
      %22 = arith.divf %20, %21 : vector<16x1xf32>
      %23 = vector.broadcast %22 : vector<16x1xf32> to vector<16x256xf32>
      %24 = arith.subf %18, %23 : vector<16x256xf32>
      %25 = arith.mulf %24, %24 : vector<16x256xf32>
      %cst_18 = arith.constant dense<0.000000e+00> : vector<16xf32>
      %26 = vector.multi_reduction <add>, %25, %cst_18 [1] : vector<16x256xf32> to vector<16xf32>
      %27 = vector.shape_cast %26 : vector<16xf32> to vector<16x1xf32>
      %cst_19 = arith.constant 2.560000e+02 : f32
      %28 = vector.broadcast %cst_19 : f32 to vector<16x1xf32>
      %29 = arith.divf %27, %28 : vector<16x1xf32>
      %cst_20 = arith.constant 9.99999974E-6 : f32
      %30 = vector.broadcast %cst_20 : f32 to vector<16x1xf32>
      %31 = arith.addf %29, %30 : vector<16x1xf32>
      %32 = math.rsqrt %31 : vector<16x1xf32>
      %33 = vector.broadcast %32 : vector<16x1xf32> to vector<16x256xf32>
      %34 = arith.mulf %24, %33 : vector<16x256xf32>
      %c0_21 = arith.constant 0 : index
      %c0_22 = arith.constant 0 : index
      %35 = vector.load %arg6[%c0_21, %c0_22] : memref<1x256xf32, #tpu.memory_space<vmem>>, vector<1x256xf32>
      %36 = vector.broadcast %35 : vector<1x256xf32> to vector<16x256xf32>
      %37 = arith.mulf %34, %36 : vector<16x256xf32>
      %c0_23 = arith.constant 0 : index
      %c0_24 = arith.constant 0 : index
      %38 = vector.load %arg7[%c0_23, %c0_24] : memref<1x256xf32, #tpu.memory_space<vmem>>, vector<1x256xf32>
      %39 = vector.broadcast %38 : vector<1x256xf32> to vector<16x256xf32>
      %40 = arith.addf %37, %39 : vector<16x256xf32>
      %41 = arith.truncf %40 : vector<16x256xf32> to vector<16x256xbf16>
      %c0_25 = arith.constant 0 : index
      %c0_26 = arith.constant 0 : index
      %42 = vector.load %arg8[%c0_25, %c0_26] : memref<16x256xbf16, #tpu.memory_space<vmem>>, vector<16x256xbf16>
      tpu.vector_store %arg8[%c0_25, %c0_26], %41 {strides = array<i32>} : memref<16x256xbf16, #tpu.memory_space<vmem>>, vector<16x256xbf16>,
    } else {
    }
    return
  }
  func.func @transform_0(%arg0: i32, %arg1: i32) -> (i32, i32) {
    %c0_i32 = arith.constant 0 : i32
    return %arg0, %arg1 : i32, i32
  }
  func.func @transform_1(%arg0: i32, %arg1: i32) -> (i32, i32) {
    %c0_i32 = arith.constant 0 : i32
    %c0_i32_0 = arith.constant 0 : i32
    return %arg1, %c0_i32 : i32, i32
  }
  func.func @transform_2(%arg0: i32, %arg1: i32) -> (i32, i32) {
    %c0_i32 = arith.constant 0 : i32
    %c0_i32_0 = arith.constant 0 : i32
    %c0_i32_1 = arith.constant 0 : i32
    return %c0_i32, %c0_i32_0 : i32, i32
  }
  func.func @transform_3(%arg0: i32, %arg1: i32) -> (i32, i32) {
    %c0_i32 = arith.constant 0 : i32
    %c0_i32_0 = arith.constant 0 : i32
    return %arg0, %c0_i32 : i32, i32
  }
  func.func @transform_4(%arg0: i32, %arg1: i32) -> (i32, i32) {
    %c0_i32 = arith.constant 0 : i32
    %c0_i32_0 = arith.constant 0 : i32
    %c0_i32_1 = arith.constant 0 : i32
    return %c0_i32, %c0_i32_0 : i32, i32
  }
  func.func @transform_5(%arg0: i32, %arg1: i32) -> (i32, i32) {
    %c0_i32 = arith.constant 0 : i32
    %c0_i32_0 = arith.constant 0 : i32
    %c0_i32_1 = arith.constant 0 : i32
    return %c0_i32, %c0_i32_0 : i32, i32
  }
  func.func @transform_6(%arg0: i32, %arg1: i32) -> (i32, i32) {
    %c0_i32 = arith.constant 0 : i32
    %c0_i32_0 = arith.constant 0 : i32
    return %arg0, %c0_i32 : i32, i32
  }
}

module attributes {stable_mosaic.version = 11 : i64} {
  func.func @_linear_kernel(%arg0: i32, %arg1: i32, %arg2: i32, %arg3: memref<16x256xbf16, #tpu.memory_space<vmem>>, %arg4: memref<256x512xbf16, #tpu.memory_space<vmem>>, %arg5: memref<1x512xf32, #tpu.memory_space<vmem>>, %arg6: memref<16x512xbf16, #tpu.memory_space<vmem>>, %arg7: memref<16x512xf32, #tpu.memory_space<vmem>>) attributes {dimension_semantics = [#tpu.dimension_semantics<parallel>, #tpu.dimension_semantics<parallel>, #tpu.dimension_semantics<arbitrary>], iteration_bounds = array<i64: 1, 1, 1>, scalar_prefetch = 0 : i64, scratch_operands = 1 : i64, tpu.core_type = #tpu.core_type<tc>, window_params = [{transform_indices = @transform_0, window_bounds = array<i64: 16, 256>}, {transform_indices = @transform_1, window_bounds = array<i64: 256, 512>}, {transform_indices = @transform_2, window_bounds = array<i64: 1, 512>}, {transform_indices = @transform_3, window_bounds = array<i64: 16, 512>}]} {
    %c0_i32 = arith.constant 0 : i32
    %0 = arith.cmpi eq, %arg2, %c0_i32 : i32
    %1 = arith.extui %0 : i1 to i32
    %c0_i32_0 = arith.constant 0 : i32
    %2 = arith.cmpi ne, %1, %c0_i32_0 : i32
    scf.if %2 {
      %cst_10 = arith.constant 0.000000e+00 : f32
      %12 = vector.broadcast %cst_10 : f32 to vector<16x512xf32>
      %c0_11 = arith.constant 0 : index
      %c0_12 = arith.constant 0 : index
      %13 = vector.load %arg7[%c0_11, %c0_12] : memref<16x512xf32, #tpu.memory_space<vmem>>, vector<16x512xf32>
      tpu.vector_store %arg7[%c0_11, %c0_12], %12 {strides = array<i32>} : memref<16x512xf32, #tpu.memory_space<vmem>>, vector<16x512xf32>,
    } else {
    }
    %c0 = arith.constant 0 : index
    %c0_1 = arith.constant 0 : index
    %3 = vector.load %arg3[%c0, %c0_1] : memref<16x256xbf16, #tpu.memory_space<vmem>>, vector<16x256xbf16>
    %c0_2 = arith.constant 0 : index
    %c0_3 = arith.constant 0 : index
    %4 = vector.load %arg7[%c0_2, %c0_3] : memref<16x512xf32, #tpu.memory_space<vmem>>, vector<16x512xf32>
    %c0_4 = arith.constant 0 : index
    %c0_5 = arith.constant 0 : index
    %5 = vector.load %arg4[%c0_4, %c0_5] : memref<256x512xbf16, #tpu.memory_space<vmem>>, vector<256x512xbf16>
    %cst = arith.constant dense<0.000000e+00> : vector<16x512xf32>
    %6 = tpu.matmul %3, %5, %cst {dimension_numbers = #tpu.dot_dimension_numbers<[1], [0], [0], [1], [0, 0, 1, 1], [], []>} : vector<16x256xbf16>, vector<256x512xbf16>, vector<16x512xf32> -> vector<16x512xf32>
    %7 = arith.addf %4, %6 : vector<16x512xf32>
    %c0_6 = arith.constant 0 : index
    %c0_7 = arith.constant 0 : index
    %8 = vector.load %arg7[%c0_6, %c0_7] : memref<16x512xf32, #tpu.memory_space<vmem>>, vector<16x512xf32>
    tpu.vector_store %arg7[%c0_6, %c0_7], %7 {strides = array<i32>} : memref<16x512xf32, #tpu.memory_space<vmem>>, vector<16x512xf32>,
    %c0_i32_8 = arith.constant 0 : i32
    %9 = arith.cmpi eq, %arg2, %c0_i32_8 : i32
    %10 = arith.extui %9 : i1 to i32
    %c0_i32_9 = arith.constant 0 : i32
    %11 = arith.cmpi ne, %10, %c0_i32_9 : i32
    scf.if %11 {
      %c0_10 = arith.constant 0 : index
      %c0_11 = arith.constant 0 : index
      %12 = vector.load %arg7[%c0_10, %c0_11] : memref<16x512xf32, #tpu.memory_space<vmem>>, vector<16x512xf32>
      %c0_12 = arith.constant 0 : index
      %c0_13 = arith.constant 0 : index
      %13 = vector.load %arg5[%c0_12, %c0_13] : memref<1x512xf32, #tpu.memory_space<vmem>>, vector<1x512xf32>
      %14 = vector.broadcast %13 : vector<1x512xf32> to vector<16x512xf32>
      %15 = arith.addf %12, %14 : vector<16x512xf32>
      %cst_14 = arith.constant 0.000000e+00 : f32
      %16 = vector.broadcast %cst_14 : f32 to vector<16x512xf32>
      %17 = arith.maximumf %15, %16 : vector<16x512xf32>
      %18 = arith.truncf %17 : vector<16x512xf32> to vector<16x512xbf16>
      %c0_15 = arith.constant 0 : index
      %c0_16 = arith.constant 0 : index
      %19 = vector.load %arg6[%c0_15, %c0_16] : memref<16x512xbf16, #tpu.memory_space<vmem>>, vector<16x512xbf16>
      tpu.vector_store %arg6[%c0_15, %c0_16], %18 {strides = array<i32>} : memref<16x512xbf16, #tpu.memory_space<vmem>>, vector<16x512xbf16>,
    } else {
    }
    return
  }
  func.func @transform_0(%arg0: i32, %arg1: i32, %arg2: i32) -> (i32, i32) {
    %c0_i32 = arith.constant 0 : i32
    return %arg0, %arg2 : i32, i32
  }
  func.func @transform_1(%arg0: i32, %arg1: i32, %arg2: i32) -> (i32, i32) {
    %c0_i32 = arith.constant 0 : i32
    return %arg2, %arg1 : i32, i32
  }
  func.func @transform_2(%arg0: i32, %arg1: i32, %arg2: i32) -> (i32, i32) {
    %c0_i32 = arith.constant 0 : i32
    %c0_i32_0 = arith.constant 0 : i32
    return %c0_i32, %arg1 : i32, i32
  }
  func.func @transform_3(%arg0: i32, %arg1: i32, %arg2: i32) -> (i32, i32) {
    %c0_i32 = arith.constant 0 : i32
    return %arg0, %arg1 : i32, i32
  }
}

module attributes {stable_mosaic.version = 11 : i64} {
  func.func @_linear_add_ln_kernel(%arg0: i32, %arg1: i32, %arg2: memref<16x512xbf16, #tpu.memory_space<vmem>>, %arg3: memref<512x256xbf16, #tpu.memory_space<vmem>>, %arg4: memref<1x256xf32, #tpu.memory_space<vmem>>, %arg5: memref<16x256xbf16, #tpu.memory_space<vmem>>, %arg6: memref<1x256xf32, #tpu.memory_space<vmem>>, %arg7: memref<1x256xf32, #tpu.memory_space<vmem>>, %arg8: memref<16x256xbf16, #tpu.memory_space<vmem>>, %arg9: memref<16x256xf32, #tpu.memory_space<vmem>>) attributes {dimension_semantics = [#tpu.dimension_semantics<parallel>, #tpu.dimension_semantics<arbitrary>], iteration_bounds = array<i64: 1, 1>, scalar_prefetch = 0 : i64, scratch_operands = 1 : i64, tpu.core_type = #tpu.core_type<tc>, window_params = [{transform_indices = @transform_0, window_bounds = array<i64: 16, 512>}, {transform_indices = @transform_1, window_bounds = array<i64: 512, 256>}, {pipeline_mode = #tpu.pipeline_mode<synchronous>, transform_indices = @transform_2, window_bounds = array<i64: 1, 256>}, {transform_indices = @transform_3, window_bounds = array<i64: 16, 256>}, {pipeline_mode = #tpu.pipeline_mode<synchronous>, transform_indices = @transform_4, window_bounds = array<i64: 1, 256>}, {pipeline_mode = #tpu.pipeline_mode<synchronous>, transform_indices = @transform_5, window_bounds = array<i64: 1, 256>}, {transform_indices = @transform_6, window_bounds = array<i64: 16, 256>}]} {
    %c0_i32 = arith.constant 0 : i32
    %0 = arith.cmpi eq, %arg1, %c0_i32 : i32
    %1 = arith.extui %0 : i1 to i32
    %c0_i32_0 = arith.constant 0 : i32
    %2 = arith.cmpi ne, %1, %c0_i32_0 : i32
    scf.if %2 {
      %cst_10 = arith.constant 0.000000e+00 : f32
      %12 = vector.broadcast %cst_10 : f32 to vector<16x256xf32>
      %c0_11 = arith.constant 0 : index
      %c0_12 = arith.constant 0 : index
      %13 = vector.load %arg9[%c0_11, %c0_12] : memref<16x256xf32, #tpu.memory_space<vmem>>, vector<16x256xf32>
      tpu.vector_store %arg9[%c0_11, %c0_12], %12 {strides = array<i32>} : memref<16x256xf32, #tpu.memory_space<vmem>>, vector<16x256xf32>,
    } else {
    }
    %c0 = arith.constant 0 : index
    %c0_1 = arith.constant 0 : index
    %3 = vector.load %arg9[%c0, %c0_1] : memref<16x256xf32, #tpu.memory_space<vmem>>, vector<16x256xf32>
    %c0_2 = arith.constant 0 : index
    %c0_3 = arith.constant 0 : index
    %4 = vector.load %arg2[%c0_2, %c0_3] : memref<16x512xbf16, #tpu.memory_space<vmem>>, vector<16x512xbf16>
    %c0_4 = arith.constant 0 : index
    %c0_5 = arith.constant 0 : index
    %5 = vector.load %arg3[%c0_4, %c0_5] : memref<512x256xbf16, #tpu.memory_space<vmem>>, vector<512x256xbf16>
    %cst = arith.constant dense<0.000000e+00> : vector<16x256xf32>
    %6 = tpu.matmul %4, %5, %cst {dimension_numbers = #tpu.dot_dimension_numbers<[1], [0], [0], [1], [0, 0, 1, 1], [], []>} : vector<16x512xbf16>, vector<512x256xbf16>, vector<16x256xf32> -> vector<16x256xf32>
    %7 = arith.addf %3, %6 : vector<16x256xf32>
    %c0_6 = arith.constant 0 : index
    %c0_7 = arith.constant 0 : index
    %8 = vector.load %arg9[%c0_6, %c0_7] : memref<16x256xf32, #tpu.memory_space<vmem>>, vector<16x256xf32>
    tpu.vector_store %arg9[%c0_6, %c0_7], %7 {strides = array<i32>} : memref<16x256xf32, #tpu.memory_space<vmem>>, vector<16x256xf32>,
    %c0_i32_8 = arith.constant 0 : i32
    %9 = arith.cmpi eq, %arg1, %c0_i32_8 : i32
    %10 = arith.extui %9 : i1 to i32
    %c0_i32_9 = arith.constant 0 : i32
    %11 = arith.cmpi ne, %10, %c0_i32_9 : i32
    scf.if %11 {
      %c0_10 = arith.constant 0 : index
      %c0_11 = arith.constant 0 : index
      %12 = vector.load %arg9[%c0_10, %c0_11] : memref<16x256xf32, #tpu.memory_space<vmem>>, vector<16x256xf32>
      %c0_12 = arith.constant 0 : index
      %c0_13 = arith.constant 0 : index
      %13 = vector.load %arg4[%c0_12, %c0_13] : memref<1x256xf32, #tpu.memory_space<vmem>>, vector<1x256xf32>
      %14 = vector.broadcast %13 : vector<1x256xf32> to vector<16x256xf32>
      %15 = arith.addf %12, %14 : vector<16x256xf32>
      %c0_14 = arith.constant 0 : index
      %c0_15 = arith.constant 0 : index
      %16 = vector.load %arg5[%c0_14, %c0_15] : memref<16x256xbf16, #tpu.memory_space<vmem>>, vector<16x256xbf16>
      %17 = arith.extf %16 : vector<16x256xbf16> to vector<16x256xf32>
      %18 = arith.addf %15, %17 : vector<16x256xf32>
      %cst_16 = arith.constant dense<0.000000e+00> : vector<16xf32>
      %19 = vector.multi_reduction <add>, %18, %cst_16 [1] : vector<16x256xf32> to vector<16xf32>
      %20 = vector.shape_cast %19 : vector<16xf32> to vector<16x1xf32>
      %cst_17 = arith.constant 2.560000e+02 : f32
      %21 = vector.broadcast %cst_17 : f32 to vector<16x1xf32>
      %22 = arith.divf %20, %21 : vector<16x1xf32>
      %23 = vector.broadcast %22 : vector<16x1xf32> to vector<16x256xf32>
      %24 = arith.subf %18, %23 : vector<16x256xf32>
      %25 = arith.mulf %24, %24 : vector<16x256xf32>
      %cst_18 = arith.constant dense<0.000000e+00> : vector<16xf32>
      %26 = vector.multi_reduction <add>, %25, %cst_18 [1] : vector<16x256xf32> to vector<16xf32>
      %27 = vector.shape_cast %26 : vector<16xf32> to vector<16x1xf32>
      %cst_19 = arith.constant 2.560000e+02 : f32
      %28 = vector.broadcast %cst_19 : f32 to vector<16x1xf32>
      %29 = arith.divf %27, %28 : vector<16x1xf32>
      %cst_20 = arith.constant 9.99999974E-6 : f32
      %30 = vector.broadcast %cst_20 : f32 to vector<16x1xf32>
      %31 = arith.addf %29, %30 : vector<16x1xf32>
      %32 = math.rsqrt %31 : vector<16x1xf32>
      %33 = vector.broadcast %32 : vector<16x1xf32> to vector<16x256xf32>
      %34 = arith.mulf %24, %33 : vector<16x256xf32>
      %c0_21 = arith.constant 0 : index
      %c0_22 = arith.constant 0 : index
      %35 = vector.load %arg6[%c0_21, %c0_22] : memref<1x256xf32, #tpu.memory_space<vmem>>, vector<1x256xf32>
      %36 = vector.broadcast %35 : vector<1x256xf32> to vector<16x256xf32>
      %37 = arith.mulf %34, %36 : vector<16x256xf32>
      %c0_23 = arith.constant 0 : index
      %c0_24 = arith.constant 0 : index
      %38 = vector.load %arg7[%c0_23, %c0_24] : memref<1x256xf32, #tpu.memory_space<vmem>>, vector<1x256xf32>
      %39 = vector.broadcast %38 : vector<1x256xf32> to vector<16x256xf32>
      %40 = arith.addf %37, %39 : vector<16x256xf32>
      %41 = arith.truncf %40 : vector<16x256xf32> to vector<16x256xbf16>
      %c0_25 = arith.constant 0 : index
      %c0_26 = arith.constant 0 : index
      %42 = vector.load %arg8[%c0_25, %c0_26] : memref<16x256xbf16, #tpu.memory_space<vmem>>, vector<16x256xbf16>
      tpu.vector_store %arg8[%c0_25, %c0_26], %41 {strides = array<i32>} : memref<16x256xbf16, #tpu.memory_space<vmem>>, vector<16x256xbf16>,
    } else {
    }
    return
  }
  func.func @transform_0(%arg0: i32, %arg1: i32) -> (i32, i32) {
    %c0_i32 = arith.constant 0 : i32
    return %arg0, %arg1 : i32, i32
  }
  func.func @transform_1(%arg0: i32, %arg1: i32) -> (i32, i32) {
    %c0_i32 = arith.constant 0 : i32
    %c0_i32_0 = arith.constant 0 : i32
    return %arg1, %c0_i32 : i32, i32
  }
  func.func @transform_2(%arg0: i32, %arg1: i32) -> (i32, i32) {
    %c0_i32 = arith.constant 0 : i32
    %c0_i32_0 = arith.constant 0 : i32
    %c0_i32_1 = arith.constant 0 : i32
    return %c0_i32, %c0_i32_0 : i32, i32
  }
  func.func @transform_3(%arg0: i32, %arg1: i32) -> (i32, i32) {
    %c0_i32 = arith.constant 0 : i32
    %c0_i32_0 = arith.constant 0 : i32
    return %arg0, %c0_i32 : i32, i32
  }
  func.func @transform_4(%arg0: i32, %arg1: i32) -> (i32, i32) {
    %c0_i32 = arith.constant 0 : i32
    %c0_i32_0 = arith.constant 0 : i32
    %c0_i32_1 = arith.constant 0 : i32
    return %c0_i32, %c0_i32_0 : i32, i32
  }
  func.func @transform_5(%arg0: i32, %arg1: i32) -> (i32, i32) {
    %c0_i32 = arith.constant 0 : i32
    %c0_i32_0 = arith.constant 0 : i32
    %c0_i32_1 = arith.constant 0 : i32
    return %c0_i32, %c0_i32_0 : i32, i32
  }
  func.func @transform_6(%arg0: i32, %arg1: i32) -> (i32, i32) {
    %c0_i32 = arith.constant 0 : i32
    %c0_i32_0 = arith.constant 0 : i32
    return %arg0, %c0_i32 : i32, i32
  }
}

module attributes {stable_mosaic.version = 11 : i64} {
  func.func @_seqmean_kernel(%arg0: i32, %arg1: i32, %arg2: memref<2x8x256xbf16, #tpu.memory_space<vmem>>, %arg3: memref<2x256xbf16, #tpu.memory_space<vmem>>, %arg4: memref<2x256xf32, #tpu.memory_space<vmem>>) attributes {dimension_semantics = [#tpu.dimension_semantics<parallel>, #tpu.dimension_semantics<arbitrary>], iteration_bounds = array<i64: 1, 1>, scalar_prefetch = 0 : i64, scratch_operands = 1 : i64, tpu.core_type = #tpu.core_type<tc>, window_params = [{transform_indices = @transform_0, window_bounds = array<i64: 2, 8, 256>}, {transform_indices = @transform_1, window_bounds = array<i64: 2, 256>}]} {
    %c0_i32 = arith.constant 0 : i32
    %0 = arith.cmpi eq, %arg1, %c0_i32 : i32
    %1 = arith.extui %0 : i1 to i32
    %c0_i32_0 = arith.constant 0 : i32
    %2 = arith.cmpi ne, %1, %c0_i32_0 : i32
    scf.if %2 {
      %cst_9 = arith.constant 0.000000e+00 : f32
      %12 = vector.broadcast %cst_9 : f32 to vector<2x256xf32>
      %c0_10 = arith.constant 0 : index
      %c0_11 = arith.constant 0 : index
      %13 = vector.load %arg4[%c0_10, %c0_11] : memref<2x256xf32, #tpu.memory_space<vmem>>, vector<2x256xf32>
      tpu.vector_store %arg4[%c0_10, %c0_11], %12 {strides = array<i32>} : memref<2x256xf32, #tpu.memory_space<vmem>>, vector<2x256xf32>,
    } else {
    }
    %c0 = arith.constant 0 : index
    %c0_1 = arith.constant 0 : index
    %3 = vector.load %arg4[%c0, %c0_1] : memref<2x256xf32, #tpu.memory_space<vmem>>, vector<2x256xf32>
    %c0_2 = arith.constant 0 : index
    %c0_3 = arith.constant 0 : index
    %c0_4 = arith.constant 0 : index
    %4 = vector.load %arg2[%c0_2, %c0_3, %c0_4] : memref<2x8x256xbf16, #tpu.memory_space<vmem>>, vector<2x8x256xbf16>
    %5 = arith.extf %4 : vector<2x8x256xbf16> to vector<2x8x256xf32>
    %cst = arith.constant dense<0.000000e+00> : vector<2x256xf32>
    %6 = vector.multi_reduction <add>, %5, %cst [1] : vector<2x8x256xf32> to vector<2x256xf32>
    %7 = arith.addf %3, %6 : vector<2x256xf32>
    %c0_5 = arith.constant 0 : index
    %c0_6 = arith.constant 0 : index
    %8 = vector.load %arg4[%c0_5, %c0_6] : memref<2x256xf32, #tpu.memory_space<vmem>>, vector<2x256xf32>
    tpu.vector_store %arg4[%c0_5, %c0_6], %7 {strides = array<i32>} : memref<2x256xf32, #tpu.memory_space<vmem>>, vector<2x256xf32>,
    %c0_i32_7 = arith.constant 0 : i32
    %9 = arith.cmpi eq, %arg1, %c0_i32_7 : i32
    %10 = arith.extui %9 : i1 to i32
    %c0_i32_8 = arith.constant 0 : i32
    %11 = arith.cmpi ne, %10, %c0_i32_8 : i32
    scf.if %11 {
      %c0_9 = arith.constant 0 : index
      %c0_10 = arith.constant 0 : index
      %12 = vector.load %arg4[%c0_9, %c0_10] : memref<2x256xf32, #tpu.memory_space<vmem>>, vector<2x256xf32>
      %cst_11 = arith.constant 1.250000e-01 : f32
      %13 = vector.broadcast %cst_11 : f32 to vector<2x256xf32>
      %14 = arith.mulf %12, %13 : vector<2x256xf32>
      %15 = arith.truncf %14 : vector<2x256xf32> to vector<2x256xbf16>
      %c0_12 = arith.constant 0 : index
      %c0_13 = arith.constant 0 : index
      %16 = vector.load %arg3[%c0_12, %c0_13] : memref<2x256xbf16, #tpu.memory_space<vmem>>, vector<2x256xbf16>
      tpu.vector_store %arg3[%c0_12, %c0_13], %15 {strides = array<i32>} : memref<2x256xbf16, #tpu.memory_space<vmem>>, vector<2x256xbf16>,
    } else {
    }
    return
  }
  func.func @transform_0(%arg0: i32, %arg1: i32) -> (i32, i32, i32) {
    %c0_i32 = arith.constant 0 : i32
    %c0_i32_0 = arith.constant 0 : i32
    return %arg0, %arg1, %c0_i32 : i32, i32, i32
  }
  func.func @transform_1(%arg0: i32, %arg1: i32) -> (i32, i32) {
    %c0_i32 = arith.constant 0 : i32
    %c0_i32_0 = arith.constant 0 : i32
    return %arg0, %c0_i32 : i32, i32
  }
}

module attributes {stable_mosaic.version = 11 : i64} {
  func.func @_linear_kernel(%arg0: i32, %arg1: i32, %arg2: i32, %arg3: memref<16x256xbf16, #tpu.memory_space<vmem>>, %arg4: memref<256x768xbf16, #tpu.memory_space<vmem>>, %arg5: memref<1x768xf32, #tpu.memory_space<vmem>>, %arg6: memref<16x768xbf16, #tpu.memory_space<vmem>>, %arg7: memref<16x768xf32, #tpu.memory_space<vmem>>) attributes {dimension_semantics = [#tpu.dimension_semantics<parallel>, #tpu.dimension_semantics<parallel>, #tpu.dimension_semantics<arbitrary>], iteration_bounds = array<i64: 1, 1, 1>, scalar_prefetch = 0 : i64, scratch_operands = 1 : i64, tpu.core_type = #tpu.core_type<tc>, window_params = [{transform_indices = @transform_0, window_bounds = array<i64: 16, 256>}, {transform_indices = @transform_1, window_bounds = array<i64: 256, 768>}, {transform_indices = @transform_2, window_bounds = array<i64: 1, 768>}, {transform_indices = @transform_3, window_bounds = array<i64: 16, 768>}]} {
    %c0_i32 = arith.constant 0 : i32
    %0 = arith.cmpi eq, %arg2, %c0_i32 : i32
    %1 = arith.extui %0 : i1 to i32
    %c0_i32_0 = arith.constant 0 : i32
    %2 = arith.cmpi ne, %1, %c0_i32_0 : i32
    scf.if %2 {
      %cst_10 = arith.constant 0.000000e+00 : f32
      %12 = vector.broadcast %cst_10 : f32 to vector<16x768xf32>
      %c0_11 = arith.constant 0 : index
      %c0_12 = arith.constant 0 : index
      %13 = vector.load %arg7[%c0_11, %c0_12] : memref<16x768xf32, #tpu.memory_space<vmem>>, vector<16x768xf32>
      tpu.vector_store %arg7[%c0_11, %c0_12], %12 {strides = array<i32>} : memref<16x768xf32, #tpu.memory_space<vmem>>, vector<16x768xf32>,
    } else {
    }
    %c0 = arith.constant 0 : index
    %c0_1 = arith.constant 0 : index
    %3 = vector.load %arg3[%c0, %c0_1] : memref<16x256xbf16, #tpu.memory_space<vmem>>, vector<16x256xbf16>
    %c0_2 = arith.constant 0 : index
    %c0_3 = arith.constant 0 : index
    %4 = vector.load %arg7[%c0_2, %c0_3] : memref<16x768xf32, #tpu.memory_space<vmem>>, vector<16x768xf32>
    %c0_4 = arith.constant 0 : index
    %c0_5 = arith.constant 0 : index
    %5 = vector.load %arg4[%c0_4, %c0_5] : memref<256x768xbf16, #tpu.memory_space<vmem>>, vector<256x768xbf16>
    %cst = arith.constant dense<0.000000e+00> : vector<16x768xf32>
    %6 = tpu.matmul %3, %5, %cst {dimension_numbers = #tpu.dot_dimension_numbers<[1], [0], [0], [1], [0, 0, 1, 1], [], []>} : vector<16x256xbf16>, vector<256x768xbf16>, vector<16x768xf32> -> vector<16x768xf32>
    %7 = arith.addf %4, %6 : vector<16x768xf32>
    %c0_6 = arith.constant 0 : index
    %c0_7 = arith.constant 0 : index
    %8 = vector.load %arg7[%c0_6, %c0_7] : memref<16x768xf32, #tpu.memory_space<vmem>>, vector<16x768xf32>
    tpu.vector_store %arg7[%c0_6, %c0_7], %7 {strides = array<i32>} : memref<16x768xf32, #tpu.memory_space<vmem>>, vector<16x768xf32>,
    %c0_i32_8 = arith.constant 0 : i32
    %9 = arith.cmpi eq, %arg2, %c0_i32_8 : i32
    %10 = arith.extui %9 : i1 to i32
    %c0_i32_9 = arith.constant 0 : i32
    %11 = arith.cmpi ne, %10, %c0_i32_9 : i32
    scf.if %11 {
      %c0_10 = arith.constant 0 : index
      %c0_11 = arith.constant 0 : index
      %12 = vector.load %arg7[%c0_10, %c0_11] : memref<16x768xf32, #tpu.memory_space<vmem>>, vector<16x768xf32>
      %c0_12 = arith.constant 0 : index
      %c0_13 = arith.constant 0 : index
      %13 = vector.load %arg5[%c0_12, %c0_13] : memref<1x768xf32, #tpu.memory_space<vmem>>, vector<1x768xf32>
      %14 = vector.broadcast %13 : vector<1x768xf32> to vector<16x768xf32>
      %15 = arith.addf %12, %14 : vector<16x768xf32>
      %16 = arith.truncf %15 : vector<16x768xf32> to vector<16x768xbf16>
      %c0_14 = arith.constant 0 : index
      %c0_15 = arith.constant 0 : index
      %17 = vector.load %arg6[%c0_14, %c0_15] : memref<16x768xbf16, #tpu.memory_space<vmem>>, vector<16x768xbf16>
      tpu.vector_store %arg6[%c0_14, %c0_15], %16 {strides = array<i32>} : memref<16x768xbf16, #tpu.memory_space<vmem>>, vector<16x768xbf16>,
    } else {
    }
    return
  }
  func.func @transform_0(%arg0: i32, %arg1: i32, %arg2: i32) -> (i32, i32) {
    %c0_i32 = arith.constant 0 : i32
    return %arg0, %arg2 : i32, i32
  }
  func.func @transform_1(%arg0: i32, %arg1: i32, %arg2: i32) -> (i32, i32) {
    %c0_i32 = arith.constant 0 : i32
    return %arg2, %arg1 : i32, i32
  }
  func.func @transform_2(%arg0: i32, %arg1: i32, %arg2: i32) -> (i32, i32) {
    %c0_i32 = arith.constant 0 : i32
    %c0_i32_0 = arith.constant 0 : i32
    return %c0_i32, %arg1 : i32, i32
  }
  func.func @transform_3(%arg0: i32, %arg1: i32, %arg2: i32) -> (i32, i32) {
    %c0_i32 = arith.constant 0 : i32
    return %arg0, %arg1 : i32, i32
  }
}

module attributes {stable_mosaic.version = 11 : i64} {
  func.func @_linear_kernel(%arg0: i32, %arg1: i32, %arg2: i32, %arg3: memref<2x256xbf16, #tpu.memory_space<vmem>>, %arg4: memref<256x512xbf16, #tpu.memory_space<vmem>>, %arg5: memref<1x512xf32, #tpu.memory_space<vmem>>, %arg6: memref<2x512xbf16, #tpu.memory_space<vmem>>, %arg7: memref<2x512xf32, #tpu.memory_space<vmem>>) attributes {dimension_semantics = [#tpu.dimension_semantics<parallel>, #tpu.dimension_semantics<parallel>, #tpu.dimension_semantics<arbitrary>], iteration_bounds = array<i64: 1, 1, 1>, scalar_prefetch = 0 : i64, scratch_operands = 1 : i64, tpu.core_type = #tpu.core_type<tc>, window_params = [{transform_indices = @transform_0, window_bounds = array<i64: 2, 256>}, {transform_indices = @transform_1, window_bounds = array<i64: 256, 512>}, {transform_indices = @transform_2, window_bounds = array<i64: 1, 512>}, {transform_indices = @transform_3, window_bounds = array<i64: 2, 512>}]} {
    %c0_i32 = arith.constant 0 : i32
    %0 = arith.cmpi eq, %arg2, %c0_i32 : i32
    %1 = arith.extui %0 : i1 to i32
    %c0_i32_0 = arith.constant 0 : i32
    %2 = arith.cmpi ne, %1, %c0_i32_0 : i32
    scf.if %2 {
      %cst_10 = arith.constant 0.000000e+00 : f32
      %12 = vector.broadcast %cst_10 : f32 to vector<2x512xf32>
      %c0_11 = arith.constant 0 : index
      %c0_12 = arith.constant 0 : index
      %13 = vector.load %arg7[%c0_11, %c0_12] : memref<2x512xf32, #tpu.memory_space<vmem>>, vector<2x512xf32>
      tpu.vector_store %arg7[%c0_11, %c0_12], %12 {strides = array<i32>} : memref<2x512xf32, #tpu.memory_space<vmem>>, vector<2x512xf32>,
    } else {
    }
    %c0 = arith.constant 0 : index
    %c0_1 = arith.constant 0 : index
    %3 = vector.load %arg3[%c0, %c0_1] : memref<2x256xbf16, #tpu.memory_space<vmem>>, vector<2x256xbf16>
    %c0_2 = arith.constant 0 : index
    %c0_3 = arith.constant 0 : index
    %4 = vector.load %arg7[%c0_2, %c0_3] : memref<2x512xf32, #tpu.memory_space<vmem>>, vector<2x512xf32>
    %c0_4 = arith.constant 0 : index
    %c0_5 = arith.constant 0 : index
    %5 = vector.load %arg4[%c0_4, %c0_5] : memref<256x512xbf16, #tpu.memory_space<vmem>>, vector<256x512xbf16>
    %cst = arith.constant dense<0.000000e+00> : vector<2x512xf32>
    %6 = tpu.matmul %3, %5, %cst {dimension_numbers = #tpu.dot_dimension_numbers<[1], [0], [0], [1], [0, 0, 1, 1], [], []>} : vector<2x256xbf16>, vector<256x512xbf16>, vector<2x512xf32> -> vector<2x512xf32>
    %7 = arith.addf %4, %6 : vector<2x512xf32>
    %c0_6 = arith.constant 0 : index
    %c0_7 = arith.constant 0 : index
    %8 = vector.load %arg7[%c0_6, %c0_7] : memref<2x512xf32, #tpu.memory_space<vmem>>, vector<2x512xf32>
    tpu.vector_store %arg7[%c0_6, %c0_7], %7 {strides = array<i32>} : memref<2x512xf32, #tpu.memory_space<vmem>>, vector<2x512xf32>,
    %c0_i32_8 = arith.constant 0 : i32
    %9 = arith.cmpi eq, %arg2, %c0_i32_8 : i32
    %10 = arith.extui %9 : i1 to i32
    %c0_i32_9 = arith.constant 0 : i32
    %11 = arith.cmpi ne, %10, %c0_i32_9 : i32
    scf.if %11 {
      %c0_10 = arith.constant 0 : index
      %c0_11 = arith.constant 0 : index
      %12 = vector.load %arg7[%c0_10, %c0_11] : memref<2x512xf32, #tpu.memory_space<vmem>>, vector<2x512xf32>
      %c0_12 = arith.constant 0 : index
      %c0_13 = arith.constant 0 : index
      %13 = vector.load %arg5[%c0_12, %c0_13] : memref<1x512xf32, #tpu.memory_space<vmem>>, vector<1x512xf32>
      %14 = vector.broadcast %13 : vector<1x512xf32> to vector<2x512xf32>
      %15 = arith.addf %12, %14 : vector<2x512xf32>
      %cst_14 = arith.constant 0.000000e+00 : f32
      %16 = vector.broadcast %cst_14 : f32 to vector<2x512xf32>
      %17 = arith.maximumf %15, %16 : vector<2x512xf32>
      %18 = arith.truncf %17 : vector<2x512xf32> to vector<2x512xbf16>
      %c0_15 = arith.constant 0 : index
      %c0_16 = arith.constant 0 : index
      %19 = vector.load %arg6[%c0_15, %c0_16] : memref<2x512xbf16, #tpu.memory_space<vmem>>, vector<2x512xbf16>
      tpu.vector_store %arg6[%c0_15, %c0_16], %18 {strides = array<i32>} : memref<2x512xbf16, #tpu.memory_space<vmem>>, vector<2x512xbf16>,
    } else {
    }
    return
  }
  func.func @transform_0(%arg0: i32, %arg1: i32, %arg2: i32) -> (i32, i32) {
    %c0_i32 = arith.constant 0 : i32
    return %arg0, %arg2 : i32, i32
  }
  func.func @transform_1(%arg0: i32, %arg1: i32, %arg2: i32) -> (i32, i32) {
    %c0_i32 = arith.constant 0 : i32
    return %arg2, %arg1 : i32, i32
  }
  func.func @transform_2(%arg0: i32, %arg1: i32, %arg2: i32) -> (i32, i32) {
    %c0_i32 = arith.constant 0 : i32
    %c0_i32_0 = arith.constant 0 : i32
    return %c0_i32, %arg1 : i32, i32
  }
  func.func @transform_3(%arg0: i32, %arg1: i32, %arg2: i32) -> (i32, i32) {
    %c0_i32 = arith.constant 0 : i32
    return %arg0, %arg1 : i32, i32
  }
}

module attributes {stable_mosaic.version = 11 : i64} {
  func.func @_linear_kernel(%arg0: i32, %arg1: i32, %arg2: i32, %arg3: memref<2x512xbf16, #tpu.memory_space<vmem>>, %arg4: memref<512x256xbf16, #tpu.memory_space<vmem>>, %arg5: memref<1x256xf32, #tpu.memory_space<vmem>>, %arg6: memref<2x256xf32, #tpu.memory_space<vmem>>, %arg7: memref<2x256xf32, #tpu.memory_space<vmem>>) attributes {dimension_semantics = [#tpu.dimension_semantics<parallel>, #tpu.dimension_semantics<parallel>, #tpu.dimension_semantics<arbitrary>], iteration_bounds = array<i64: 1, 1, 1>, scalar_prefetch = 0 : i64, scratch_operands = 1 : i64, tpu.core_type = #tpu.core_type<tc>, window_params = [{transform_indices = @transform_0, window_bounds = array<i64: 2, 512>}, {transform_indices = @transform_1, window_bounds = array<i64: 512, 256>}, {transform_indices = @transform_2, window_bounds = array<i64: 1, 256>}, {transform_indices = @transform_3, window_bounds = array<i64: 2, 256>}]} {
    %c0_i32 = arith.constant 0 : i32
    %0 = arith.cmpi eq, %arg2, %c0_i32 : i32
    %1 = arith.extui %0 : i1 to i32
    %c0_i32_0 = arith.constant 0 : i32
    %2 = arith.cmpi ne, %1, %c0_i32_0 : i32
    scf.if %2 {
      %cst_10 = arith.constant 0.000000e+00 : f32
      %12 = vector.broadcast %cst_10 : f32 to vector<2x256xf32>
      %c0_11 = arith.constant 0 : index
      %c0_12 = arith.constant 0 : index
      %13 = vector.load %arg7[%c0_11, %c0_12] : memref<2x256xf32, #tpu.memory_space<vmem>>, vector<2x256xf32>
      tpu.vector_store %arg7[%c0_11, %c0_12], %12 {strides = array<i32>} : memref<2x256xf32, #tpu.memory_space<vmem>>, vector<2x256xf32>,
    } else {
    }
    %c0 = arith.constant 0 : index
    %c0_1 = arith.constant 0 : index
    %3 = vector.load %arg3[%c0, %c0_1] : memref<2x512xbf16, #tpu.memory_space<vmem>>, vector<2x512xbf16>
    %c0_2 = arith.constant 0 : index
    %c0_3 = arith.constant 0 : index
    %4 = vector.load %arg7[%c0_2, %c0_3] : memref<2x256xf32, #tpu.memory_space<vmem>>, vector<2x256xf32>
    %c0_4 = arith.constant 0 : index
    %c0_5 = arith.constant 0 : index
    %5 = vector.load %arg4[%c0_4, %c0_5] : memref<512x256xbf16, #tpu.memory_space<vmem>>, vector<512x256xbf16>
    %cst = arith.constant dense<0.000000e+00> : vector<2x256xf32>
    %6 = tpu.matmul %3, %5, %cst {dimension_numbers = #tpu.dot_dimension_numbers<[1], [0], [0], [1], [0, 0, 1, 1], [], []>} : vector<2x512xbf16>, vector<512x256xbf16>, vector<2x256xf32> -> vector<2x256xf32>
    %7 = arith.addf %4, %6 : vector<2x256xf32>
    %c0_6 = arith.constant 0 : index
    %c0_7 = arith.constant 0 : index
    %8 = vector.load %arg7[%c0_6, %c0_7] : memref<2x256xf32, #tpu.memory_space<vmem>>, vector<2x256xf32>
    tpu.vector_store %arg7[%c0_6, %c0_7], %7 {strides = array<i32>} : memref<2x256xf32, #tpu.memory_space<vmem>>, vector<2x256xf32>,
    %c0_i32_8 = arith.constant 0 : i32
    %9 = arith.cmpi eq, %arg2, %c0_i32_8 : i32
    %10 = arith.extui %9 : i1 to i32
    %c0_i32_9 = arith.constant 0 : i32
    %11 = arith.cmpi ne, %10, %c0_i32_9 : i32
    scf.if %11 {
      %c0_10 = arith.constant 0 : index
      %c0_11 = arith.constant 0 : index
      %12 = vector.load %arg7[%c0_10, %c0_11] : memref<2x256xf32, #tpu.memory_space<vmem>>, vector<2x256xf32>
      %c0_12 = arith.constant 0 : index
      %c0_13 = arith.constant 0 : index
      %13 = vector.load %arg5[%c0_12, %c0_13] : memref<1x256xf32, #tpu.memory_space<vmem>>, vector<1x256xf32>
      %14 = vector.broadcast %13 : vector<1x256xf32> to vector<2x256xf32>
      %15 = arith.addf %12, %14 : vector<2x256xf32>
      %c0_14 = arith.constant 0 : index
      %c0_15 = arith.constant 0 : index
      %16 = vector.load %arg6[%c0_14, %c0_15] : memref<2x256xf32, #tpu.memory_space<vmem>>, vector<2x256xf32>
      tpu.vector_store %arg6[%c0_14, %c0_15], %15 {strides = array<i32>} : memref<2x256xf32, #tpu.memory_space<vmem>>, vector<2x256xf32>,
    } else {
    }
    return
  }
  func.func @transform_0(%arg0: i32, %arg1: i32, %arg2: i32) -> (i32, i32) {
    %c0_i32 = arith.constant 0 : i32
    return %arg0, %arg2 : i32, i32
  }
  func.func @transform_1(%arg0: i32, %arg1: i32, %arg2: i32) -> (i32, i32) {
    %c0_i32 = arith.constant 0 : i32
    return %arg2, %arg1 : i32, i32
  }
  func.func @transform_2(%arg0: i32, %arg1: i32, %arg2: i32) -> (i32, i32) {
    %c0_i32 = arith.constant 0 : i32
    %c0_i32_0 = arith.constant 0 : i32
    return %c0_i32, %arg1 : i32, i32
  }
  func.func @transform_3(%arg0: i32, %arg1: i32, %arg2: i32) -> (i32, i32) {
    %c0_i32 = arith.constant 0 : i32
    return %arg0, %arg1 : i32, i32
  }
}

</mosaic_0001>

<llo_original>
// kernel: image_transformer_forward.16
$region0: #{image_transformer_forward.16}
  #allocation0 [shape = 'u32[]', space=smem, size = 0x4, offset = 0x4, fixed_abs, tag = 'smem constant byte address 0x4 - core index']
  #allocation1 [shape = 'u32[144,128]{1,0:T(1,128)}', space=vmem, size = 0x12000, scoped, tag = 'internal scratch']
  %s0 = inlined_call_operand.vmem [shape: bf16[16,768], index: 0, kind: input, shape index: {}, may-alias: {0,1,2}]
  %s1 = inlined_call_operand.vmem [shape: bf16[16,768], index: 1, kind: input, shape index: {}, may-alias: {0,1,2}]
  %s2 = inlined_call_operand.vmem [shape: bf16[16,768], index: 2, kind: input, shape index: {}, may-alias: {0,1,2}]
  %s3 = inlined_call_operand.vmem [shape: bf16[16,256], index: 3, kind: output, shape index: {}]
  %s4 = sld [smem:[#allocation0]]
  $region45: #{image_transformer_forward.16} parent=0
    _
  %s6 = ssub.s32 1, %s4
  %s7 = scalar_select 0, %s6, %s4
  loop: start=0, step=1, limit=6
  $region2: #{image_transformer_forward.16} parent=0 // loop_pre_header
    _
  $region3: #{image_transformer_forward.16} parent=0 // loop_header
    %s9 = sphi 0, %s13
    %p10 = scmp.ge.s32.totalorder %s9, 6
    %s16 = sphi 0, %s28
    %s17 = sphi 0, %s24
    %s18 = sphi 0, %s16
    %s19 = sphi 0, %s17
    %s20 = sphi 0, %s18
    %s21 = sphi 0, %s19
    %s33 = sphi 0, %s35
    %s36 = sphi 0, %s33
    %s37 = sphi 0, %s36
    %s53 = sphi 0, %s37
    %s63 = sphi 0, %s65
    %s66 = sphi 0, %s63
    %s67 = sphi 0, %s66
    %s83 = sphi 0, %s67
    %s93 = sphi 0, %s95
    %s96 = sphi 0, %s93
    %s97 = sphi 0, %s96
    %s113 = sphi 0, %s97
    %s121 = sphi 0, %s123
    %s124 = sphi 0, %s121
    %s125 = sphi 0, %s124
    %s141 = sphi 0, %s125
  $region4: #{image_transformer_forward.16} parent=0 // loop_header_branch
    %12 = sbr.rel (%p10) target = $region8
  $region5: #{image_transformer_forward.16} parent=0 // loop_body
    %s14 = ssub.s32 %s9, 1
    %s15 = ssub.s32 %s9, 2
    %s22 = sadd.s32 1, %s17
    %p23 = scmp.ge.s32.totalorder %s22, 2
    %s24 = scalar_select %p23, 0, %s22
    %s25 = sadd.s32 1, %s16
    %s26 = scalar_select %p23, %s25, %s16
    %p27 = scmp.ge.s32.totalorder %s26, 2
    %s28 = scalar_select %p27, 0, %s26
    %s29 = ssub.s32 %s16, %s28
    %s30 = ssub.s32 %s17, %s24
    %s31 = sor.u32 %s29, %s30
    %p32 = scmp.eq.s32.totalorder %s31, 0
    %s34 = sadd.s32 %s33, 1
    %s35 = scalar_select %p32, %s33, %s34
    %p38 = pneg %p32
    %p39 = scmp.eq.s32.totalorder %s9, 3
    %p40 = por %p38, %p39
    %p41 = scmp.ne.s32.totalorder %s33, %s36
    %p42 = scmp.eq.s32.totalorder %s9, 0
    %p43 = por %p41, %p42
    %p44 = scmp.ne.s32.totalorder %s33, %s36
    %p45 = scmp.eq.s32.totalorder %s14, 3
    %p46 = por %p44, %p45
    %p47 = scmp.ne.s32.totalorder %s36, %s37
    %p48 = scmp.eq.s32.totalorder %s14, 0
    %p49 = por %p47, %p48
    %p50 = scmp.ne.s32.totalorder %s36, %s37
    %p51 = scmp.eq.s32.totalorder %s15, 3
    %p52 = por %p50, %p51
    %p54 = scmp.ne.s32.totalorder %s37, %s53
    %p55 = scmp.eq.s32.totalorder %s15, 0
    %p56 = por %p54, %p55
    %s57 = sadd.s32 %s17, 2
    %s58 = sadd.s32 %s24, 2
    %s59 = ssub.s32 %s16, %s28
    %s60 = ssub.s32 %s57, %s58
    %s61 = sor.u32 %s59, %s60
    %p62 = scmp.eq.s32.totalorder %s61, 0
    %s64 = sadd.s32 %s63, 1
    %s65 = scalar_select %p62, %s63, %s64
    %p68 = pneg %p62
    %p69 = scmp.eq.s32.totalorder %s9, 3
    %p70 = por %p68, %p69
    %p71 = scmp.ne.s32.totalorder %s63, %s66
    %p72 = scmp.eq.s32.totalorder %s9, 0
    %p73 = por %p71, %p72
    %p74 = scmp.ne.s32.totalorder %s63, %s66
    %p75 = scmp.eq.s32.totalorder %s14, 3
    %p76 = por %p74, %p75
    %p77 = scmp.ne.s32.totalorder %s66, %s67
    %p78 = scmp.eq.s32.totalorder %s14, 0
    %p79 = por %p77, %p78
    %p80 = scmp.ne.s32.totalorder %s66, %s67
    %p81 = scmp.eq.s32.totalorder %s15, 3
    %p82 = por %p80, %p81
    %p84 = scmp.ne.s32.totalorder %s67, %s83
    %p85 = scmp.eq.s32.totalorder %s15, 0
    %p86 = por %p84, %p85
    %s87 = sadd.s32 %s17, 4
    %s88 = sadd.s32 %s24, 4
    %s89 = ssub.s32 %s16, %s28
    %s90 = ssub.s32 %s87, %s88
    %s91 = sor.u32 %s89, %s90
    %p92 = scmp.eq.s32.totalorder %s91, 0
    %s94 = sadd.s32 %s93, 1
    %s95 = scalar_select %p92, %s93, %s94
    %p98 = pneg %p92
    %p99 = scmp.eq.s32.totalorder %s9, 3
    %p100 = por %p98, %p99
    %p101 = scmp.ne.s32.totalorder %s93, %s96
    %p102 = scmp.eq.s32.totalorder %s9, 0
    %p103 = por %p101, %p102
    %p104 = scmp.ne.s32.totalorder %s93, %s96
    %p105 = scmp.eq.s32.totalorder %s14, 3
    %p106 = por %p104, %p105
    %p107 = scmp.ne.s32.totalorder %s96, %s97
    %p108 = scmp.eq.s32.totalorder %s14, 0
    %p109 = por %p107, %p108
    %p110 = scmp.ne.s32.totalorder %s96, %s97
    %p111 = scmp.eq.s32.totalorder %s15, 3
    %p112 = por %p110, %p111
    %p114 = scmp.ne.s32.totalorder %s97, %s113
    %p115 = scmp.eq.s32.totalorder %s15, 0
    %p116 = por %p114, %p115
    %s117 = ssub.s32 %s16, %s28
    %s118 = ssub.s32 %s17, %s24
    %s119 = sor.u32 %s117, %s118
    %p120 = scmp.eq.s32.totalorder %s119, 0
    %s122 = sadd.s32 %s121, 1
    %s123 = scalar_select %p120, %s121, %s122
    %p126 = pneg %p120
    %p127 = scmp.eq.s32.totalorder %s9, 3
    %p128 = por %p126, %p127
    %p129 = scmp.ne.s32.totalorder %s121, %s124
    %p130 = scmp.eq.s32.totalorder %s9, 0
    %p131 = por %p129, %p130
    %p132 = scmp.ne.s32.totalorder %s121, %s124
    %p133 = scmp.eq.s32.totalorder %s14, 3
    %p134 = por %p132, %p133
    %p135 = scmp.ne.s32.totalorder %s124, %s125
    %p136 = scmp.eq.s32.totalorder %s14, 0
    %p137 = por %p135, %p136
    %p138 = scmp.ne.s32.totalorder %s124, %s125
    %p139 = scmp.eq.s32.totalorder %s15, 3
    %p140 = por %p138, %p139
    %p142 = scmp.ne.s32.totalorder %s125, %s141
    %p143 = scmp.eq.s32.totalorder %s15, 0
    %p144 = por %p142, %p143
    %p145 = scmp.le.s32.totalorder 1, %s9
    %p146 = scmp.lt.s32.totalorder %s9, 5
    %p147 = pnand %p145, %p146
    %p148 = pneg %p147
    // Predicated region
    $region9: #{image_transformer_forward.16} parent=5 // pred_check
      _
    $region10: #{image_transformer_forward.16} parent=5 // pred_check_branch
      %150 = sbr.rel (%p147) target = $region12
    $region11: #{image_transformer_forward.16} parent=5 // pred_region
      %s151 = ssub.s32 %s9, 1
    $region12: #{image_transformer_forward.16} parent=5 // pred_fallthru
      _
    %p152 = scmp.lt.s32.totalorder %s9, 4
    // Predicated region
    $region13: #{image_transformer_forward.16} parent=5 // pred_check
      %p153 = pneg %p152
    $region14: #{image_transformer_forward.16} parent=5 // pred_check_branch
      %155 = sbr.rel (%p153) target = $region16
    $region15: #{image_transformer_forward.16} parent=5 // pred_region
      // Predicated region
      $region17: #{image_transformer_forward.16} parent=15 // pred_check
        %p156 = pneg %p43
      $region18: #{image_transformer_forward.16} parent=15 // pred_check_branch
        %158 = sbr.rel (%p156) target = $region20
      $region19: #{image_transformer_forward.16} parent=15 // pred_region
        %p159 = scmp.lt.s32.totalorder %s16, 1
        %s160 = scalar_select %p159, %s16, 1
        %p161 = scmp.lt.s32.totalorder %s17, 5
        %s162 = scalar_select %p161, %s17, 5
        %s163 = smul.addr %s160, 6
        %s164 = sadd.s32 %s162, %s163
        %s165 = smul.addr %s164, 4
        %s166 = scalar_lea.vmem %s0, %s165
      $region20: #{image_transformer_forward.16} parent=15 // pred_fallthru
        _
      // Predicated region
      $region21: #{image_transformer_forward.16} parent=15 // pred_check
        %p167 = pneg %p73
      $region22: #{image_transformer_forward.16} parent=15 // pred_check_branch
        %169 = sbr.rel (%p167) target = $region24
      $region23: #{image_transformer_forward.16} parent=15 // pred_region
        %s170 = sadd.s32 %s17, 2
        %p171 = scmp.lt.s32.totalorder %s16, 1
        %s172 = scalar_select %p171, %s16, 1
        %p173 = scmp.lt.s32.totalorder %s170, 5
        %s174 = scalar_select %p173, %s170, 5
        %s175 = smul.addr %s172, 6
        %s176 = sadd.s32 %s174, %s175
        %s177 = smul.addr %s176, 4
        %s178 = scalar_lea.vmem %s1, %s177
        %s179 = sadd.s32 %s17, 2
      $region24: #{image_transformer_forward.16} parent=15 // pred_fallthru
        _
      // Predicated region
      $region25: #{image_transformer_forward.16} parent=15 // pred_check
        %p180 = pneg %p103
      $region26: #{image_transformer_forward.16} parent=15 // pred_check_branch
        %182 = sbr.rel (%p180) target = $region28
      $region27: #{image_transformer_forward.16} parent=15 // pred_region
        %s183 = sadd.s32 %s17, 4
        %p184 = scmp.lt.s32.totalorder %s16, 1
        %s185 = scalar_select %p184, %s16, 1
        %p186 = scmp.lt.s32.totalorder %s183, 5
        %s187 = scalar_select %p186, %s183, 5
        %s188 = smul.addr %s185, 6
        %s189 = sadd.s32 %s187, %s188
        %s190 = smul.addr %s189, 4
        %s191 = scalar_lea.vmem %s2, %s190
        %s192 = sadd.s32 %s17, 4
      $region28: #{image_transformer_forward.16} parent=15 // pred_fallthru
        _
    $region16: #{image_transformer_forward.16} parent=5 // pred_fallthru
      _
    %p193 = scmp.le.s32.totalorder 1, %s9
    %p194 = scmp.lt.s32.totalorder %s9, 5
    %p195 = pnand %p193, %p194
    %p196 = pneg %p195
    // Predicated region
    $region29: #{image_transformer_forward.16} parent=5 // pred_check
      _
    $region30: #{image_transformer_forward.16} parent=5 // pred_check_branch
      %198 = sbr.rel (%p195) target = $region32
    $region31: #{image_transformer_forward.16} parent=5 // pred_region
      %s199 = ssub.s32 %s9, 1
      %p200 = scmp.lt.s32.totalorder %s18, 1
      %s201 = scalar_select %p200, %s18, 1
      %p202 = scmp.lt.s32.totalorder %s19, 5
      %s203 = scalar_select %p202, %s19, 5
      %s204 = smul.addr %s201, 6
      %s205 = sadd.s32 %s203, %s204
      %s206 = smul.addr %s205, 4
      %s207 = scalar_lea.vmem %s0, %s206
      %p208 = pneg %p49
      %p209 = pneg %p46
      %s210 = sadd.s32 %s19, 2
      %p211 = scmp.lt.s32.totalorder %s18, 1
      %s212 = scalar_select %p211, %s18, 1
      %p213 = scmp.lt.s32.totalorder %s210, 5
      %s214 = scalar_select %p213, %s210, 5
      %s215 = smul.addr %s212, 6
      %s216 = sadd.s32 %s214, %s215
      %s217 = smul.addr %s216, 4
      %s218 = scalar_lea.vmem %s1, %s217
      %p219 = pneg %p79
      %p220 = pneg %p76
      %s221 = sadd.s32 %s19, 4
      %p222 = scmp.lt.s32.totalorder %s18, 1
      %s223 = scalar_select %p222, %s18, 1
      %p224 = scmp.lt.s32.totalorder %s221, 5
      %s225 = scalar_select %p224, %s221, 5
      %s226 = smul.addr %s223, 6
      %s227 = sadd.s32 %s225, %s226
      %s228 = smul.addr %s227, 4
      %s229 = scalar_lea.vmem %s2, %s228
      %p230 = pneg %p109
      %p231 = pneg %p106
      %p232 = pneg %p137
      %p233 = pneg %p134
      %p234 = scmp.lt.s32.totalorder %s18, 1
      %s235 = scalar_select %p234, %s18, 1
      %p236 = scmp.lt.s32.totalorder %s19, 1
      %s237 = scalar_select %p236, %s19, 1
      %s238 = smul.addr %s235, 2
      %s239 = sadd.s32 %s237, %s238
      %s240 = smul.addr %s239, 4
      %s241 = scalar_lea.vmem %s3, %s240
      %p242 = scmp.lt.s32.totalorder %s18, 1
      %s243 = scalar_select %p242, %s18, 1
      %p244 = scmp.lt.s32.totalorder %s19, 5
      %s245 = scalar_select %p244, %s19, 5
      %s246 = smul.addr %s243, 6
      %s247 = sadd.s32 %s245, %s246
      %s248 = smul.addr %s247, 4
      %s249 = scalar_lea.vmem %s0, %s248
      %s250 = sadd.s32 %s19, 2
      %p251 = scmp.lt.s32.totalorder %s18, 1
      %s252 = scalar_select %p251, %s18, 1
      %p253 = scmp.lt.s32.totalorder %s250, 5
      %s254 = scalar_select %p253, %s250, 5
      %s255 = smul.addr %s252, 6
      %s256 = sadd.s32 %s254, %s255
      %s257 = smul.addr %s256, 4
      %s258 = scalar_lea.vmem %s1, %s257
      %s259 = sadd.s32 %s19, 2
      %s260 = sadd.s32 %s19, 4
      %p261 = scmp.lt.s32.totalorder %s18, 1
      %s262 = scalar_select %p261, %s18, 1
      %p263 = scmp.lt.s32.totalorder %s260, 5
      %s264 = scalar_select %p263, %s260, 5
      %s265 = smul.addr %s262, 6
      %s266 = sadd.s32 %s264, %s265
      %s267 = smul.addr %s266, 4
      %s268 = scalar_lea.vmem %s2, %s267
      %s269 = sadd.s32 %s19, 4
      %p270 = scmp.lt.s32.totalorder %s18, 1
      %s271 = scalar_select %p270, %s18, 1
      %p272 = scmp.lt.s32.totalorder %s19, 1
      %s273 = scalar_select %p272, %s19, 1
      %s274 = smul.addr %s271, 2
      %s275 = sadd.s32 %s273, %s274
      %s276 = smul.addr %s275, 4
      %s277 = scalar_lea.vmem %s3, %s276
      %v279 = vld [vmem:[%s249] sm:$0xf]
      %v280 = vunpack.c.l.bf16 %v279
      %v281 = vmul.f32 %v280, 0.088388346
      %v282 = vpack.c.bf16 %v281, %v281
      %v283 = vld [vmem:[%s258] sm:$0xf]
      %v284 = vld [vmem:[%s268] sm:$0xf]
      %285 = vmatprep.subr.bf16.mxu0 0
      %286 = vmatpush1.bf16.xpose.msra.mxu0 0
      %287 = vmatprep.subr.bf16.mxu0 0
      %288 = vmatpush1.bf16.xpose.msra.mxu0 0
      %289 = vmatprep.subr.bf16.mxu0 0
      %290 = vmatpush1.bf16.xpose.msra.mxu0 0
      %291 = vmatprep.subr.bf16.mxu0 0
      %292 = vmatpush1.bf16.xpose.msra.mxu0 0
      %293 = vmatprep.subr.bf16.mxu0 0
      %294 = vmatpush1.bf16.xpose.msra.mxu0 0
      %295 = vmatprep.subr.bf16.mxu0 0
      %296 = vmatpush1.bf16.xpose.msra.mxu0 0
      %297 = vmatprep.subr.bf16.mxu0 0
      %298 = vmatpush1.bf16.xpose.msra.mxu0 0
      %299 = vmatprep.subr.bf16.mxu0 0
      %300 = vmatpush1.bf16.xpose.msra.mxu0 %v283
      %301 = vmatprep.subr.bf16.mxu0 0
      %302 = vmatpush2.bf16.xpose.msra.mxu0 0
      %303 = vmatprep.subr.bf16.mxu0 0
      %304 = vmatpush2.bf16.xpose.msra.mxu0 0
      %305 = vmatprep.subr.bf16.mxu0 0
      %306 = vmatpush2.bf16.xpose.msra.mxu0 0
      %307 = vmatprep.subr.bf16.mxu0 0
      %308 = vmatpush2.bf16.xpose.msra.mxu0 0
      %309 = vmatprep.subr.bf16.mxu0 0
      %310 = vmatpush2.bf16.xpose.msra.mxu0 0
      %311 = vmatprep.subr.bf16.mxu0 0
      %312 = vmatpush2.bf16.xpose.msra.mxu0 0
      %313 = vmatprep.subr.bf16.mxu0 0
      %314 = vmatpush2.bf16.xpose.msra.mxu0 0
      %315 = vmatprep.subr.bf16.mxu0 0
      %316 = vmatpush2.bf16.xpose.msra.mxu0 0
      %317 = vmatprep.mubr.bf16.mxu0 0
      %318 = vmatmul.mubr.bf16.gmra.mxu0 %v282
      %v319 = vpop.f32.mrf.mxu0
      %v320 = vadd.f32 0.0, %v319
      %v321 = vpop.f32.mrf.mxu0
      %v322 = vpop.f32.mrf.mxu0
      %v323 = vpop.f32.mrf.mxu0
      %324 = vdwg.mxu0
      %vm325 = vcmask 64512
      %v326 = vsel %vm325, %v320, -inf
      %327 = vmax.xlane.f32.xlu0 %v326
      %v328 = vpop.xlane.xlu0 %327
      %v329 = vsub.f32 %v320, %v328
      %v330 = vmul.f32 %v329, 1.442695
      %v331 = vpow.pop %v330
      %v332 = vsel %vm325, %v331, 0.0
      %333 = vadd.xlane.f32.xlu0 %v332
      %v334 = vpop.xlane.xlu0 %333
      %v335 = vrcp.pop %v334
      %v336 = vmul.f32 %v331, %v335
      %v337 = vpack.c.bf16 %v336, %v336
      %v339 = vsel %vm325, %v337, 0
      %vm341 = vcmask 1043456
      %v343 = vsel %vm341, %v284, 0
      %345 = vmatprep.subr.bf16.mxu0 0
      %346 = vmatpush1.bf16.msra.mxu0 0
      %347 = vmatprep.subr.bf16.mxu0 0
      %348 = vmatpush1.bf16.msra.mxu0 0
      %349 = vmatprep.subr.bf16.mxu0 0
      %350 = vmatpush1.bf16.msra.mxu0 0
      %351 = vmatprep.subr.bf16.mxu0 0
      %352 = vmatpush1.bf16.msra.mxu0 0
      %353 = vmatprep.subr.bf16.mxu0 0
      %354 = vmatpush1.bf16.msra.mxu0 0
      %355 = vmatprep.subr.bf16.mxu0 0
      %356 = vmatpush1.bf16.msra.mxu0 0
      %357 = vmatprep.subr.bf16.mxu0 0
      %358 = vmatpush1.bf16.msra.mxu0 0
      %359 = vmatprep.subr.bf16.mxu0 0
      %360 = vmatpush1.bf16.msra.mxu0 %v343
      %361 = vmatprep.subr.bf16.mxu0 0
      %362 = vmatpush2.bf16.msra.mxu0 0
      %363 = vmatprep.subr.bf16.mxu0 0
      %364 = vmatpush2.bf16.msra.mxu0 0
      %365 = vmatprep.subr.bf16.mxu0 0
      %366 = vmatpush2.bf16.msra.mxu0 0
      %367 = vmatprep.subr.bf16.mxu0 0
      %368 = vmatpush2.bf16.msra.mxu0 0
      %369 = vmatprep.subr.bf16.mxu0 0
      %370 = vmatpush2.bf16.msra.mxu0 0
      %371 = vmatprep.subr.bf16.mxu0 0
      %372 = vmatpush2.bf16.msra.mxu0 0
      %373 = vmatprep.subr.bf16.mxu0 0
      %374 = vmatpush2.bf16.msra.mxu0 0
      %375 = vmatprep.subr.bf16.mxu0 0
      %376 = vmatpush2.bf16.msra.mxu0 0
      %377 = vmatprep.mubr.bf16.mxu0 0
      %378 = vmatmul.mubr.bf16.gmra.mxu0 %v339
      %v379 = vpop.f32.mrf.mxu0
      %v380 = vadd.f32 0.0, %v379
      %v381 = vpop.f32.mrf.mxu0
      %v382 = vpop.f32.mrf.mxu0
      %v383 = vpop.f32.mrf.mxu0
      %384 = vdwg.mxu0
      %v385 = vpack.c.bf16 %v380, %v380
      %386 = vst [vmem:[%s277] sm:$0xf] %v385
      %p387 = scmp.lt.s32.totalorder %s18, 1
      %s388 = scalar_select %p387, %s18, 1
      %p389 = scmp.lt.s32.totalorder %s19, 1
      %s390 = scalar_select %p389, %s19, 1
      %s391 = smul.addr %s388, 2
      %s392 = sadd.s32 %s390, %s391
      %s393 = smul.addr %s392, 4
      %s394 = scalar_lea.vmem %s3, %s393
      // Predicated region
      $region33: #{image_transformer_forward.16} parent=31 // pred_check
        %p395 = pneg %p134
      $region34: #{image_transformer_forward.16} parent=31 // pred_check_branch
        %397 = sbr.rel (%p395) target = $region36
      $region35: #{image_transformer_forward.16} parent=31 // pred_region
        _
      $region36: #{image_transformer_forward.16} parent=31 // pred_fallthru
        _
    $region32: #{image_transformer_forward.16} parent=5 // pred_fallthru
      _
    %p398 = scmp.le.s32.totalorder 2, %s9
    // Predicated region
    $region37: #{image_transformer_forward.16} parent=5 // pred_check
      %p399 = pneg %p398
    $region38: #{image_transformer_forward.16} parent=5 // pred_check_branch
      %401 = sbr.rel (%p399) target = $region40
    $region39: #{image_transformer_forward.16} parent=5 // pred_region
      %s402 = ssub.s32 %s9, 2
      // Predicated region
      $region41: #{image_transformer_forward.16} parent=39 // pred_check
        %p403 = pneg %p140
      $region42: #{image_transformer_forward.16} parent=39 // pred_check_branch
        %405 = sbr.rel (%p403) target = $region44
      $region43: #{image_transformer_forward.16} parent=39 // pred_region
        %p406 = scmp.lt.s32.totalorder %s20, 1
        %s407 = scalar_select %p406, %s20, 1
        %p408 = scmp.lt.s32.totalorder %s21, 1
        %s409 = scalar_select %p408, %s21, 1
        %s410 = smul.addr %s407, 2
        %s411 = sadd.s32 %s409, %s410
        %s412 = smul.addr %s411, 4
        %s413 = scalar_lea.vmem %s3, %s412
      $region44: #{image_transformer_forward.16} parent=39 // pred_fallthru
        _
    $region40: #{image_transformer_forward.16} parent=5 // pred_fallthru
      _
  $region6: #{image_transformer_forward.16} parent=0 // loop_footer
    %s13 = sadd.s32 1, %s9
  $region7: #{image_transformer_forward.16} parent=0 // loop_footer_branch
    %8 = sbr.rel target = $region3
  $region8: #{image_transformer_forward.16} parent=0 // loop_exit
    _

// kernel: image_transformer_forward.14
$region0: #{image_transformer_forward.14}
  #allocation0 [shape = 'u32[]', space=smem, size = 0x4, offset = 0x4, fixed_abs, tag = 'smem constant byte address 0x4 - core index']
  #allocation1 [shape = 'u32[144,128]{1,0:T(1,128)}', space=vmem, size = 0x12000, scoped, tag = 'internal scratch']
  #allocation2 [shape = 'f32[16,256]{1,0:T(8,128)}', space=vmem, size = 0x4000, scoped, tag = 'scratch operand']
  %s0 = inlined_call_operand.vmem [shape: f32[16,128], index: 0, kind: input, shape index: {}]
  %s1 = inlined_call_operand.hbm [shape: bf16[128,256], index: 1, kind: input, shape index: {}]
  %s2 = inlined_call_operand.vmem [shape: f32[1,256], index: 2, kind: input, shape index: {}]
  %s3 = inlined_call_operand.vmem [shape: bf16[16,256], index: 3, kind: output, shape index: {}]
  %s4 = sld [smem:[#allocation0]]
  $region34: #{image_transformer_forward.14} parent=0
    _
  %s6 = ssub.s32 1, %s4
  %s7 = scalar_select 0, %s6, %s4
  $region1: #{image_transformer_forward.14} parent=0
    #allocation3 [shape = 'u8[65536]{0}', space=vmem, size = 0x10000, scoped, tag = 'input window, operand 1, single buffered']
    #allocation4 [shape = 's32[1]{0}', space=sflag, size = 0x4, scoped, tag = 'scoped memory for image_transformer_forward.14']
    %8 = vsyncpa [#allocation4], 0
    // Predicated region
    $region2: #{image_transformer_forward.14} parent=1 // pred_check
      _
    $region3: #{image_transformer_forward.14} parent=1 // pred_check_branch
      %10 = sbr.rel (0) target = $region5
    $region4: #{image_transformer_forward.14} parent=1 // pred_region
      _
    $region5: #{image_transformer_forward.14} parent=1 // pred_fallthru
      _
    // Predicated region
    $region6: #{image_transformer_forward.14} parent=1 // pred_check
      _
    $region7: #{image_transformer_forward.14} parent=1 // pred_check_branch
      %12 = sbr.rel (0) target = $region9
    $region8: #{image_transformer_forward.14} parent=1 // pred_region
      %s14 = ssub.s32 2048, 2048
      %15 = vsyncadd [#allocation4], %s14
      %s16 = sshll.u32 [#allocation3], 4
      %s17 = int_to_ptr.vmem [resolvable:$true] %s16
      %22 = dma.hbm_to_vmem [thread:$0]  %s1, 2048, %s17, [#allocation4], 128, 128, 8
    $region9: #{image_transformer_forward.14} parent=1 // pred_fallthru
      _
    // Predicated region
    $region10: #{image_transformer_forward.14} parent=1 // pred_check
      _
    $region11: #{image_transformer_forward.14} parent=1 // pred_check_branch
      %24 = sbr.rel (0) target = $region13
    $region12: #{image_transformer_forward.14} parent=1 // pred_region
      _
    $region13: #{image_transformer_forward.14} parent=1 // pred_fallthru
      _
    // Predicated region
    $region14: #{image_transformer_forward.14} parent=1 // pred_check
      _
    $region15: #{image_transformer_forward.14} parent=1 // pred_check_branch
      %26 = sbr.rel (0) target = $region17
    $region16: #{image_transformer_forward.14} parent=1 // pred_region
      %27 = dma.done [#allocation4], 2048
    $region17: #{image_transformer_forward.14} parent=1 // pred_fallthru
      _
    %p29 = scmp.eq.s32.totalorder 0, 0
    // Predicated region
    $region18: #{image_transformer_forward.14} parent=1 // pred_check
      %p30 = pneg %p29
    $region19: #{image_transformer_forward.14} parent=1 // pred_check_branch
      %32 = sbr.rel (%p30) target = $region21
    $region20: #{image_transformer_forward.14} parent=1 // pred_region
      %33 = vst [vmem:[#allocation2] sm:$0xff] 0.0
      %34 = vst [vmem:[#allocation2 + $0x8] sm:$0xff] 0.0
      %35 = vst [vmem:[#allocation2 + $0x10] sm:$0xff] 0.0
      %36 = vst [vmem:[#allocation2 + $0x18] sm:$0xff] 0.0
    $region21: #{image_transformer_forward.14} parent=1 // pred_fallthru
      _
    %v37 = vld [vmem:[%s0] sm:$0xff]
    %v38 = vld [vmem:[%s0 + $0x8] sm:$0xff]
    %v39 = vpack.c.bf16 %v38, %v37
    %v40 = vld [vmem:[#allocation2] sm:$0xff]
    %v41 = vld [vmem:[#allocation2 + $0x8] sm:$0xff]
    %v42 = vld [vmem:[#allocation2 + $0x10] sm:$0xff]
    %v43 = vld [vmem:[#allocation2 + $0x18] sm:$0xff]
    %v44 = vld [vmem:[#allocation3] sm:$0xff]
    %v45 = vld [vmem:[#allocation3 + $0x8] sm:$0xff]
    %v46 = vld [vmem:[#allocation3 + $0x10] sm:$0xff]
    %v47 = vld [vmem:[#allocation3 + $0x18] sm:$0xff]
    %v48 = vld [vmem:[#allocation3 + $0x20] sm:$0xff]
    %v49 = vld [vmem:[#allocation3 + $0x28] sm:$0xff]
    %v50 = vld [vmem:[#allocation3 + $0x30] sm:$0xff]
    %v51 = vld [vmem:[#allocation3 + $0x38] sm:$0xff]
    %v52 = vld [vmem:[#allocation3 + $0x40] sm:$0xff]
    %v53 = vld [vmem:[#allocation3 + $0x48] sm:$0xff]
    %v54 = vld [vmem:[#allocation3 + $0x50] sm:$0xff]
    %v55 = vld [vmem:[#allocation3 + $0x58] sm:$0xff]
    %v56 = vld [vmem:[#allocation3 + $0x60] sm:$0xff]
    %v57 = vld [vmem:[#allocation3 + $0x68] sm:$0xff]
    %v58 = vld [vmem:[#allocation3 + $0x70] sm:$0xff]
    %v59 = vld [vmem:[#allocation3 + $0x78] sm:$0xff]
    %v76 = vunpack.c.l.b16 %v44
    %v77 = vunpack.c.h.b16 %v44
    %v78 = vunpack.c.l.b16 %v45
    %v79 = vunpack.c.h.b16 %v45
    %v80 = vunpack.c.l.b16 %v46
    %v81 = vunpack.c.h.b16 %v46
    %v82 = vunpack.c.l.b16 %v47
    %v83 = vunpack.c.h.b16 %v47
    %v84 = vunpack.c.l.b16 %v48
    %v85 = vunpack.c.h.b16 %v48
    %v86 = vunpack.c.l.b16 %v49
    %v87 = vunpack.c.h.b16 %v49
    %v88 = vunpack.c.l.b16 %v50
    %v89 = vunpack.c.h.b16 %v50
    %v90 = vunpack.c.l.b16 %v51
    %v91 = vunpack.c.h.b16 %v51
    %v92 = vunpack.c.l.b16 %v52
    %v93 = vunpack.c.h.b16 %v52
    %v94 = vunpack.c.l.b16 %v53
    %v95 = vunpack.c.h.b16 %v53
    %v96 = vunpack.c.l.b16 %v54
    %v97 = vunpack.c.h.b16 %v54
    %v98 = vunpack.c.l.b16 %v55
    %v99 = vunpack.c.h.b16 %v55
    %v100 = vunpack.c.l.b16 %v56
    %v101 = vunpack.c.h.b16 %v56
    %v102 = vunpack.c.l.b16 %v57
    %v103 = vunpack.c.h.b16 %v57
    %v104 = vunpack.c.l.b16 %v58
    %v105 = vunpack.c.h.b16 %v58
    %v106 = vunpack.c.l.b16 %v59
    %v107 = vunpack.c.h.b16 %v59
    %v108 = vpack.c.b16 %v78, %v76
    %v109 = vpack.c.b16 %v79, %v77
    %v110 = vpack.c.b16 %v82, %v80
    %v111 = vpack.c.b16 %v83, %v81
    %v112 = vpack.c.b16 %v86, %v84
    %v113 = vpack.c.b16 %v87, %v85
    %v114 = vpack.c.b16 %v90, %v88
    %v115 = vpack.c.b16 %v91, %v89
    %v116 = vpack.c.b16 %v94, %v92
    %v117 = vpack.c.b16 %v95, %v93
    %v118 = vpack.c.b16 %v98, %v96
    %v119 = vpack.c.b16 %v99, %v97
    %v120 = vpack.c.b16 %v102, %v100
    %v121 = vpack.c.b16 %v103, %v101
    %v122 = vpack.c.b16 %v106, %v104
    %v123 = vpack.c.b16 %v107, %v105
    %140 = vmatprep.subr.bf16.mxu0 %v123
    %141 = vmatpush1.bf16.msra.mxu0 %v122
    %142 = vmatprep.subr.bf16.mxu0 %v121
    %143 = vmatpush1.bf16.msra.mxu0 %v120
    %144 = vmatprep.subr.bf16.mxu0 %v119
    %145 = vmatpush1.bf16.msra.mxu0 %v118
    %146 = vmatprep.subr.bf16.mxu0 %v117
    %147 = vmatpush1.bf16.msra.mxu0 %v116
    %148 = vmatprep.subr.bf16.mxu0 %v115
    %149 = vmatpush1.bf16.msra.mxu0 %v114
    %150 = vmatprep.subr.bf16.mxu0 %v113
    %151 = vmatpush1.bf16.msra.mxu0 %v112
    %152 = vmatprep.subr.bf16.mxu0 %v111
    %153 = vmatpush1.bf16.msra.mxu0 %v110
    %154 = vmatprep.subr.bf16.mxu0 %v109
    %155 = vmatpush1.bf16.msra.mxu0 %v108
    %156 = vmatprep.subr.bf16.mxu0 0
    %157 = vmatpush2.bf16.msra.mxu0 0
    %158 = vmatprep.subr.bf16.mxu0 0
    %159 = vmatpush2.bf16.msra.mxu0 0
    %160 = vmatprep.subr.bf16.mxu0 0
    %161 = vmatpush2.bf16.msra.mxu0 0
    %162 = vmatprep.subr.bf16.mxu0 0
    %163 = vmatpush2.bf16.msra.mxu0 0
    %164 = vmatprep.subr.bf16.mxu0 0
    %165 = vmatpush2.bf16.msra.mxu0 0
    %166 = vmatprep.subr.bf16.mxu0 0
    %167 = vmatpush2.bf16.msra.mxu0 0
    %168 = vmatprep.subr.bf16.mxu0 0
    %169 = vmatpush2.bf16.msra.mxu0 0
    %170 = vmatprep.subr.bf16.mxu0 0
    %171 = vmatpush2.bf16.msra.mxu0 0
    %172 = vmatprep.mubr.bf16.mxu0 0
    %173 = vmatmul.mubr.bf16.gmra.mxu0 %v39
    %v174 = vpop.f32.mrf.mxu0
    %v175 = vadd.f32 0.0, %v174
    %v176 = vpop.f32.mrf.mxu0
    %v177 = vadd.f32 0.0, %v176
    %v178 = vpop.f32.mrf.mxu0
    %v179 = vadd.f32 0.0, %v178
    %v180 = vpop.f32.mrf.mxu0
    %v181 = vadd.f32 0.0, %v180
    %182 = vdwg.mxu0
    %v183 = vadd.f32 %v40, %v175
    %v184 = vadd.f32 %v41, %v177
    %v185 = vadd.f32 %v42, %v179
    %v186 = vadd.f32 %v43, %v181
    %187 = vst [vmem:[#allocation2] sm:$0xff] %v183
    %188 = vst [vmem:[#allocation2 + $0x8] sm:$0xff] %v184
    %189 = vst [vmem:[#allocation2 + $0x10] sm:$0xff] %v185
    %190 = vst [vmem:[#allocation2 + $0x18] sm:$0xff] %v186
    // Predicated region
    $region22: #{image_transformer_forward.14} parent=1 // pred_check
      %p191 = pneg %p29
    $region23: #{image_transformer_forward.14} parent=1 // pred_check_branch
      %193 = sbr.rel (%p191) target = $region25
    $region24: #{image_transformer_forward.14} parent=1 // pred_region
      %v194 = vld [vmem:[#allocation2] sm:$0xff]
      %v195 = vld [vmem:[#allocation2 + $0x8] sm:$0xff]
      %v196 = vld [vmem:[#allocation2 + $0x10] sm:$0xff]
      %v197 = vld [vmem:[#allocation2 + $0x18] sm:$0xff]
      %v198 = vld [vmem:[%s2] sm:$0x3]
      %v200 = vlaneseq
      %v201 = vshrl.u32 %v200, 7
      %v202 = vsub.s32 0, %v201
      %v203 = vrot.slane %v198, %v202
      %v204 = vlaneseq
      %v205 = vshrl.u32 %v204, 7
      %v206 = vsub.s32 1, %v205
      %v207 = vrot.slane %v198, %v206
      %v210 = vadd.f32 %v194, %v203
      %v211 = vadd.f32 %v195, %v207
      %v212 = vadd.f32 %v196, %v203
      %v213 = vadd.f32 %v197, %v207
      %v214 = vpack.c.bf16 %v212, %v210
      %v215 = vpack.c.bf16 %v213, %v211
      %v218 = vunpack.c.l.b16 %v214
      %v219 = vunpack.c.l.b16 %v215
      %v220 = vunpack.c.h.b16 %v214
      %v221 = vunpack.c.h.b16 %v215
      %v222 = vpack.c.b16 %v219, %v218
      %v223 = vpack.c.b16 %v221, %v220
      %226 = vst [vmem:[%s3] sm:$0xff] %v222
      %227 = vst [vmem:[%s3 + $0x8] sm:$0xff] %v223
    $region25: #{image_transformer_forward.14} parent=1 // pred_fallthru
      _
    // Predicated region
    $region26: #{image_transformer_forward.14} parent=1 // pred_check
      _
    $region27: #{image_transformer_forward.14} parent=1 // pred_check_branch
      %229 = sbr.rel (0) target = $region29
    $region28: #{image_transformer_forward.14} parent=1 // pred_region
      _
    $region29: #{image_transformer_forward.14} parent=1 // pred_fallthru
      _
    // Predicated region
    $region30: #{image_transformer_forward.14} parent=1 // pred_check
      _
    $region31: #{image_transformer_forward.14} parent=1 // pred_check_branch
      %231 = sbr.rel (0) target = $region33
    $region32: #{image_transformer_forward.14} parent=1 // pred_region
      _
    $region33: #{image_transformer_forward.14} parent=1 // pred_fallthru
      _
    %232 = vsyncpa [#allocation4], 1

// kernel: image_transformer_forward.15
$region0: #{image_transformer_forward.15}
  #allocation0 [shape = 'u32[]', space=smem, size = 0x4, offset = 0x4, fixed_abs, tag = 'smem constant byte address 0x4 - core index']
  #allocation1 [shape = 'u32[144,128]{1,0:T(1,128)}', space=vmem, size = 0x12000, scoped, tag = 'internal scratch']
  #allocation2 [shape = 'f32[16,768]{1,0:T(8,128)}', space=vmem, size = 0xc000, scoped, tag = 'scratch operand']
  %s0 = inlined_call_operand.vmem [shape: bf16[16,256], index: 0, kind: input, shape index: {}]
  %s1 = inlined_call_operand.hbm [shape: bf16[256,768], index: 1, kind: input, shape index: {}]
  %s2 = inlined_call_operand.vmem [shape: f32[1,768], index: 2, kind: input, shape index: {}]
  %s3 = inlined_call_operand.vmem [shape: bf16[16,768], index: 3, kind: output, shape index: {}]
  %s4 = sld [smem:[#allocation0]]
  $region34: #{image_transformer_forward.15} parent=0
    _
  %s6 = ssub.s32 1, %s4
  %s7 = scalar_select 0, %s6, %s4
  $region1: #{image_transformer_forward.15} parent=0
    #allocation3 [shape = 'u8[393216]{0}', space=vmem, size = 0x60000, scoped, tag = 'input window, operand 1, single buffered']
    #allocation4 [shape = 's32[1]{0}', space=sflag, size = 0x4, scoped, tag = 'scoped memory for image_transformer_forward.15']
    %8 = vsyncpa [#allocation4], 0
    // Predicated region
    $region2: #{image_transformer_forward.15} parent=1 // pred_check
      _
    $region3: #{image_transformer_forward.15} parent=1 // pred_check_branch
      %10 = sbr.rel (0) target = $region5
    $region4: #{image_transformer_forward.15} parent=1 // pred_region
      _
    $region5: #{image_transformer_forward.15} parent=1 // pred_fallthru
      _
    // Predicated region
    $region6: #{image_transformer_forward.15} parent=1 // pred_check
      _
    $region7: #{image_transformer_forward.15} parent=1 // pred_check_branch
      %12 = sbr.rel (0) target = $region9
    $region8: #{image_transformer_forward.15} parent=1 // pred_region
      %s14 = ssub.s32 12288, 12288
      %15 = vsyncadd [#allocation4], %s14
      %s16 = sshll.u32 [#allocation3], 4
      %s17 = int_to_ptr.vmem [resolvable:$true] %s16
      %22 = dma.hbm_to_vmem [thread:$0]  %s1, 12288, %s17, [#allocation4], 384, 384, 24
    $region9: #{image_transformer_forward.15} parent=1 // pred_fallthru
      _
    // Predicated region
    $region10: #{image_transformer_forward.15} parent=1 // pred_check
      _
    $region11: #{image_transformer_forward.15} parent=1 // pred_check_branch
      %24 = sbr.rel (0) target = $region13
    $region12: #{image_transformer_forward.15} parent=1 // pred_region
      _
    $region13: #{image_transformer_forward.15} parent=1 // pred_fallthru
      _
    // Predicated region
    $region14: #{image_transformer_forward.15} parent=1 // pred_check
      _
    $region15: #{image_transformer_forward.15} parent=1 // pred_check_branch
      %26 = sbr.rel (0) target = $region17
    $region16: #{image_transformer_forward.15} parent=1 // pred_region
      %27 = dma.done [#allocation4], 12288
    $region17: #{image_transformer_forward.15} parent=1 // pred_fallthru
      _
    %p28 = scmp.eq.s32.totalorder 0, 0
    // Predicated region
    $region18: #{image_transformer_forward.15} parent=1 // pred_check
      %p29 = pneg %p28
    $region19: #{image_transformer_forward.15} parent=1 // pred_check_branch
      %31 = sbr.rel (%p29) target = $region21
    $region20: #{image_transformer_forward.15} parent=1 // pred_region
      %32 = vst [vmem:[#allocation2] sm:$0xff] 0.0
      %33 = vst [vmem:[#allocation2 + $0x8] sm:$0xff] 0.0
      %34 = vst [vmem:[#allocation2 + $0x10] sm:$0xff] 0.0
      %35 = vst [vmem:[#allocation2 + $0x18] sm:$0xff] 0.0
      %36 = vst [vmem:[#allocation2 + $0x20] sm:$0xff] 0.0
      %37 = vst [vmem:[#allocation2 + $0x28] sm:$0xff] 0.0
      %38 = vst [vmem:[#allocation2 + $0x30] sm:$0xff] 0.0
      %39 = vst [vmem:[#allocation2 + $0x38] sm:$0xff] 0.0
      %40 = vst [vmem:[#allocation2 + $0x40] sm:$0xff] 0.0
      %41 = vst [vmem:[#allocation2 + $0x48] sm:$0xff] 0.0
      %42 = vst [vmem:[#allocation2 + $0x50] sm:$0xff] 0.0
      %43 = vst [vmem:[#allocation2 + $0x58] sm:$0xff] 0.0
    $region21: #{image_transformer_forward.15} parent=1 // pred_fallthru
      _
    %v44 = vld [vmem:[%s0] sm:$0xff]
    %v45 = vld [vmem:[%s0 + $0x8] sm:$0xff]
    %v46 = vld [vmem:[#allocation2] sm:$0xff]
    %v47 = vld [vmem:[#allocation2 + $0x8] sm:$0xff]
    %v48 = vld [vmem:[#allocation2 + $0x10] sm:$0xff]
    %v49 = vld [vmem:[#allocation2 + $0x18] sm:$0xff]
    %v50 = vld [vmem:[#allocation2 + $0x20] sm:$0xff]
    %v51 = vld [vmem:[#allocation2 + $0x28] sm:$0xff]
    %v52 = vld [vmem:[#allocation2 + $0x30] sm:$0xff]
    %v53 = vld [vmem:[#allocation2 + $0x38] sm:$0xff]
    %v54 = vld [vmem:[#allocation2 + $0x40] sm:$0xff]
    %v55 = vld [vmem:[#allocation2 + $0x48] sm:$0xff]
    %v56 = vld [vmem:[#allocation2 + $0x50] sm:$0xff]
    %v57 = vld [vmem:[#allocation2 + $0x58] sm:$0xff]
    %v58 = vld [vmem:[#allocation3] sm:$0xff]
    %v59 = vld [vmem:[#allocation3 + $0x8] sm:$0xff]
    %v60 = vld [vmem:[#allocation3 + $0x10] sm:$0xff]
    %v61 = vld [vmem:[#allocation3 + $0x18] sm:$0xff]
    %v62 = vld [vmem:[#allocation3 + $0x20] sm:$0xff]
    %v63 = vld [vmem:[#allocation3 + $0x28] sm:$0xff]
    %v64 = vld [vmem:[#allocation3 + $0x30] sm:$0xff]
    %v65 = vld [vmem:[#allocation3 + $0x38] sm:$0xff]
    %v66 = vld [vmem:[#allocation3 + $0x40] sm:$0xff]
    %v67 = vld [vmem:[#allocation3 + $0x48] sm:$0xff]
    %v68 = vld [vmem:[#allocation3 + $0x50] sm:$0xff]
    %v69 = vld [vmem:[#allocation3 + $0x58] sm:$0xff]
    %v70 = vld [vmem:[#allocation3 + $0x60] sm:$0xff]
    %v71 = vld [vmem:[#allocation3 + $0x68] sm:$0xff]
    %v72 = vld [vmem:[#allocation3 + $0x70] sm:$0xff]
    %v73 = vld [vmem:[#allocation3 + $0x78] sm:$0xff]
    %v74 = vld [vmem:[#allocation3 + $0x80] sm:$0xff]
    %v75 = vld [vmem:[#allocation3 + $0x88] sm:$0xff]
    %v76 = vld [vmem:[#allocation3 + $0x90] sm:$0xff]
    %v77 = vld [vmem:[#allocation3 + $0x98] sm:$0xff]
    %v78 = vld [vmem:[#allocation3 + $0xa0] sm:$0xff]
    %v79 = vld [vmem:[#allocation3 + $0xa8] sm:$0xff]
    %v80 = vld [vmem:[#allocation3 + $0xb0] sm:$0xff]
    %v81 = vld [vmem:[#allocation3 + $0xb8] sm:$0xff]
    %v82 = vld [vmem:[#allocation3 + $0xc0] sm:$0xff]
    %v83 = vld [vmem:[#allocation3 + $0xc8] sm:$0xff]
    %v84 = vld [vmem:[#allocation3 + $0xd0] sm:$0xff]
    %v85 = vld [vmem:[#allocation3 + $0xd8] sm:$0xff]
    %v86 = vld [vmem:[#allocation3 + $0xe0] sm:$0xff]
    %v87 = vld [vmem:[#allocation3 + $0xe8] sm:$0xff]
    %v88 = vld [vmem:[#allocation3 + $0xf0] sm:$0xff]
    %v89 = vld [vmem:[#allocation3 + $0xf8] sm:$0xff]
    %v90 = vld [vmem:[#allocation3 + $0x100] sm:$0xff]
    %v91 = vld [vmem:[#allocation3 + $0x108] sm:$0xff]
    %v92 = vld [vmem:[#allocation3 + $0x110] sm:$0xff]
    %v93 = vld [vmem:[#allocation3 + $0x118] sm:$0xff]
    %v94 = vld [vmem:[#allocation3 + $0x120] sm:$0xff]
    %v95 = vld [vmem:[#allocation3 + $0x128] sm:$0xff]
    %v96 = vld [vmem:[#allocation3 + $0x130] sm:$0xff]
    %v97 = vld [vmem:[#allocation3 + $0x138] sm:$0xff]
    %v98 = vld [vmem:[#allocation3 + $0x140] sm:$0xff]
    %v99 = vld [vmem:[#allocation3 + $0x148] sm:$0xff]
    %v100 = vld [vmem:[#allocation3 + $0x150] sm:$0xff]
    %v101 = vld [vmem:[#allocation3 + $0x158] sm:$0xff]
    %v102 = vld [vmem:[#allocation3 + $0x160] sm:$0xff]
    %v103 = vld [vmem:[#allocation3 + $0x168] sm:$0xff]
    %v104 = vld [vmem:[#allocation3 + $0x170] sm:$0xff]
    %v105 = vld [vmem:[#allocation3 + $0x178] sm:$0xff]
    %v106 = vld [vmem:[#allocation3 + $0x180] sm:$0xff]
    %v107 = vld [vmem:[#allocation3 + $0x188] sm:$0xff]
    %v108 = vld [vmem:[#allocation3 + $0x190] sm:$0xff]
    %v109 = vld [vmem:[#allocation3 + $0x198] sm:$0xff]
    %v110 = vld [vmem:[#allocation3 + $0x1a0] sm:$0xff]
    %v111 = vld [vmem:[#allocation3 + $0x1a8] sm:$0xff]
    %v112 = vld [vmem:[#allocation3 + $0x1b0] sm:$0xff]
    %v113 = vld [vmem:[#allocation3 + $0x1b8] sm:$0xff]
    %v114 = vld [vmem:[#allocation3 + $0x1c0] sm:$0xff]
    %v115 = vld [vmem:[#allocation3 + $0x1c8] sm:$0xff]
    %v116 = vld [vmem:[#allocation3 + $0x1d0] sm:$0xff]
    %v117 = vld [vmem:[#allocation3 + $0x1d8] sm:$0xff]
    %v118 = vld [vmem:[#allocation3 + $0x1e0] sm:$0xff]
    %v119 = vld [vmem:[#allocation3 + $0x1e8] sm:$0xff]
    %v120 = vld [vmem:[#allocation3 + $0x1f0] sm:$0xff]
    %v121 = vld [vmem:[#allocation3 + $0x1f8] sm:$0xff]
    %v122 = vld [vmem:[#allocation3 + $0x200] sm:$0xff]
    %v123 = vld [vmem:[#allocation3 + $0x208] sm:$0xff]
    %v124 = vld [vmem:[#allocation3 + $0x210] sm:$0xff]
    %v125 = vld [vmem:[#allocation3 + $0x218] sm:$0xff]
    %v126 = vld [vmem:[#allocation3 + $0x220] sm:$0xff]
    %v127 = vld [vmem:[#allocation3 + $0x228] sm:$0xff]
    %v128 = vld [vmem:[#allocation3 + $0x230] sm:$0xff]
    %v129 = vld [vmem:[#allocation3 + $0x238] sm:$0xff]
    %v130 = vld [vmem:[#allocation3 + $0x240] sm:$0xff]
    %v131 = vld [vmem:[#allocation3 + $0x248] sm:$0xff]
    %v132 = vld [vmem:[#allocation3 + $0x250] sm:$0xff]
    %v133 = vld [vmem:[#allocation3 + $0x258] sm:$0xff]
    %v134 = vld [vmem:[#allocation3 + $0x260] sm:$0xff]
    %v135 = vld [vmem:[#allocation3 + $0x268] sm:$0xff]
    %v136 = vld [vmem:[#allocation3 + $0x270] sm:$0xff]
    %v137 = vld [vmem:[#allocation3 + $0x278] sm:$0xff]
    %v138 = vld [vmem:[#allocation3 + $0x280] sm:$0xff]
    %v139 = vld [vmem:[#allocation3 + $0x288] sm:$0xff]
    %v140 = vld [vmem:[#allocation3 + $0x290] sm:$0xff]
    %v141 = vld [vmem:[#allocation3 + $0x298] sm:$0xff]
    %v142 = vld [vmem:[#allocation3 + $0x2a0] sm:$0xff]
    %v143 = vld [vmem:[#allocation3 + $0x2a8] sm:$0xff]
    %v144 = vld [vmem:[#allocation3 + $0x2b0] sm:$0xff]
    %v145 = vld [vmem:[#allocation3 + $0x2b8] sm:$0xff]
    %v146 = vld [vmem:[#allocation3 + $0x2c0] sm:$0xff]
    %v147 = vld [vmem:[#allocation3 + $0x2c8] sm:$0xff]
    %v148 = vld [vmem:[#allocation3 + $0x2d0] sm:$0xff]
    %v149 = vld [vmem:[#allocation3 + $0x2d8] sm:$0xff]
    %v150 = vld [vmem:[#allocation3 + $0x2e0] sm:$0xff]
    %v151 = vld [vmem:[#allocation3 + $0x2e8] sm:$0xff]
    %v152 = vld [vmem:[#allocation3 + $0x2f0] sm:$0xff]
    %v153 = vld [vmem:[#allocation3 + $0x2f8] sm:$0xff]
    %v156 = vunpack.c.l.b16 %v44
    %v157 = vunpack.c.h.b16 %v44
    %v158 = vunpack.c.l.b16 %v45
    %v159 = vunpack.c.h.b16 %v45
    %v160 = vpack.c.b16 %v158, %v156
    %v161 = vpack.c.b16 %v159, %v157
    %v260 = vunpack.c.l.b16 %v58
    %v261 = vunpack.c.h.b16 %v58
    %v262 = vunpack.c.l.b16 %v59
    %v263 = vunpack.c.h.b16 %v59
    %v264 = vunpack.c.l.b16 %v60
    %v265 = vunpack.c.h.b16 %v60
    %v266 = vunpack.c.l.b16 %v61
    %v267 = vunpack.c.h.b16 %v61
    %v268 = vunpack.c.l.b16 %v62
    %v269 = vunpack.c.h.b16 %v62
    %v270 = vunpack.c.l.b16 %v63
    %v271 = vunpack.c.h.b16 %v63
    %v272 = vunpack.c.l.b16 %v64
    %v273 = vunpack.c.h.b16 %v64
    %v274 = vunpack.c.l.b16 %v65
    %v275 = vunpack.c.h.b16 %v65
    %v276 = vunpack.c.l.b16 %v66
    %v277 = vunpack.c.h.b16 %v66
    %v278 = vunpack.c.l.b16 %v67
    %v279 = vunpack.c.h.b16 %v67
    %v280 = vunpack.c.l.b16 %v68
    %v281 = vunpack.c.h.b16 %v68
    %v282 = vunpack.c.l.b16 %v69
    %v283 = vunpack.c.h.b16 %v69
    %v284 = vunpack.c.l.b16 %v70
    %v285 = vunpack.c.h.b16 %v70
    %v286 = vunpack.c.l.b16 %v71
    %v287 = vunpack.c.h.b16 %v71
    %v288 = vunpack.c.l.b16 %v72
    %v289 = vunpack.c.h.b16 %v72
    %v290 = vunpack.c.l.b16 %v73
    %v291 = vunpack.c.h.b16 %v73
    %v292 = vunpack.c.l.b16 %v74
    %v293 = vunpack.c.h.b16 %v74
    %v294 = vunpack.c.l.b16 %v75
    %v295 = vunpack.c.h.b16 %v75
    %v296 = vunpack.c.l.b16 %v76
    %v297 = vunpack.c.h.b16 %v76
    %v298 = vunpack.c.l.b16 %v77
    %v299 = vunpack.c.h.b16 %v77
    %v300 = vunpack.c.l.b16 %v78
    %v301 = vunpack.c.h.b16 %v78
    %v302 = vunpack.c.l.b16 %v79
    %v303 = vunpack.c.h.b16 %v79
    %v304 = vunpack.c.l.b16 %v80
    %v305 = vunpack.c.h.b16 %v80
    %v306 = vunpack.c.l.b16 %v81
    %v307 = vunpack.c.h.b16 %v81
    %v308 = vunpack.c.l.b16 %v82
    %v309 = vunpack.c.h.b16 %v82
    %v310 = vunpack.c.l.b16 %v83
    %v311 = vunpack.c.h.b16 %v83
    %v312 = vunpack.c.l.b16 %v84
    %v313 = vunpack.c.h.b16 %v84
    %v314 = vunpack.c.l.b16 %v85
    %v315 = vunpack.c.h.b16 %v85
    %v316 = vunpack.c.l.b16 %v86
    %v317 = vunpack.c.h.b16 %v86
    %v318 = vunpack.c.l.b16 %v87
    %v319 = vunpack.c.h.b16 %v87
    %v320 = vunpack.c.l.b16 %v88
    %v321 = vunpack.c.h.b16 %v88
    %v322 = vunpack.c.l.b16 %v89
    %v323 = vunpack.c.h.b16 %v89
    %v324 = vunpack.c.l.b16 %v90
    %v325 = vunpack.c.h.b16 %v90
    %v326 = vunpack.c.l.b16 %v91
    %v327 = vunpack.c.h.b16 %v91
    %v328 = vunpack.c.l.b16 %v92
    %v329 = vunpack.c.h.b16 %v92
    %v330 = vunpack.c.l.b16 %v93
    %v331 = vunpack.c.h.b16 %v93
    %v332 = vunpack.c.l.b16 %v94
    %v333 = vunpack.c.h.b16 %v94
    %v334 = vunpack.c.l.b16 %v95
    %v335 = vunpack.c.h.b16 %v95
    %v336 = vunpack.c.l.b16 %v96
    %v337 = vunpack.c.h.b16 %v96
    %v338 = vunpack.c.l.b16 %v97
    %v339 = vunpack.c.h.b16 %v97
    %v340 = vunpack.c.l.b16 %v98
    %v341 = vunpack.c.h.b16 %v98
    %v342 = vunpack.c.l.b16 %v99
    %v343 = vunpack.c.h.b16 %v99
    %v344 = vunpack.c.l.b16 %v100
    %v345 = vunpack.c.h.b16 %v100
    %v346 = vunpack.c.l.b16 %v101
    %v347 = vunpack.c.h.b16 %v101
    %v348 = vunpack.c.l.b16 %v102
    %v349 = vunpack.c.h.b16 %v102
    %v350 = vunpack.c.l.b16 %v103
    %v351 = vunpack.c.h.b16 %v103
    %v352 = vunpack.c.l.b16 %v104
    %v353 = vunpack.c.h.b16 %v104
    %v354 = vunpack.c.l.b16 %v105
    %v355 = vunpack.c.h.b16 %v105
    %v356 = vunpack.c.l.b16 %v106
    %v357 = vunpack.c.h.b16 %v106
    %v358 = vunpack.c.l.b16 %v107
    %v359 = vunpack.c.h.b16 %v107
    %v360 = vunpack.c.l.b16 %v108
    %v361 = vunpack.c.h.b16 %v108
    %v362 = vunpack.c.l.b16 %v109
    %v363 = vunpack.c.h.b16 %v109
    %v364 = vunpack.c.l.b16 %v110
    %v365 = vunpack.c.h.b16 %v110
    %v366 = vunpack.c.l.b16 %v111
    %v367 = vunpack.c.h.b16 %v111
    %v368 = vunpack.c.l.b16 %v112
    %v369 = vunpack.c.h.b16 %v112
    %v370 = vunpack.c.l.b16 %v113
    %v371 = vunpack.c.h.b16 %v113
    %v372 = vunpack.c.l.b16 %v114
    %v373 = vunpack.c.h.b16 %v114
    %v374 = vunpack.c.l.b16 %v115
    %v375 = vunpack.c.h.b16 %v115
    %v376 = vunpack.c.l.b16 %v116
    %v377 = vunpack.c.h.b16 %v116
    %v378 = vunpack.c.l.b16 %v117
    %v379 = vunpack.c.h.b16 %v117
    %v380 = vunpack.c.l.b16 %v118
    %v381 = vunpack.c.h.b16 %v118
    %v382 = vunpack.c.l.b16 %v119
    %v383 = vunpack.c.h.b16 %v119
    %v384 = vunpack.c.l.b16 %v120
    %v385 = vunpack.c.h.b16 %v120
    %v386 = vunpack.c.l.b16 %v121
    %v387 = vunpack.c.h.b16 %v121
    %v388 = vunpack.c.l.b16 %v122
    %v389 = vunpack.c.h.b16 %v122
    %v390 = vunpack.c.l.b16 %v123
    %v391 = vunpack.c.h.b16 %v123
    %v392 = vunpack.c.l.b16 %v124
    %v393 = vunpack.c.h.b16 %v124
    %v394 = vunpack.c.l.b16 %v125
    %v395 = vunpack.c.h.b16 %v125
    %v396 = vunpack.c.l.b16 %v126
    %v397 = vunpack.c.h.b16 %v126
    %v398 = vunpack.c.l.b16 %v127
    %v399 = vunpack.c.h.b16 %v127
    %v400 = vunpack.c.l.b16 %v128
    %v401 = vunpack.c.h.b16 %v128
    %v402 = vunpack.c.l.b16 %v129
    %v403 = vunpack.c.h.b16 %v129
    %v404 = vunpack.c.l.b16 %v130
    %v405 = vunpack.c.h.b16 %v130
    %v406 = vunpack.c.l.b16 %v131
    %v407 = vunpack.c.h.b16 %v131
    %v408 = vunpack.c.l.b16 %v132
    %v409 = vunpack.c.h.b16 %v132
    %v410 = vunpack.c.l.b16 %v133
    %v411 = vunpack.c.h.b16 %v133
    %v412 = vunpack.c.l.b16 %v134
    %v413 = vunpack.c.h.b16 %v134
    %v414 = vunpack.c.l.b16 %v135
    %v415 = vunpack.c.h.b16 %v135
    %v416 = vunpack.c.l.b16 %v136
    %v417 = vunpack.c.h.b16 %v136
    %v418 = vunpack.c.l.b16 %v137
    %v419 = vunpack.c.h.b16 %v137
    %v420 = vunpack.c.l.b16 %v138
    %v421 = vunpack.c.h.b16 %v138
    %v422 = vunpack.c.l.b16 %v139
    %v423 = vunpack.c.h.b16 %v139
    %v424 = vunpack.c.l.b16 %v140
    %v425 = vunpack.c.h.b16 %v140
    %v426 = vunpack.c.l.b16 %v141
    %v427 = vunpack.c.h.b16 %v141
    %v428 = vunpack.c.l.b16 %v142
    %v429 = vunpack.c.h.b16 %v142
    %v430 = vunpack.c.l.b16 %v143
    %v431 = vunpack.c.h.b16 %v143
    %v432 = vunpack.c.l.b16 %v144
    %v433 = vunpack.c.h.b16 %v144
    %v434 = vunpack.c.l.b16 %v145
    %v435 = vunpack.c.h.b16 %v145
    %v436 = vunpack.c.l.b16 %v146
    %v437 = vunpack.c.h.b16 %v146
    %v438 = vunpack.c.l.b16 %v147
    %v439 = vunpack.c.h.b16 %v147
    %v440 = vunpack.c.l.b16 %v148
    %v441 = vunpack.c.h.b16 %v148
    %v442 = vunpack.c.l.b16 %v149
    %v443 = vunpack.c.h.b16 %v149
    %v444 = vunpack.c.l.b16 %v150
    %v445 = vunpack.c.h.b16 %v150
    %v446 = vunpack.c.l.b16 %v151
    %v447 = vunpack.c.h.b16 %v151
    %v448 = vunpack.c.l.b16 %v152
    %v449 = vunpack.c.h.b16 %v152
    %v450 = vunpack.c.l.b16 %v153
    %v451 = vunpack.c.h.b16 %v153
    %v452 = vpack.c.b16 %v266, %v260
    %v453 = vpack.c.b16 %v267, %v261
    %v454 = vpack.c.b16 %v268, %v262
    %v455 = vpack.c.b16 %v269, %v263
    %v456 = vpack.c.b16 %v270, %v264
    %v457 = vpack.c.b16 %v271, %v265
    %v458 = vpack.c.b16 %v278, %v272
    %v459 = vpack.c.b16 %v279, %v273
    %v460 = vpack.c.b16 %v280, %v274
    %v461 = vpack.c.b16 %v281, %v275
    %v462 = vpack.c.b16 %v282, %v276
    %v463 = vpack.c.b16 %v283, %v277
    %v464 = vpack.c.b16 %v290, %v284
    %v465 = vpack.c.b16 %v291, %v285
    %v466 = vpack.c.b16 %v292, %v286
    %v467 = vpack.c.b16 %v293, %v287
    %v468 = vpack.c.b16 %v294, %v288
    %v469 = vpack.c.b16 %v295, %v289
    %v470 = vpack.c.b16 %v302, %v296
    %v471 = vpack.c.b16 %v303, %v297
    %v472 = vpack.c.b16 %v304, %v298
    %v473 = vpack.c.b16 %v305, %v299
    %v474 = vpack.c.b16 %v306, %v300
    %v475 = vpack.c.b16 %v307, %v301
    %v476 = vpack.c.b16 %v314, %v308
    %v477 = vpack.c.b16 %v315, %v309
    %v478 = vpack.c.b16 %v316, %v310
    %v479 = vpack.c.b16 %v317, %v311
    %v480 = vpack.c.b16 %v318, %v312
    %v481 = vpack.c.b16 %v319, %v313
    %v482 = vpack.c.b16 %v326, %v320
    %v483 = vpack.c.b16 %v327, %v321
    %v484 = vpack.c.b16 %v328, %v322
    %v485 = vpack.c.b16 %v329, %v323
    %v486 = vpack.c.b16 %v330, %v324
    %v487 = vpack.c.b16 %v331, %v325
    %v488 = vpack.c.b16 %v338, %v332
    %v489 = vpack.c.b16 %v339, %v333
    %v490 = vpack.c.b16 %v340, %v334
    %v491 = vpack.c.b16 %v341, %v335
    %v492 = vpack.c.b16 %v342, %v336
    %v493 = vpack.c.b16 %v343, %v337
    %v494 = vpack.c.b16 %v350, %v344
    %v495 = vpack.c.b16 %v351, %v345
    %v496 = vpack.c.b16 %v352, %v346
    %v497 = vpack.c.b16 %v353, %v347
    %v498 = vpack.c.b16 %v354, %v348
    %v499 = vpack.c.b16 %v355, %v349
    %v500 = vpack.c.b16 %v362, %v356
    %v501 = vpack.c.b16 %v363, %v357
    %v502 = vpack.c.b16 %v364, %v358
    %v503 = vpack.c.b16 %v365, %v359
    %v504 = vpack.c.b16 %v366, %v360
    %v505 = vpack.c.b16 %v367, %v361
    %v506 = vpack.c.b16 %v374, %v368
    %v507 = vpack.c.b16 %v375, %v369
    %v508 = vpack.c.b16 %v376, %v370
    %v509 = vpack.c.b16 %v377, %v371
    %v510 = vpack.c.b16 %v378, %v372
    %v511 = vpack.c.b16 %v379, %v373
    %v512 = vpack.c.b16 %v386, %v380
    %v513 = vpack.c.b16 %v387, %v381
    %v514 = vpack.c.b16 %v388, %v382
    %v515 = vpack.c.b16 %v389, %v383
    %v516 = vpack.c.b16 %v390, %v384
    %v517 = vpack.c.b16 %v391, %v385
    %v518 = vpack.c.b16 %v398, %v392
    %v519 = vpack.c.b16 %v399, %v393
    %v520 = vpack.c.b16 %v400, %v394
    %v521 = vpack.c.b16 %v401, %v395
    %v522 = vpack.c.b16 %v402, %v396
    %v523 = vpack.c.b16 %v403, %v397
    %v524 = vpack.c.b16 %v410, %v404
    %v525 = vpack.c.b16 %v411, %v405
    %v526 = vpack.c.b16 %v412, %v406
    %v527 = vpack.c.b16 %v413, %v407
    %v528 = vpack.c.b16 %v414, %v408
    %v529 = vpack.c.b16 %v415, %v409
    %v530 = vpack.c.b16 %v422, %v416
    %v531 = vpack.c.b16 %v423, %v417
    %v532 = vpack.c.b16 %v424, %v418
    %v533 = vpack.c.b16 %v425, %v419
    %v534 = vpack.c.b16 %v426, %v420
    %v535 = vpack.c.b16 %v427, %v421
    %v536 = vpack.c.b16 %v434, %v428
    %v537 = vpack.c.b16 %v435, %v429
    %v538 = vpack.c.b16 %v436, %v430
    %v539 = vpack.c.b16 %v437, %v431
    %v540 = vpack.c.b16 %v438, %v432
    %v541 = vpack.c.b16 %v439, %v433
    %v542 = vpack.c.b16 %v446, %v440
    %v543 = vpack.c.b16 %v447, %v441
    %v544 = vpack.c.b16 %v448, %v442
    %v545 = vpack.c.b16 %v449, %v443
    %v546 = vpack.c.b16 %v450, %v444
    %v547 = vpack.c.b16 %v451, %v445
    %644 = vmatprep.subr.bf16.mxu0 %v495
    %645 = vmatpush1.bf16.msra.mxu0 %v494
    %646 = vmatprep.subr.bf16.mxu0 %v489
    %647 = vmatpush1.bf16.msra.mxu0 %v488
    %648 = vmatprep.subr.bf16.mxu0 %v483
    %649 = vmatpush1.bf16.msra.mxu0 %v482
    %650 = vmatprep.subr.bf16.mxu0 %v477
    %651 = vmatpush1.bf16.msra.mxu0 %v476
    %652 = vmatprep.subr.bf16.mxu0 %v471
    %653 = vmatpush1.bf16.msra.mxu0 %v470
    %654 = vmatprep.subr.bf16.mxu0 %v465
    %655 = vmatpush1.bf16.msra.mxu0 %v464
    %656 = vmatprep.subr.bf16.mxu0 %v459
    %657 = vmatpush1.bf16.msra.mxu0 %v458
    %658 = vmatprep.subr.bf16.mxu0 %v453
    %659 = vmatpush1.bf16.msra.mxu0 %v452
    %660 = vmatprep.subr.bf16.mxu0 %v543
    %661 = vmatpush2.bf16.msra.mxu0 %v542
    %662 = vmatprep.subr.bf16.mxu0 %v537
    %663 = vmatpush2.bf16.msra.mxu0 %v536
    %664 = vmatprep.subr.bf16.mxu0 %v531
    %665 = vmatpush2.bf16.msra.mxu0 %v530
    %666 = vmatprep.subr.bf16.mxu0 %v525
    %667 = vmatpush2.bf16.msra.mxu0 %v524
    %668 = vmatprep.subr.bf16.mxu0 %v519
    %669 = vmatpush2.bf16.msra.mxu0 %v518
    %670 = vmatprep.subr.bf16.mxu0 %v513
    %671 = vmatpush2.bf16.msra.mxu0 %v512
    %672 = vmatprep.subr.bf16.mxu0 %v507
    %673 = vmatpush2.bf16.msra.mxu0 %v506
    %674 = vmatprep.subr.bf16.mxu0 %v501
    %675 = vmatpush2.bf16.msra.mxu0 %v500
    %676 = vmatprep.mubr.bf16.mxu0 %v161
    %677 = vmatmul.mubr.bf16.gmra.mxu0 %v160
    %v678 = vpop.f32.mrf.mxu0
    %v679 = vadd.f32 0.0, %v678
    %v680 = vpop.f32.mrf.mxu0
    %v681 = vadd.f32 0.0, %v680
    %v682 = vpop.f32.mrf.mxu0
    %v683 = vadd.f32 0.0, %v682
    %v684 = vpop.f32.mrf.mxu0
    %v685 = vadd.f32 0.0, %v684
    %686 = vdwg.mxu0
    %687 = vmatprep.subr.bf16.mxu0 %v497
    %688 = vmatpush1.bf16.msra.mxu0 %v496
    %689 = vmatprep.subr.bf16.mxu0 %v491
    %690 = vmatpush1.bf16.msra.mxu0 %v490
    %691 = vmatprep.subr.bf16.mxu0 %v485
    %692 = vmatpush1.bf16.msra.mxu0 %v484
    %693 = vmatprep.subr.bf16.mxu0 %v479
    %694 = vmatpush1.bf16.msra.mxu0 %v478
    %695 = vmatprep.subr.bf16.mxu0 %v473
    %696 = vmatpush1.bf16.msra.mxu0 %v472
    %697 = vmatprep.subr.bf16.mxu0 %v467
    %698 = vmatpush1.bf16.msra.mxu0 %v466
    %699 = vmatprep.subr.bf16.mxu0 %v461
    %700 = vmatpush1.bf16.msra.mxu0 %v460
    %701 = vmatprep.subr.bf16.mxu0 %v455
    %702 = vmatpush1.bf16.msra.mxu0 %v454
    %703 = vmatprep.subr.bf16.mxu0 %v545
    %704 = vmatpush2.bf16.msra.mxu0 %v544
    %705 = vmatprep.subr.bf16.mxu0 %v539
    %706 = vmatpush2.bf16.msra.mxu0 %v538
    %707 = vmatprep.subr.bf16.mxu0 %v533
    %708 = vmatpush2.bf16.msra.mxu0 %v532
    %709 = vmatprep.subr.bf16.mxu0 %v527
    %710 = vmatpush2.bf16.msra.mxu0 %v526
    %711 = vmatprep.subr.bf16.mxu0 %v521
    %712 = vmatpush2.bf16.msra.mxu0 %v520
    %713 = vmatprep.subr.bf16.mxu0 %v515
    %714 = vmatpush2.bf16.msra.mxu0 %v514
    %715 = vmatprep.subr.bf16.mxu0 %v509
    %716 = vmatpush2.bf16.msra.mxu0 %v508
    %717 = vmatprep.subr.bf16.mxu0 %v503
    %718 = vmatpush2.bf16.msra.mxu0 %v502
    %719 = vmatprep.mubr.bf16.mxu0 %v161
    %720 = vmatmul.mubr.bf16.gmra.mxu0 %v160
    %v721 = vpop.f32.mrf.mxu0
    %v722 = vadd.f32 0.0, %v721
    %v723 = vpop.f32.mrf.mxu0
    %v724 = vadd.f32 0.0, %v723
    %v725 = vpop.f32.mrf.mxu0
    %v726 = vadd.f32 0.0, %v725
    %v727 = vpop.f32.mrf.mxu0
    %v728 = vadd.f32 0.0, %v727
    %729 = vdwg.mxu0
    %730 = vmatprep.subr.bf16.mxu0 %v499
    %731 = vmatpush1.bf16.msra.mxu0 %v498
    %732 = vmatprep.subr.bf16.mxu0 %v493
    %733 = vmatpush1.bf16.msra.mxu0 %v492
    %734 = vmatprep.subr.bf16.mxu0 %v487
    %735 = vmatpush1.bf16.msra.mxu0 %v486
    %736 = vmatprep.subr.bf16.mxu0 %v481
    %737 = vmatpush1.bf16.msra.mxu0 %v480
    %738 = vmatprep.subr.bf16.mxu0 %v475
    %739 = vmatpush1.bf16.msra.mxu0 %v474
    %740 = vmatprep.subr.bf16.mxu0 %v469
    %741 = vmatpush1.bf16.msra.mxu0 %v468
    %742 = vmatprep.subr.bf16.mxu0 %v463
    %743 = vmatpush1.bf16.msra.mxu0 %v462
    %744 = vmatprep.subr.bf16.mxu0 %v457
    %745 = vmatpush1.bf16.msra.mxu0 %v456
    %746 = vmatprep.subr.bf16.mxu0 %v547
    %747 = vmatpush2.bf16.msra.mxu0 %v546
    %748 = vmatprep.subr.bf16.mxu0 %v541
    %749 = vmatpush2.bf16.msra.mxu0 %v540
    %750 = vmatprep.subr.bf16.mxu0 %v535
    %751 = vmatpush2.bf16.msra.mxu0 %v534
    %752 = vmatprep.subr.bf16.mxu0 %v529
    %753 = vmatpush2.bf16.msra.mxu0 %v528
    %754 = vmatprep.subr.bf16.mxu0 %v523
    %755 = vmatpush2.bf16.msra.mxu0 %v522
    %756 = vmatprep.subr.bf16.mxu0 %v517
    %757 = vmatpush2.bf16.msra.mxu0 %v516
    %758 = vmatprep.subr.bf16.mxu0 %v511
    %759 = vmatpush2.bf16.msra.mxu0 %v510
    %760 = vmatprep.subr.bf16.mxu0 %v505
    %761 = vmatpush2.bf16.msra.mxu0 %v504
    %762 = vmatprep.mubr.bf16.mxu0 %v161
    %763 = vmatmul.mubr.bf16.gmra.mxu0 %v160
    %v764 = vpop.f32.mrf.mxu0
    %v765 = vadd.f32 0.0, %v764
    %v766 = vpop.f32.mrf.mxu0
    %v767 = vadd.f32 0.0, %v766
    %v768 = vpop.f32.mrf.mxu0
    %v769 = vadd.f32 0.0, %v768
    %v770 = vpop.f32.mrf.mxu0
    %v771 = vadd.f32 0.0, %v770
    %772 = vdwg.mxu0
    %v773 = vadd.f32 %v46, %v679
    %v774 = vadd.f32 %v47, %v681
    %v775 = vadd.f32 %v48, %v722
    %v776 = vadd.f32 %v49, %v724
    %v777 = vadd.f32 %v50, %v765
    %v778 = vadd.f32 %v51, %v767
    %v779 = vadd.f32 %v52, %v683
    %v780 = vadd.f32 %v53, %v685
    %v781 = vadd.f32 %v54, %v726
    %v782 = vadd.f32 %v55, %v728
    %v783 = vadd.f32 %v56, %v769
    %v784 = vadd.f32 %v57, %v771
    %785 = vst [vmem:[#allocation2] sm:$0xff] %v773
    %786 = vst [vmem:[#allocation2 + $0x8] sm:$0xff] %v774
    %787 = vst [vmem:[#allocation2 + $0x10] sm:$0xff] %v775
    %788 = vst [vmem:[#allocation2 + $0x18] sm:$0xff] %v776
    %789 = vst [vmem:[#allocation2 + $0x20] sm:$0xff] %v777
    %790 = vst [vmem:[#allocation2 + $0x28] sm:$0xff] %v778
    %791 = vst [vmem:[#allocation2 + $0x30] sm:$0xff] %v779
    %792 = vst [vmem:[#allocation2 + $0x38] sm:$0xff] %v780
    %793 = vst [vmem:[#allocation2 + $0x40] sm:$0xff] %v781
    %794 = vst [vmem:[#allocation2 + $0x48] sm:$0xff] %v782
    %795 = vst [vmem:[#allocation2 + $0x50] sm:$0xff] %v783
    %796 = vst [vmem:[#allocation2 + $0x58] sm:$0xff] %v784
    // Predicated region
    $region22: #{image_transformer_forward.15} parent=1 // pred_check
      %p797 = pneg %p28
    $region23: #{image_transformer_forward.15} parent=1 // pred_check_branch
      %799 = sbr.rel (%p797) target = $region25
    $region24: #{image_transformer_forward.15} parent=1 // pred_region
      %v800 = vld [vmem:[#allocation2] sm:$0xff]
      %v801 = vld [vmem:[#allocation2 + $0x8] sm:$0xff]
      %v802 = vld [vmem:[#allocation2 + $0x10] sm:$0xff]
      %v803 = vld [vmem:[#allocation2 + $0x18] sm:$0xff]
      %v804 = vld [vmem:[#allocation2 + $0x20] sm:$0xff]
      %v805 = vld [vmem:[#allocation2 + $0x28] sm:$0xff]
      %v806 = vld [vmem:[#allocation2 + $0x30] sm:$0xff]
      %v807 = vld [vmem:[#allocation2 + $0x38] sm:$0xff]
      %v808 = vld [vmem:[#allocation2 + $0x40] sm:$0xff]
      %v809 = vld [vmem:[#allocation2 + $0x48] sm:$0xff]
      %v810 = vld [vmem:[#allocation2 + $0x50] sm:$0xff]
      %v811 = vld [vmem:[#allocation2 + $0x58] sm:$0xff]
      %v812 = vld [vmem:[%s2] sm:$0x3f]
      %v814 = vlaneseq
      %v815 = vshrl.u32 %v814, 7
      %v816 = vsub.s32 0, %v815
      %v817 = vrot.slane %v812, %v816
      %v818 = vlaneseq
      %v819 = vshrl.u32 %v818, 7
      %v820 = vsub.s32 1, %v819
      %v821 = vrot.slane %v812, %v820
      %v822 = vlaneseq
      %v823 = vshrl.u32 %v822, 7
      %v824 = vsub.s32 2, %v823
      %v825 = vrot.slane %v812, %v824
      %v826 = vlaneseq
      %v827 = vshrl.u32 %v826, 7
      %v828 = vsub.s32 3, %v827
      %v829 = vrot.slane %v812, %v828
      %v830 = vlaneseq
      %v831 = vshrl.u32 %v830, 7
      %v832 = vsub.s32 4, %v831
      %v833 = vrot.slane %v812, %v832
      %v834 = vlaneseq
      %v835 = vshrl.u32 %v834, 7
      %v836 = vsub.s32 5, %v835
      %v837 = vrot.slane %v812, %v836
      %v844 = vadd.f32 %v800, %v817
      %v845 = vadd.f32 %v801, %v821
      %v846 = vadd.f32 %v802, %v825
      %v847 = vadd.f32 %v803, %v829
      %v848 = vadd.f32 %v804, %v833
      %v849 = vadd.f32 %v805, %v837
      %v850 = vadd.f32 %v806, %v817
      %v851 = vadd.f32 %v807, %v821
      %v852 = vadd.f32 %v808, %v825
      %v853 = vadd.f32 %v809, %v829
      %v854 = vadd.f32 %v810, %v833
      %v855 = vadd.f32 %v811, %v837
      %v856 = vpack.c.bf16 %v850, %v844
      %v857 = vpack.c.bf16 %v851, %v845
      %v858 = vpack.c.bf16 %v852, %v846
      %v859 = vpack.c.bf16 %v853, %v847
      %v860 = vpack.c.bf16 %v854, %v848
      %v861 = vpack.c.bf16 %v855, %v849
      %v868 = vunpack.c.l.b16 %v856
      %v869 = vunpack.c.l.b16 %v857
      %v870 = vunpack.c.l.b16 %v858
      %v871 = vunpack.c.l.b16 %v859
      %v872 = vunpack.c.l.b16 %v860
      %v873 = vunpack.c.l.b16 %v861
      %v874 = vunpack.c.h.b16 %v856
      %v875 = vunpack.c.h.b16 %v857
      %v876 = vunpack.c.h.b16 %v858
      %v877 = vunpack.c.h.b16 %v859
      %v878 = vunpack.c.h.b16 %v860
      %v879 = vunpack.c.h.b16 %v861
      %v880 = vpack.c.b16 %v869, %v868
      %v881 = vpack.c.b16 %v871, %v870
      %v882 = vpack.c.b16 %v873, %v872
      %v883 = vpack.c.b16 %v875, %v874
      %v884 = vpack.c.b16 %v877, %v876
      %v885 = vpack.c.b16 %v879, %v878
      %892 = vst [vmem:[%s3] sm:$0xff] %v880
      %893 = vst [vmem:[%s3 + $0x8] sm:$0xff] %v881
      %894 = vst [vmem:[%s3 + $0x10] sm:$0xff] %v882
      %895 = vst [vmem:[%s3 + $0x18] sm:$0xff] %v883
      %896 = vst [vmem:[%s3 + $0x20] sm:$0xff] %v884
      %897 = vst [vmem:[%s3 + $0x28] sm:$0xff] %v885
    $region25: #{image_transformer_forward.15} parent=1 // pred_fallthru
      _
    // Predicated region
    $region26: #{image_transformer_forward.15} parent=1 // pred_check
      _
    $region27: #{image_transformer_forward.15} parent=1 // pred_check_branch
      %899 = sbr.rel (0) target = $region29
    $region28: #{image_transformer_forward.15} parent=1 // pred_region
      _
    $region29: #{image_transformer_forward.15} parent=1 // pred_fallthru
      _
    // Predicated region
    $region30: #{image_transformer_forward.15} parent=1 // pred_check
      _
    $region31: #{image_transformer_forward.15} parent=1 // pred_check_branch
      %901 = sbr.rel (0) target = $region33
    $region32: #{image_transformer_forward.15} parent=1 // pred_region
      _
    $region33: #{image_transformer_forward.15} parent=1 // pred_fallthru
      _
    %902 = vsyncpa [#allocation4], 1

// kernel: image_transformer_forward.17
$region0: #{image_transformer_forward.17}
  #allocation0 [shape = 'u32[]', space=smem, size = 0x4, offset = 0x4, fixed_abs, tag = 'smem constant byte address 0x4 - core index']
  #allocation1 [shape = 'u32[144,128]{1,0:T(1,128)}', space=vmem, size = 0x12000, scoped, tag = 'internal scratch']
  #allocation2 [shape = 'f32[16,256]{1,0:T(8,128)}', space=vmem, size = 0x4000, scoped, tag = 'scratch operand']
  %s0 = inlined_call_operand.vmem [shape: bf16[16,256], index: 0, kind: input, shape index: {}]
  %s1 = inlined_call_operand.vmem [shape: bf16[256,256], index: 1, kind: input, shape index: {}]
  %s2 = inlined_call_operand.vmem [shape: f32[1,256], index: 2, kind: input, shape index: {}]
  %s3 = inlined_call_operand.vmem [shape: bf16[16,256], index: 3, kind: input, shape index: {}]
  %s4 = inlined_call_operand.vmem [shape: f32[1,256], index: 4, kind: input, shape index: {}]
  %s5 = inlined_call_operand.vmem [shape: f32[1,256], index: 5, kind: input, shape index: {}]
  %s6 = inlined_call_operand.vmem [shape: bf16[16,256], index: 6, kind: output, shape index: {}]
  %s7 = sld [smem:[#allocation0]]
  $region42: #{image_transformer_forward.17} parent=0
    _
  %s9 = ssub.s32 1, %s7
  %s10 = scalar_select 0, %s9, %s7
  // Predicated region
  $region2: #{image_transformer_forward.17} parent=0 // pred_check
    _
  $region3: #{image_transformer_forward.17} parent=0 // pred_check_branch
    %12 = sbr.rel (0) target = $region5
  $region4: #{image_transformer_forward.17} parent=0 // pred_region
    _
  $region5: #{image_transformer_forward.17} parent=0 // pred_fallthru
    _
  // Predicated region
  $region6: #{image_transformer_forward.17} parent=0 // pred_check
    _
  $region7: #{image_transformer_forward.17} parent=0 // pred_check_branch
    %14 = sbr.rel (0) target = $region9
  $region8: #{image_transformer_forward.17} parent=0 // pred_region
    _
  $region9: #{image_transformer_forward.17} parent=0 // pred_fallthru
    _
  // Predicated region
  $region10: #{image_transformer_forward.17} parent=0 // pred_check
    _
  $region11: #{image_transformer_forward.17} parent=0 // pred_check_branch
    %16 = sbr.rel (0) target = $region13
  $region12: #{image_transformer_forward.17} parent=0 // pred_region
    _
  $region13: #{image_transformer_forward.17} parent=0 // pred_fallthru
    _
  // Predicated region
  $region14: #{image_transformer_forward.17} parent=0 // pred_check
    _
  $region15: #{image_transformer_forward.17} parent=0 // pred_check_branch
    %18 = sbr.rel (0) target = $region17
  $region16: #{image_transformer_forward.17} parent=0 // pred_region
    _
  $region17: #{image_transformer_forward.17} parent=0 // pred_fallthru
    _
  // Predicated region
  $region18: #{image_transformer_forward.17} parent=0 // pred_check
    _
  $region19: #{image_transformer_forward.17} parent=0 // pred_check_branch
    %20 = sbr.rel (0) target = $region21
  $region20: #{image_transformer_forward.17} parent=0 // pred_region
    _
  $region21: #{image_transformer_forward.17} parent=0 // pred_fallthru
    _
  // Predicated region
  $region22: #{image_transformer_forward.17} parent=0 // pred_check
    _
  $region23: #{image_transformer_forward.17} parent=0 // pred_check_branch
    %22 = sbr.rel (0) target = $region25
  $region24: #{image_transformer_forward.17} parent=0 // pred_region
    _
  $region25: #{image_transformer_forward.17} parent=0 // pred_fallthru
    _
  %p23 = scmp.eq.s32.totalorder 0, 0
  // Predicated region
  $region26: #{image_transformer_forward.17} parent=0 // pred_check
    %p24 = pneg %p23
  $region27: #{image_transformer_forward.17} parent=0 // pred_check_branch
    %26 = sbr.rel (%p24) target = $region29
  $region28: #{image_transformer_forward.17} parent=0 // pred_region
    %27 = vst [vmem:[#allocation2] sm:$0xff] 0.0
    %28 = vst [vmem:[#allocation2 + $0x8] sm:$0xff] 0.0
    %29 = vst [vmem:[#allocation2 + $0x10] sm:$0xff] 0.0
    %30 = vst [vmem:[#allocation2 + $0x18] sm:$0xff] 0.0
  $region29: #{image_transformer_forward.17} parent=0 // pred_fallthru
    _
  %v31 = vld [vmem:[#allocation2] sm:$0xff]
  %v32 = vld [vmem:[#allocation2 + $0x8] sm:$0xff]
  %v33 = vld [vmem:[#allocation2 + $0x10] sm:$0xff]
  %v34 = vld [vmem:[#allocation2 + $0x18] sm:$0xff]
  %v35 = vld [vmem:[%s0] sm:$0xff]
  %v36 = vld [vmem:[%s0 + $0x8] sm:$0xff]
  %v37 = vld [vmem:[%s1] sm:$0xff]
  %v38 = vld [vmem:[%s1 + $0x8] sm:$0xff]
  %v39 = vld [vmem:[%s1 + $0x10] sm:$0xff]
  %v40 = vld [vmem:[%s1 + $0x18] sm:$0xff]
  %v41 = vld [vmem:[%s1 + $0x20] sm:$0xff]
  %v42 = vld [vmem:[%s1 + $0x28] sm:$0xff]
  %v43 = vld [vmem:[%s1 + $0x30] sm:$0xff]
  %v44 = vld [vmem:[%s1 + $0x38] sm:$0xff]
  %v45 = vld [vmem:[%s1 + $0x40] sm:$0xff]
  %v46 = vld [vmem:[%s1 + $0x48] sm:$0xff]
  %v47 = vld [vmem:[%s1 + $0x50] sm:$0xff]
  %v48 = vld [vmem:[%s1 + $0x58] sm:$0xff]
  %v49 = vld [vmem:[%s1 + $0x60] sm:$0xff]
  %v50 = vld [vmem:[%s1 + $0x68] sm:$0xff]
  %v51 = vld [vmem:[%s1 + $0x70] sm:$0xff]
  %v52 = vld [vmem:[%s1 + $0x78] sm:$0xff]
  %v53 = vld [vmem:[%s1 + $0x80] sm:$0xff]
  %v54 = vld [vmem:[%s1 + $0x88] sm:$0xff]
  %v55 = vld [vmem:[%s1 + $0x90] sm:$0xff]
  %v56 = vld [vmem:[%s1 + $0x98] sm:$0xff]
  %v57 = vld [vmem:[%s1 + $0xa0] sm:$0xff]
  %v58 = vld [vmem:[%s1 + $0xa8] sm:$0xff]
  %v59 = vld [vmem:[%s1 + $0xb0] sm:$0xff]
  %v60 = vld [vmem:[%s1 + $0xb8] sm:$0xff]
  %v61 = vld [vmem:[%s1 + $0xc0] sm:$0xff]
  %v62 = vld [vmem:[%s1 + $0xc8] sm:$0xff]
  %v63 = vld [vmem:[%s1 + $0xd0] sm:$0xff]
  %v64 = vld [vmem:[%s1 + $0xd8] sm:$0xff]
  %v65 = vld [vmem:[%s1 + $0xe0] sm:$0xff]
  %v66 = vld [vmem:[%s1 + $0xe8] sm:$0xff]
  %v67 = vld [vmem:[%s1 + $0xf0] sm:$0xff]
  %v68 = vld [vmem:[%s1 + $0xf8] sm:$0xff]
  %v71 = vunpack.c.l.b16 %v35
  %v72 = vunpack.c.h.b16 %v35
  %v73 = vunpack.c.l.b16 %v36
  %v74 = vunpack.c.h.b16 %v36
  %v75 = vpack.c.b16 %v73, %v71
  %v76 = vpack.c.b16 %v74, %v72
  %v111 = vunpack.c.l.b16 %v37
  %v112 = vunpack.c.h.b16 %v37
  %v113 = vunpack.c.l.b16 %v38
  %v114 = vunpack.c.h.b16 %v38
  %v115 = vunpack.c.l.b16 %v39
  %v116 = vunpack.c.h.b16 %v39
  %v117 = vunpack.c.l.b16 %v40
  %v118 = vunpack.c.h.b16 %v40
  %v119 = vunpack.c.l.b16 %v41
  %v120 = vunpack.c.h.b16 %v41
  %v121 = vunpack.c.l.b16 %v42
  %v122 = vunpack.c.h.b16 %v42
  %v123 = vunpack.c.l.b16 %v43
  %v124 = vunpack.c.h.b16 %v43
  %v125 = vunpack.c.l.b16 %v44
  %v126 = vunpack.c.h.b16 %v44
  %v127 = vunpack.c.l.b16 %v45
  %v128 = vunpack.c.h.b16 %v45
  %v129 = vunpack.c.l.b16 %v46
  %v130 = vunpack.c.h.b16 %v46
  %v131 = vunpack.c.l.b16 %v47
  %v132 = vunpack.c.h.b16 %v47
  %v133 = vunpack.c.l.b16 %v48
  %v134 = vunpack.c.h.b16 %v48
  %v135 = vunpack.c.l.b16 %v49
  %v136 = vunpack.c.h.b16 %v49
  %v137 = vunpack.c.l.b16 %v50
  %v138 = vunpack.c.h.b16 %v50
  %v139 = vunpack.c.l.b16 %v51
  %v140 = vunpack.c.h.b16 %v51
  %v141 = vunpack.c.l.b16 %v52
  %v142 = vunpack.c.h.b16 %v52
  %v143 = vunpack.c.l.b16 %v53
  %v144 = vunpack.c.h.b16 %v53
  %v145 = vunpack.c.l.b16 %v54
  %v146 = vunpack.c.h.b16 %v54
  %v147 = vunpack.c.l.b16 %v55
  %v148 = vunpack.c.h.b16 %v55
  %v149 = vunpack.c.l.b16 %v56
  %v150 = vunpack.c.h.b16 %v56
  %v151 = vunpack.c.l.b16 %v57
  %v152 = vunpack.c.h.b16 %v57
  %v153 = vunpack.c.l.b16 %v58
  %v154 = vunpack.c.h.b16 %v58
  %v155 = vunpack.c.l.b16 %v59
  %v156 = vunpack.c.h.b16 %v59
  %v157 = vunpack.c.l.b16 %v60
  %v158 = vunpack.c.h.b16 %v60
  %v159 = vunpack.c.l.b16 %v61
  %v160 = vunpack.c.h.b16 %v61
  %v161 = vunpack.c.l.b16 %v62
  %v162 = vunpack.c.h.b16 %v62
  %v163 = vunpack.c.l.b16 %v63
  %v164 = vunpack.c.h.b16 %v63
  %v165 = vunpack.c.l.b16 %v64
  %v166 = vunpack.c.h.b16 %v64
  %v167 = vunpack.c.l.b16 %v65
  %v168 = vunpack.c.h.b16 %v65
  %v169 = vunpack.c.l.b16 %v66
  %v170 = vunpack.c.h.b16 %v66
  %v171 = vunpack.c.l.b16 %v67
  %v172 = vunpack.c.h.b16 %v67
  %v173 = vunpack.c.l.b16 %v68
  %v174 = vunpack.c.h.b16 %v68
  %v175 = vpack.c.b16 %v113, %v111
  %v176 = vpack.c.b16 %v114, %v112
  %v177 = vpack.c.b16 %v117, %v115
  %v178 = vpack.c.b16 %v118, %v116
  %v179 = vpack.c.b16 %v121, %v119
  %v180 = vpack.c.b16 %v122, %v120
  %v181 = vpack.c.b16 %v125, %v123
  %v182 = vpack.c.b16 %v126, %v124
  %v183 = vpack.c.b16 %v129, %v127
  %v184 = vpack.c.b16 %v130, %v128
  %v185 = vpack.c.b16 %v133, %v131
  %v186 = vpack.c.b16 %v134, %v132
  %v187 = vpack.c.b16 %v137, %v135
  %v188 = vpack.c.b16 %v138, %v136
  %v189 = vpack.c.b16 %v141, %v139
  %v190 = vpack.c.b16 %v142, %v140
  %v191 = vpack.c.b16 %v145, %v143
  %v192 = vpack.c.b16 %v146, %v144
  %v193 = vpack.c.b16 %v149, %v147
  %v194 = vpack.c.b16 %v150, %v148
  %v195 = vpack.c.b16 %v153, %v151
  %v196 = vpack.c.b16 %v154, %v152
  %v197 = vpack.c.b16 %v157, %v155
  %v198 = vpack.c.b16 %v158, %v156
  %v199 = vpack.c.b16 %v161, %v159
  %v200 = vpack.c.b16 %v162, %v160
  %v201 = vpack.c.b16 %v165, %v163
  %v202 = vpack.c.b16 %v166, %v164
  %v203 = vpack.c.b16 %v169, %v167
  %v204 = vpack.c.b16 %v170, %v168
  %v205 = vpack.c.b16 %v173, %v171
  %v206 = vpack.c.b16 %v174, %v172
  %239 = vmatprep.subr.bf16.mxu0 %v190
  %240 = vmatpush1.bf16.msra.mxu0 %v189
  %241 = vmatprep.subr.bf16.mxu0 %v188
  %242 = vmatpush1.bf16.msra.mxu0 %v187
  %243 = vmatprep.subr.bf16.mxu0 %v186
  %244 = vmatpush1.bf16.msra.mxu0 %v185
  %245 = vmatprep.subr.bf16.mxu0 %v184
  %246 = vmatpush1.bf16.msra.mxu0 %v183
  %247 = vmatprep.subr.bf16.mxu0 %v182
  %248 = vmatpush1.bf16.msra.mxu0 %v181
  %249 = vmatprep.subr.bf16.mxu0 %v180
  %250 = vmatpush1.bf16.msra.mxu0 %v179
  %251 = vmatprep.subr.bf16.mxu0 %v178
  %252 = vmatpush1.bf16.msra.mxu0 %v177
  %253 = vmatprep.subr.bf16.mxu0 %v176
  %254 = vmatpush1.bf16.msra.mxu0 %v175
  %255 = vmatprep.subr.bf16.mxu0 %v206
  %256 = vmatpush2.bf16.msra.mxu0 %v205
  %257 = vmatprep.subr.bf16.mxu0 %v204
  %258 = vmatpush2.bf16.msra.mxu0 %v203
  %259 = vmatprep.subr.bf16.mxu0 %v202
  %260 = vmatpush2.bf16.msra.mxu0 %v201
  %261 = vmatprep.subr.bf16.mxu0 %v200
  %262 = vmatpush2.bf16.msra.mxu0 %v199
  %263 = vmatprep.subr.bf16.mxu0 %v198
  %264 = vmatpush2.bf16.msra.mxu0 %v197
  %265 = vmatprep.subr.bf16.mxu0 %v196
  %266 = vmatpush2.bf16.msra.mxu0 %v195
  %267 = vmatprep.subr.bf16.mxu0 %v194
  %268 = vmatpush2.bf16.msra.mxu0 %v193
  %269 = vmatprep.subr.bf16.mxu0 %v192
  %270 = vmatpush2.bf16.msra.mxu0 %v191
  %271 = vmatprep.mubr.bf16.mxu0 %v76
  %272 = vmatmul.mubr.bf16.gmra.mxu0 %v75
  %v273 = vpop.f32.mrf.mxu0
  %v274 = vadd.f32 0.0, %v273
  %v275 = vpop.f32.mrf.mxu0
  %v276 = vadd.f32 0.0, %v275
  %v277 = vpop.f32.mrf.mxu0
  %v278 = vadd.f32 0.0, %v277
  %v279 = vpop.f32.mrf.mxu0
  %v280 = vadd.f32 0.0, %v279
  %281 = vdwg.mxu0
  %v282 = vadd.f32 %v31, %v274
  %v283 = vadd.f32 %v32, %v276
  %v284 = vadd.f32 %v33, %v278
  %v285 = vadd.f32 %v34, %v280
  %286 = vst [vmem:[#allocation2] sm:$0xff] %v282
  %287 = vst [vmem:[#allocation2 + $0x8] sm:$0xff] %v283
  %288 = vst [vmem:[#allocation2 + $0x10] sm:$0xff] %v284
  %289 = vst [vmem:[#allocation2 + $0x18] sm:$0xff] %v285
  // Predicated region
  $region30: #{image_transformer_forward.17} parent=0 // pred_check
    %p290 = pneg %p23
  $region31: #{image_transformer_forward.17} parent=0 // pred_check_branch
    %292 = sbr.rel (%p290) target = $region33
  $region32: #{image_transformer_forward.17} parent=0 // pred_region
    %v293 = vld [vmem:[#allocation2] sm:$0xff]
    %v294 = vld [vmem:[#allocation2 + $0x8] sm:$0xff]
    %v295 = vld [vmem:[#allocation2 + $0x10] sm:$0xff]
    %v296 = vld [vmem:[#allocation2 + $0x18] sm:$0xff]
    %v297 = vld [vmem:[%s2] sm:$0x3]
    %v299 = vlaneseq
    %v300 = vshrl.u32 %v299, 7
    %v301 = vsub.s32 0, %v300
    %v302 = vrot.slane %v297, %v301
    %v303 = vlaneseq
    %v304 = vshrl.u32 %v303, 7
    %v305 = vsub.s32 1, %v304
    %v306 = vrot.slane %v297, %v305
    %v309 = vadd.f32 %v293, %v302
    %v310 = vadd.f32 %v294, %v306
    %v311 = vadd.f32 %v295, %v302
    %v312 = vadd.f32 %v296, %v306
    %v313 = vld [vmem:[%s3] sm:$0xff]
    %v314 = vld [vmem:[%s3 + $0x8] sm:$0xff]
    %v315 = vunpack.c.l.bf16 %v313
    %v316 = vunpack.c.h.bf16 %v313
    %v317 = vunpack.c.l.bf16 %v314
    %v318 = vunpack.c.h.bf16 %v314
    %v319 = vadd.f32 %v309, %v315
    %v320 = vadd.f32 %v310, %v316
    %v321 = vadd.f32 %v311, %v317
    %v322 = vadd.f32 %v312, %v318
    %v323 = vadd.f32 %v319, %v320
    %324 = vadd.xlane.f32.xlu0 %v323
    %v325 = vpop.xlane.xlu0 %324
    %v326 = vadd.f32 %v321, %v322
    %327 = vadd.xlane.f32.xlu0 %v326
    %v328 = vpop.xlane.xlu0 %327
    %v329 = vrcp.pop 256.0
    %v330 = vmul.f32 %v325, %v329
    %v331 = vmul.f32 %v328, %v329
    %v332 = vsub.f32 %v319, %v330
    %v333 = vsub.f32 %v320, %v330
    %v334 = vsub.f32 %v321, %v331
    %v335 = vsub.f32 %v322, %v331
    %v336 = vmul.f32 %v332, %v332
    %v337 = vmul.f32 %v333, %v333
    %v338 = vmul.f32 %v334, %v334
    %v339 = vmul.f32 %v335, %v335
    %v340 = vadd.f32 %v336, %v337
    %341 = vadd.xlane.f32.xlu0 %v340
    %v342 = vpop.xlane.xlu0 %341
    %v343 = vadd.f32 %v338, %v339
    %344 = vadd.xlane.f32.xlu0 %v343
    %v345 = vpop.xlane.xlu0 %344
    %v346 = vmul.f32 %v342, %v329
    %v347 = vmul.f32 %v345, %v329
    %v348 = vadd.f32 %v346, 1e-05
    %v349 = vadd.f32 %v347, 1e-05
    %v350 = vrsqrt.pop %v348
    %v351 = vrsqrt.pop %v349
    %v352 = vmul.f32 %v332, %v350
    %v353 = vmul.f32 %v333, %v350
    %v354 = vmul.f32 %v334, %v351
    %v355 = vmul.f32 %v335, %v351
    %v356 = vld [vmem:[%s4] sm:$0x3]
    %v358 = vlaneseq
    %v359 = vshrl.u32 %v358, 7
    %v360 = vsub.s32 0, %v359
    %v361 = vrot.slane %v356, %v360
    %v362 = vlaneseq
    %v363 = vshrl.u32 %v362, 7
    %v364 = vsub.s32 1, %v363
    %v365 = vrot.slane %v356, %v364
    %v368 = vmul.f32 %v352, %v361
    %v369 = vmul.f32 %v353, %v365
    %v370 = vmul.f32 %v354, %v361
    %v371 = vmul.f32 %v355, %v365
    %v372 = vld [vmem:[%s5] sm:$0x3]
    %v374 = vlaneseq
    %v375 = vshrl.u32 %v374, 7
    %v376 = vsub.s32 0, %v375
    %v377 = vrot.slane %v372, %v376
    %v378 = vlaneseq
    %v379 = vshrl.u32 %v378, 7
    %v380 = vsub.s32 1, %v379
    %v381 = vrot.slane %v372, %v380
    %v384 = vadd.f32 %v368, %v377
    %v385 = vadd.f32 %v369, %v381
    %v386 = vadd.f32 %v370, %v377
    %v387 = vadd.f32 %v371, %v381
    %v388 = vpack.c.bf16 %v386, %v384
    %v389 = vpack.c.bf16 %v387, %v385
    %v392 = vunpack.c.l.b16 %v388
    %v393 = vunpack.c.l.b16 %v389
    %v394 = vunpack.c.h.b16 %v388
    %v395 = vunpack.c.h.b16 %v389
    %v396 = vpack.c.b16 %v393, %v392
    %v397 = vpack.c.b16 %v395, %v394
    %400 = vst [vmem:[%s6] sm:$0xff] %v396
    %401 = vst [vmem:[%s6 + $0x8] sm:$0xff] %v397
  $region33: #{image_transformer_forward.17} parent=0 // pred_fallthru
    _
  // Predicated region
  $region34: #{image_transformer_forward.17} parent=0 // pred_check
    _
  $region35: #{image_transformer_forward.17} parent=0 // pred_check_branch
    %403 = sbr.rel (0) target = $region37
  $region36: #{image_transformer_forward.17} parent=0 // pred_region
    _
  $region37: #{image_transformer_forward.17} parent=0 // pred_fallthru
    _
  // Predicated region
  $region38: #{image_transformer_forward.17} parent=0 // pred_check
    _
  $region39: #{image_transformer_forward.17} parent=0 // pred_check_branch
    %405 = sbr.rel (0) target = $region41
  $region40: #{image_transformer_forward.17} parent=0 // pred_region
    _
  $region41: #{image_transformer_forward.17} parent=0 // pred_fallthru
    _

// kernel: image_transformer_forward.18
$region0: #{image_transformer_forward.18}
  #allocation0 [shape = 'u32[]', space=smem, size = 0x4, offset = 0x4, fixed_abs, tag = 'smem constant byte address 0x4 - core index']
  #allocation1 [shape = 'u32[144,128]{1,0:T(1,128)}', space=vmem, size = 0x12000, scoped, tag = 'internal scratch']
  #allocation2 [shape = 'f32[16,512]{1,0:T(8,128)}', space=vmem, size = 0x8000, scoped, tag = 'scratch operand']
  %s0 = inlined_call_operand.vmem [shape: bf16[16,256], index: 0, kind: input, shape index: {}]
  %s1 = inlined_call_operand.vmem [shape: bf16[256,512], index: 1, kind: input, shape index: {}]
  %s2 = inlined_call_operand.vmem [shape: f32[1,512], index: 2, kind: input, shape index: {}]
  %s3 = inlined_call_operand.vmem [shape: bf16[16,512], index: 3, kind: output, shape index: {}]
  %s4 = sld [smem:[#allocation0]]
  $region30: #{image_transformer_forward.18} parent=0
    _
  %s6 = ssub.s32 1, %s4
  %s7 = scalar_select 0, %s6, %s4
  // Predicated region
  $region2: #{image_transformer_forward.18} parent=0 // pred_check
    _
  $region3: #{image_transformer_forward.18} parent=0 // pred_check_branch
    %9 = sbr.rel (0) target = $region5
  $region4: #{image_transformer_forward.18} parent=0 // pred_region
    _
  $region5: #{image_transformer_forward.18} parent=0 // pred_fallthru
    _
  // Predicated region
  $region6: #{image_transformer_forward.18} parent=0 // pred_check
    _
  $region7: #{image_transformer_forward.18} parent=0 // pred_check_branch
    %11 = sbr.rel (0) target = $region9
  $region8: #{image_transformer_forward.18} parent=0 // pred_region
    _
  $region9: #{image_transformer_forward.18} parent=0 // pred_fallthru
    _
  // Predicated region
  $region10: #{image_transformer_forward.18} parent=0 // pred_check
    _
  $region11: #{image_transformer_forward.18} parent=0 // pred_check_branch
    %13 = sbr.rel (0) target = $region13
  $region12: #{image_transformer_forward.18} parent=0 // pred_region
    _
  $region13: #{image_transformer_forward.18} parent=0 // pred_fallthru
    _
  %p14 = scmp.eq.s32.totalorder 0, 0
  // Predicated region
  $region14: #{image_transformer_forward.18} parent=0 // pred_check
    %p15 = pneg %p14
  $region15: #{image_transformer_forward.18} parent=0 // pred_check_branch
    %17 = sbr.rel (%p15) target = $region17
  $region16: #{image_transformer_forward.18} parent=0 // pred_region
    %18 = vst [vmem:[#allocation2] sm:$0xff] 0.0
    %19 = vst [vmem:[#allocation2 + $0x8] sm:$0xff] 0.0
    %20 = vst [vmem:[#allocation2 + $0x10] sm:$0xff] 0.0
    %21 = vst [vmem:[#allocation2 + $0x18] sm:$0xff] 0.0
    %22 = vst [vmem:[#allocation2 + $0x20] sm:$0xff] 0.0
    %23 = vst [vmem:[#allocation2 + $0x28] sm:$0xff] 0.0
    %24 = vst [vmem:[#allocation2 + $0x30] sm:$0xff] 0.0
    %25 = vst [vmem:[#allocation2 + $0x38] sm:$0xff] 0.0
  $region17: #{image_transformer_forward.18} parent=0 // pred_fallthru
    _
  %v26 = vld [vmem:[%s0] sm:$0xff]
  %v27 = vld [vmem:[%s0 + $0x8] sm:$0xff]
  %v28 = vld [vmem:[#allocation2] sm:$0xff]
  %v29 = vld [vmem:[#allocation2 + $0x8] sm:$0xff]
  %v30 = vld [vmem:[#allocation2 + $0x10] sm:$0xff]
  %v31 = vld [vmem:[#allocation2 + $0x18] sm:$0xff]
  %v32 = vld [vmem:[#allocation2 + $0x20] sm:$0xff]
  %v33 = vld [vmem:[#allocation2 + $0x28] sm:$0xff]
  %v34 = vld [vmem:[#allocation2 + $0x30] sm:$0xff]
  %v35 = vld [vmem:[#allocation2 + $0x38] sm:$0xff]
  %v36 = vld [vmem:[%s1] sm:$0xff]
  %v37 = vld [vmem:[%s1 + $0x8] sm:$0xff]
  %v38 = vld [vmem:[%s1 + $0x10] sm:$0xff]
  %v39 = vld [vmem:[%s1 + $0x18] sm:$0xff]
  %v40 = vld [vmem:[%s1 + $0x20] sm:$0xff]
  %v41 = vld [vmem:[%s1 + $0x28] sm:$0xff]
  %v42 = vld [vmem:[%s1 + $0x30] sm:$0xff]
  %v43 = vld [vmem:[%s1 + $0x38] sm:$0xff]
  %v44 = vld [vmem:[%s1 + $0x40] sm:$0xff]
  %v45 = vld [vmem:[%s1 + $0x48] sm:$0xff]
  %v46 = vld [vmem:[%s1 + $0x50] sm:$0xff]
  %v47 = vld [vmem:[%s1 + $0x58] sm:$0xff]
  %v48 = vld [vmem:[%s1 + $0x60] sm:$0xff]
  %v49 = vld [vmem:[%s1 + $0x68] sm:$0xff]
  %v50 = vld [vmem:[%s1 + $0x70] sm:$0xff]
  %v51 = vld [vmem:[%s1 + $0x78] sm:$0xff]
  %v52 = vld [vmem:[%s1 + $0x80] sm:$0xff]
  %v53 = vld [vmem:[%s1 + $0x88] sm:$0xff]
  %v54 = vld [vmem:[%s1 + $0x90] sm:$0xff]
  %v55 = vld [vmem:[%s1 + $0x98] sm:$0xff]
  %v56 = vld [vmem:[%s1 + $0xa0] sm:$0xff]
  %v57 = vld [vmem:[%s1 + $0xa8] sm:$0xff]
  %v58 = vld [vmem:[%s1 + $0xb0] sm:$0xff]
  %v59 = vld [vmem:[%s1 + $0xb8] sm:$0xff]
  %v60 = vld [vmem:[%s1 + $0xc0] sm:$0xff]
  %v61 = vld [vmem:[%s1 + $0xc8] sm:$0xff]
  %v62 = vld [vmem:[%s1 + $0xd0] sm:$0xff]
  %v63 = vld [vmem:[%s1 + $0xd8] sm:$0xff]
  %v64 = vld [vmem:[%s1 + $0xe0] sm:$0xff]
  %v65 = vld [vmem:[%s1 + $0xe8] sm:$0xff]
  %v66 = vld [vmem:[%s1 + $0xf0] sm:$0xff]
  %v67 = vld [vmem:[%s1 + $0xf8] sm:$0xff]
  %v68 = vld [vmem:[%s1 + $0x100] sm:$0xff]
  %v69 = vld [vmem:[%s1 + $0x108] sm:$0xff]
  %v70 = vld [vmem:[%s1 + $0x110] sm:$0xff]
  %v71 = vld [vmem:[%s1 + $0x118] sm:$0xff]
  %v72 = vld [vmem:[%s1 + $0x120] sm:$0xff]
  %v73 = vld [vmem:[%s1 + $0x128] sm:$0xff]
  %v74 = vld [vmem:[%s1 + $0x130] sm:$0xff]
  %v75 = vld [vmem:[%s1 + $0x138] sm:$0xff]
  %v76 = vld [vmem:[%s1 + $0x140] sm:$0xff]
  %v77 = vld [vmem:[%s1 + $0x148] sm:$0xff]
  %v78 = vld [vmem:[%s1 + $0x150] sm:$0xff]
  %v79 = vld [vmem:[%s1 + $0x158] sm:$0xff]
  %v80 = vld [vmem:[%s1 + $0x160] sm:$0xff]
  %v81 = vld [vmem:[%s1 + $0x168] sm:$0xff]
  %v82 = vld [vmem:[%s1 + $0x170] sm:$0xff]
  %v83 = vld [vmem:[%s1 + $0x178] sm:$0xff]
  %v84 = vld [vmem:[%s1 + $0x180] sm:$0xff]
  %v85 = vld [vmem:[%s1 + $0x188] sm:$0xff]
  %v86 = vld [vmem:[%s1 + $0x190] sm:$0xff]
  %v87 = vld [vmem:[%s1 + $0x198] sm:$0xff]
  %v88 = vld [vmem:[%s1 + $0x1a0] sm:$0xff]
  %v89 = vld [vmem:[%s1 + $0x1a8] sm:$0xff]
  %v90 = vld [vmem:[%s1 + $0x1b0] sm:$0xff]
  %v91 = vld [vmem:[%s1 + $0x1b8] sm:$0xff]
  %v92 = vld [vmem:[%s1 + $0x1c0] sm:$0xff]
  %v93 = vld [vmem:[%s1 + $0x1c8] sm:$0xff]
  %v94 = vld [vmem:[%s1 + $0x1d0] sm:$0xff]
  %v95 = vld [vmem:[%s1 + $0x1d8] sm:$0xff]
  %v96 = vld [vmem:[%s1 + $0x1e0] sm:$0xff]
  %v97 = vld [vmem:[%s1 + $0x1e8] sm:$0xff]
  %v98 = vld [vmem:[%s1 + $0x1f0] sm:$0xff]
  %v99 = vld [vmem:[%s1 + $0x1f8] sm:$0xff]
  %v102 = vunpack.c.l.b16 %v26
  %v103 = vunpack.c.h.b16 %v26
  %v104 = vunpack.c.l.b16 %v27
  %v105 = vunpack.c.h.b16 %v27
  %v106 = vpack.c.b16 %v104, %v102
  %v107 = vpack.c.b16 %v105, %v103
  %v174 = vunpack.c.l.b16 %v36
  %v175 = vunpack.c.h.b16 %v36
  %v176 = vunpack.c.l.b16 %v37
  %v177 = vunpack.c.h.b16 %v37
  %v178 = vunpack.c.l.b16 %v38
  %v179 = vunpack.c.h.b16 %v38
  %v180 = vunpack.c.l.b16 %v39
  %v181 = vunpack.c.h.b16 %v39
  %v182 = vunpack.c.l.b16 %v40
  %v183 = vunpack.c.h.b16 %v40
  %v184 = vunpack.c.l.b16 %v41
  %v185 = vunpack.c.h.b16 %v41
  %v186 = vunpack.c.l.b16 %v42
  %v187 = vunpack.c.h.b16 %v42
  %v188 = vunpack.c.l.b16 %v43
  %v189 = vunpack.c.h.b16 %v43
  %v190 = vunpack.c.l.b16 %v44
  %v191 = vunpack.c.h.b16 %v44
  %v192 = vunpack.c.l.b16 %v45
  %v193 = vunpack.c.h.b16 %v45
  %v194 = vunpack.c.l.b16 %v46
  %v195 = vunpack.c.h.b16 %v46
  %v196 = vunpack.c.l.b16 %v47
  %v197 = vunpack.c.h.b16 %v47
  %v198 = vunpack.c.l.b16 %v48
  %v199 = vunpack.c.h.b16 %v48
  %v200 = vunpack.c.l.b16 %v49
  %v201 = vunpack.c.h.b16 %v49
  %v202 = vunpack.c.l.b16 %v50
  %v203 = vunpack.c.h.b16 %v50
  %v204 = vunpack.c.l.b16 %v51
  %v205 = vunpack.c.h.b16 %v51
  %v206 = vunpack.c.l.b16 %v52
  %v207 = vunpack.c.h.b16 %v52
  %v208 = vunpack.c.l.b16 %v53
  %v209 = vunpack.c.h.b16 %v53
  %v210 = vunpack.c.l.b16 %v54
  %v211 = vunpack.c.h.b16 %v54
  %v212 = vunpack.c.l.b16 %v55
  %v213 = vunpack.c.h.b16 %v55
  %v214 = vunpack.c.l.b16 %v56
  %v215 = vunpack.c.h.b16 %v56
  %v216 = vunpack.c.l.b16 %v57
  %v217 = vunpack.c.h.b16 %v57
  %v218 = vunpack.c.l.b16 %v58
  %v219 = vunpack.c.h.b16 %v58
  %v220 = vunpack.c.l.b16 %v59
  %v221 = vunpack.c.h.b16 %v59
  %v222 = vunpack.c.l.b16 %v60
  %v223 = vunpack.c.h.b16 %v60
  %v224 = vunpack.c.l.b16 %v61
  %v225 = vunpack.c.h.b16 %v61
  %v226 = vunpack.c.l.b16 %v62
  %v227 = vunpack.c.h.b16 %v62
  %v228 = vunpack.c.l.b16 %v63
  %v229 = vunpack.c.h.b16 %v63
  %v230 = vunpack.c.l.b16 %v64
  %v231 = vunpack.c.h.b16 %v64
  %v232 = vunpack.c.l.b16 %v65
  %v233 = vunpack.c.h.b16 %v65
  %v234 = vunpack.c.l.b16 %v66
  %v235 = vunpack.c.h.b16 %v66
  %v236 = vunpack.c.l.b16 %v67
  %v237 = vunpack.c.h.b16 %v67
  %v238 = vunpack.c.l.b16 %v68
  %v239 = vunpack.c.h.b16 %v68
  %v240 = vunpack.c.l.b16 %v69
  %v241 = vunpack.c.h.b16 %v69
  %v242 = vunpack.c.l.b16 %v70
  %v243 = vunpack.c.h.b16 %v70
  %v244 = vunpack.c.l.b16 %v71
  %v245 = vunpack.c.h.b16 %v71
  %v246 = vunpack.c.l.b16 %v72
  %v247 = vunpack.c.h.b16 %v72
  %v248 = vunpack.c.l.b16 %v73
  %v249 = vunpack.c.h.b16 %v73
  %v250 = vunpack.c.l.b16 %v74
  %v251 = vunpack.c.h.b16 %v74
  %v252 = vunpack.c.l.b16 %v75
  %v253 = vunpack.c.h.b16 %v75
  %v254 = vunpack.c.l.b16 %v76
  %v255 = vunpack.c.h.b16 %v76
  %v256 = vunpack.c.l.b16 %v77
  %v257 = vunpack.c.h.b16 %v77
  %v258 = vunpack.c.l.b16 %v78
  %v259 = vunpack.c.h.b16 %v78
  %v260 = vunpack.c.l.b16 %v79
  %v261 = vunpack.c.h.b16 %v79
  %v262 = vunpack.c.l.b16 %v80
  %v263 = vunpack.c.h.b16 %v80
  %v264 = vunpack.c.l.b16 %v81
  %v265 = vunpack.c.h.b16 %v81
  %v266 = vunpack.c.l.b16 %v82
  %v267 = vunpack.c.h.b16 %v82
  %v268 = vunpack.c.l.b16 %v83
  %v269 = vunpack.c.h.b16 %v83
  %v270 = vunpack.c.l.b16 %v84
  %v271 = vunpack.c.h.b16 %v84
  %v272 = vunpack.c.l.b16 %v85
  %v273 = vunpack.c.h.b16 %v85
  %v274 = vunpack.c.l.b16 %v86
  %v275 = vunpack.c.h.b16 %v86
  %v276 = vunpack.c.l.b16 %v87
  %v277 = vunpack.c.h.b16 %v87
  %v278 = vunpack.c.l.b16 %v88
  %v279 = vunpack.c.h.b16 %v88
  %v280 = vunpack.c.l.b16 %v89
  %v281 = vunpack.c.h.b16 %v89
  %v282 = vunpack.c.l.b16 %v90
  %v283 = vunpack.c.h.b16 %v90
  %v284 = vunpack.c.l.b16 %v91
  %v285 = vunpack.c.h.b16 %v91
  %v286 = vunpack.c.l.b16 %v92
  %v287 = vunpack.c.h.b16 %v92
  %v288 = vunpack.c.l.b16 %v93
  %v289 = vunpack.c.h.b16 %v93
  %v290 = vunpack.c.l.b16 %v94
  %v291 = vunpack.c.h.b16 %v94
  %v292 = vunpack.c.l.b16 %v95
  %v293 = vunpack.c.h.b16 %v95
  %v294 = vunpack.c.l.b16 %v96
  %v295 = vunpack.c.h.b16 %v96
  %v296 = vunpack.c.l.b16 %v97
  %v297 = vunpack.c.h.b16 %v97
  %v298 = vunpack.c.l.b16 %v98
  %v299 = vunpack.c.h.b16 %v98
  %v300 = vunpack.c.l.b16 %v99
  %v301 = vunpack.c.h.b16 %v99
  %v302 = vpack.c.b16 %v178, %v174
  %v303 = vpack.c.b16 %v179, %v175
  %v304 = vpack.c.b16 %v180, %v176
  %v305 = vpack.c.b16 %v181, %v177
  %v306 = vpack.c.b16 %v186, %v182
  %v307 = vpack.c.b16 %v187, %v183
  %v308 = vpack.c.b16 %v188, %v184
  %v309 = vpack.c.b16 %v189, %v185
  %v310 = vpack.c.b16 %v194, %v190
  %v311 = vpack.c.b16 %v195, %v191
  %v312 = vpack.c.b16 %v196, %v192
  %v313 = vpack.c.b16 %v197, %v193
  %v314 = vpack.c.b16 %v202, %v198
  %v315 = vpack.c.b16 %v203, %v199
  %v316 = vpack.c.b16 %v204, %v200
  %v317 = vpack.c.b16 %v205, %v201
  %v318 = vpack.c.b16 %v210, %v206
  %v319 = vpack.c.b16 %v211, %v207
  %v320 = vpack.c.b16 %v212, %v208
  %v321 = vpack.c.b16 %v213, %v209
  %v322 = vpack.c.b16 %v218, %v214
  %v323 = vpack.c.b16 %v219, %v215
  %v324 = vpack.c.b16 %v220, %v216
  %v325 = vpack.c.b16 %v221, %v217
  %v326 = vpack.c.b16 %v226, %v222
  %v327 = vpack.c.b16 %v227, %v223
  %v328 = vpack.c.b16 %v228, %v224
  %v329 = vpack.c.b16 %v229, %v225
  %v330 = vpack.c.b16 %v234, %v230
  %v331 = vpack.c.b16 %v235, %v231
  %v332 = vpack.c.b16 %v236, %v232
  %v333 = vpack.c.b16 %v237, %v233
  %v334 = vpack.c.b16 %v242, %v238
  %v335 = vpack.c.b16 %v243, %v239
  %v336 = vpack.c.b16 %v244, %v240
  %v337 = vpack.c.b16 %v245, %v241
  %v338 = vpack.c.b16 %v250, %v246
  %v339 = vpack.c.b16 %v251, %v247
  %v340 = vpack.c.b16 %v252, %v248
  %v341 = vpack.c.b16 %v253, %v249
  %v342 = vpack.c.b16 %v258, %v254
  %v343 = vpack.c.b16 %v259, %v255
  %v344 = vpack.c.b16 %v260, %v256
  %v345 = vpack.c.b16 %v261, %v257
  %v346 = vpack.c.b16 %v266, %v262
  %v347 = vpack.c.b16 %v267, %v263
  %v348 = vpack.c.b16 %v268, %v264
  %v349 = vpack.c.b16 %v269, %v265
  %v350 = vpack.c.b16 %v274, %v270
  %v351 = vpack.c.b16 %v275, %v271
  %v352 = vpack.c.b16 %v276, %v272
  %v353 = vpack.c.b16 %v277, %v273
  %v354 = vpack.c.b16 %v282, %v278
  %v355 = vpack.c.b16 %v283, %v279
  %v356 = vpack.c.b16 %v284, %v280
  %v357 = vpack.c.b16 %v285, %v281
  %v358 = vpack.c.b16 %v290, %v286
  %v359 = vpack.c.b16 %v291, %v287
  %v360 = vpack.c.b16 %v292, %v288
  %v361 = vpack.c.b16 %v293, %v289
  %v362 = vpack.c.b16 %v298, %v294
  %v363 = vpack.c.b16 %v299, %v295
  %v364 = vpack.c.b16 %v300, %v296
  %v365 = vpack.c.b16 %v301, %v297
  %430 = vmatprep.subr.bf16.mxu0 %v331
  %431 = vmatpush1.bf16.msra.mxu0 %v330
  %432 = vmatprep.subr.bf16.mxu0 %v327
  %433 = vmatpush1.bf16.msra.mxu0 %v326
  %434 = vmatprep.subr.bf16.mxu0 %v323
  %435 = vmatpush1.bf16.msra.mxu0 %v322
  %436 = vmatprep.subr.bf16.mxu0 %v319
  %437 = vmatpush1.bf16.msra.mxu0 %v318
  %438 = vmatprep.subr.bf16.mxu0 %v315
  %439 = vmatpush1.bf16.msra.mxu0 %v314
  %440 = vmatprep.subr.bf16.mxu0 %v311
  %441 = vmatpush1.bf16.msra.mxu0 %v310
  %442 = vmatprep.subr.bf16.mxu0 %v307
  %443 = vmatpush1.bf16.msra.mxu0 %v306
  %444 = vmatprep.subr.bf16.mxu0 %v303
  %445 = vmatpush1.bf16.msra.mxu0 %v302
  %446 = vmatprep.subr.bf16.mxu0 %v363
  %447 = vmatpush2.bf16.msra.mxu0 %v362
  %448 = vmatprep.subr.bf16.mxu0 %v359
  %449 = vmatpush2.bf16.msra.mxu0 %v358
  %450 = vmatprep.subr.bf16.mxu0 %v355
  %451 = vmatpush2.bf16.msra.mxu0 %v354
  %452 = vmatprep.subr.bf16.mxu0 %v351
  %453 = vmatpush2.bf16.msra.mxu0 %v350
  %454 = vmatprep.subr.bf16.mxu0 %v347
  %455 = vmatpush2.bf16.msra.mxu0 %v346
  %456 = vmatprep.subr.bf16.mxu0 %v343
  %457 = vmatpush2.bf16.msra.mxu0 %v342
  %458 = vmatprep.subr.bf16.mxu0 %v339
  %459 = vmatpush2.bf16.msra.mxu0 %v338
  %460 = vmatprep.subr.bf16.mxu0 %v335
  %461 = vmatpush2.bf16.msra.mxu0 %v334
  %462 = vmatprep.mubr.bf16.mxu0 %v107
  %463 = vmatmul.mubr.bf16.gmra.mxu0 %v106
  %v464 = vpop.f32.mrf.mxu0
  %v465 = vadd.f32 0.0, %v464
  %v466 = vpop.f32.mrf.mxu0
  %v467 = vadd.f32 0.0, %v466
  %v468 = vpop.f32.mrf.mxu0
  %v469 = vadd.f32 0.0, %v468
  %v470 = vpop.f32.mrf.mxu0
  %v471 = vadd.f32 0.0, %v470
  %472 = vdwg.mxu0
  %473 = vmatprep.subr.bf16.mxu0 %v333
  %474 = vmatpush1.bf16.msra.mxu0 %v332
  %475 = vmatprep.subr.bf16.mxu0 %v329
  %476 = vmatpush1.bf16.msra.mxu0 %v328
  %477 = vmatprep.subr.bf16.mxu0 %v325
  %478 = vmatpush1.bf16.msra.mxu0 %v324
  %479 = vmatprep.subr.bf16.mxu0 %v321
  %480 = vmatpush1.bf16.msra.mxu0 %v320
  %481 = vmatprep.subr.bf16.mxu0 %v317
  %482 = vmatpush1.bf16.msra.mxu0 %v316
  %483 = vmatprep.subr.bf16.mxu0 %v313
  %484 = vmatpush1.bf16.msra.mxu0 %v312
  %485 = vmatprep.subr.bf16.mxu0 %v309
  %486 = vmatpush1.bf16.msra.mxu0 %v308
  %487 = vmatprep.subr.bf16.mxu0 %v305
  %488 = vmatpush1.bf16.msra.mxu0 %v304
  %489 = vmatprep.subr.bf16.mxu0 %v365
  %490 = vmatpush2.bf16.msra.mxu0 %v364
  %491 = vmatprep.subr.bf16.mxu0 %v361
  %492 = vmatpush2.bf16.msra.mxu0 %v360
  %493 = vmatprep.subr.bf16.mxu0 %v357
  %494 = vmatpush2.bf16.msra.mxu0 %v356
  %495 = vmatprep.subr.bf16.mxu0 %v353
  %496 = vmatpush2.bf16.msra.mxu0 %v352
  %497 = vmatprep.subr.bf16.mxu0 %v349
  %498 = vmatpush2.bf16.msra.mxu0 %v348
  %499 = vmatprep.subr.bf16.mxu0 %v345
  %500 = vmatpush2.bf16.msra.mxu0 %v344
  %501 = vmatprep.subr.bf16.mxu0 %v341
  %502 = vmatpush2.bf16.msra.mxu0 %v340
  %503 = vmatprep.subr.bf16.mxu0 %v337
  %504 = vmatpush2.bf16.msra.mxu0 %v336
  %505 = vmatprep.mubr.bf16.mxu0 %v107
  %506 = vmatmul.mubr.bf16.gmra.mxu0 %v106
  %v507 = vpop.f32.mrf.mxu0
  %v508 = vadd.f32 0.0, %v507
  %v509 = vpop.f32.mrf.mxu0
  %v510 = vadd.f32 0.0, %v509
  %v511 = vpop.f32.mrf.mxu0
  %v512 = vadd.f32 0.0, %v511
  %v513 = vpop.f32.mrf.mxu0
  %v514 = vadd.f32 0.0, %v513
  %515 = vdwg.mxu0
  %v516 = vadd.f32 %v28, %v465
  %v517 = vadd.f32 %v29, %v467
  %v518 = vadd.f32 %v30, %v508
  %v519 = vadd.f32 %v31, %v510
  %v520 = vadd.f32 %v32, %v469
  %v521 = vadd.f32 %v33, %v471
  %v522 = vadd.f32 %v34, %v512
  %v523 = vadd.f32 %v35, %v514
  %524 = vst [vmem:[#allocation2] sm:$0xff] %v516
  %525 = vst [vmem:[#allocation2 + $0x8] sm:$0xff] %v517
  %526 = vst [vmem:[#allocation2 + $0x10] sm:$0xff] %v518
  %527 = vst [vmem:[#allocation2 + $0x18] sm:$0xff] %v519
  %528 = vst [vmem:[#allocation2 + $0x20] sm:$0xff] %v520
  %529 = vst [vmem:[#allocation2 + $0x28] sm:$0xff] %v521
  %530 = vst [vmem:[#allocation2 + $0x30] sm:$0xff] %v522
  %531 = vst [vmem:[#allocation2 + $0x38] sm:$0xff] %v523
  // Predicated region
  $region18: #{image_transformer_forward.18} parent=0 // pred_check
    %p532 = pneg %p14
  $region19: #{image_transformer_forward.18} parent=0 // pred_check_branch
    %534 = sbr.rel (%p532) target = $region21
  $region20: #{image_transformer_forward.18} parent=0 // pred_region
    %v535 = vld [vmem:[#allocation2] sm:$0xff]
    %v536 = vld [vmem:[#allocation2 + $0x8] sm:$0xff]
    %v537 = vld [vmem:[#allocation2 + $0x10] sm:$0xff]
    %v538 = vld [vmem:[#allocation2 + $0x18] sm:$0xff]
    %v539 = vld [vmem:[#allocation2 + $0x20] sm:$0xff]
    %v540 = vld [vmem:[#allocation2 + $0x28] sm:$0xff]
    %v541 = vld [vmem:[#allocation2 + $0x30] sm:$0xff]
    %v542 = vld [vmem:[#allocation2 + $0x38] sm:$0xff]
    %v543 = vld [vmem:[%s2] sm:$0xf]
    %v545 = vlaneseq
    %v546 = vshrl.u32 %v545, 7
    %v547 = vsub.s32 0, %v546
    %v548 = vrot.slane %v543, %v547
    %v549 = vlaneseq
    %v550 = vshrl.u32 %v549, 7
    %v551 = vsub.s32 1, %v550
    %v552 = vrot.slane %v543, %v551
    %v553 = vlaneseq
    %v554 = vshrl.u32 %v553, 7
    %v555 = vsub.s32 2, %v554
    %v556 = vrot.slane %v543, %v555
    %v557 = vlaneseq
    %v558 = vshrl.u32 %v557, 7
    %v559 = vsub.s32 3, %v558
    %v560 = vrot.slane %v543, %v559
    %v565 = vadd.f32 %v535, %v548
    %v566 = vadd.f32 %v536, %v552
    %v567 = vadd.f32 %v537, %v556
    %v568 = vadd.f32 %v538, %v560
    %v569 = vadd.f32 %v539, %v548
    %v570 = vadd.f32 %v540, %v552
    %v571 = vadd.f32 %v541, %v556
    %v572 = vadd.f32 %v542, %v560
    %v573 = vmax.f32 %v565, 0.0
    %v574 = vmax.f32 %v566, 0.0
    %v575 = vmax.f32 %v567, 0.0
    %v576 = vmax.f32 %v568, 0.0
    %v577 = vmax.f32 %v569, 0.0
    %v578 = vmax.f32 %v570, 0.0
    %v579 = vmax.f32 %v571, 0.0
    %v580 = vmax.f32 %v572, 0.0
    %v581 = vpack.c.bf16 %v577, %v573
    %v582 = vpack.c.bf16 %v578, %v574
    %v583 = vpack.c.bf16 %v579, %v575
    %v584 = vpack.c.bf16 %v580, %v576
    %v589 = vunpack.c.l.b16 %v581
    %v590 = vunpack.c.l.b16 %v582
    %v591 = vunpack.c.l.b16 %v583
    %v592 = vunpack.c.l.b16 %v584
    %v593 = vunpack.c.h.b16 %v581
    %v594 = vunpack.c.h.b16 %v582
    %v595 = vunpack.c.h.b16 %v583
    %v596 = vunpack.c.h.b16 %v584
    %v597 = vpack.c.b16 %v590, %v589
    %v598 = vpack.c.b16 %v592, %v591
    %v599 = vpack.c.b16 %v594, %v593
    %v600 = vpack.c.b16 %v596, %v595
    %605 = vst [vmem:[%s3] sm:$0xff] %v597
    %606 = vst [vmem:[%s3 + $0x8] sm:$0xff] %v598
    %607 = vst [vmem:[%s3 + $0x10] sm:$0xff] %v599
    %608 = vst [vmem:[%s3 + $0x18] sm:$0xff] %v600
  $region21: #{image_transformer_forward.18} parent=0 // pred_fallthru
    _
  // Predicated region
  $region22: #{image_transformer_forward.18} parent=0 // pred_check
    _
  $region23: #{image_transformer_forward.18} parent=0 // pred_check_branch
    %610 = sbr.rel (0) target = $region25
  $region24: #{image_transformer_forward.18} parent=0 // pred_region
    _
  $region25: #{image_transformer_forward.18} parent=0 // pred_fallthru
    _
  // Predicated region
  $region26: #{image_transformer_forward.18} parent=0 // pred_check
    _
  $region27: #{image_transformer_forward.18} parent=0 // pred_check_branch
    %612 = sbr.rel (0) target = $region29
  $region28: #{image_transformer_forward.18} parent=0 // pred_region
    _
  $region29: #{image_transformer_forward.18} parent=0 // pred_fallthru
    _

// kernel: image_transformer_forward.19
$region0: #{image_transformer_forward.19}
  #allocation0 [shape = 'u32[]', space=smem, size = 0x4, offset = 0x4, fixed_abs, tag = 'smem constant byte address 0x4 - core index']
  #allocation1 [shape = 'u32[144,128]{1,0:T(1,128)}', space=vmem, size = 0x12000, scoped, tag = 'internal scratch']
  #allocation2 [shape = 'f32[16,256]{1,0:T(8,128)}', space=vmem, size = 0x4000, scoped, tag = 'scratch operand']
  %s0 = inlined_call_operand.vmem [shape: bf16[16,512], index: 0, kind: input, shape index: {}]
  %s1 = inlined_call_operand.vmem [shape: bf16[512,256], index: 1, kind: input, shape index: {}]
  %s2 = inlined_call_operand.vmem [shape: f32[1,256], index: 2, kind: input, shape index: {}]
  %s3 = inlined_call_operand.vmem [shape: bf16[16,256], index: 3, kind: input, shape index: {}]
  %s4 = inlined_call_operand.vmem [shape: f32[1,256], index: 4, kind: input, shape index: {}]
  %s5 = inlined_call_operand.vmem [shape: f32[1,256], index: 5, kind: input, shape index: {}]
  %s6 = inlined_call_operand.vmem [shape: bf16[16,256], index: 6, kind: output, shape index: {}]
  %s7 = sld [smem:[#allocation0]]
  $region42: #{image_transformer_forward.19} parent=0
    _
  %s9 = ssub.s32 1, %s7
  %s10 = scalar_select 0, %s9, %s7
  // Predicated region
  $region2: #{image_transformer_forward.19} parent=0 // pred_check
    _
  $region3: #{image_transformer_forward.19} parent=0 // pred_check_branch
    %12 = sbr.rel (0) target = $region5
  $region4: #{image_transformer_forward.19} parent=0 // pred_region
    _
  $region5: #{image_transformer_forward.19} parent=0 // pred_fallthru
    _
  // Predicated region
  $region6: #{image_transformer_forward.19} parent=0 // pred_check
    _
  $region7: #{image_transformer_forward.19} parent=0 // pred_check_branch
    %14 = sbr.rel (0) target = $region9
  $region8: #{image_transformer_forward.19} parent=0 // pred_region
    _
  $region9: #{image_transformer_forward.19} parent=0 // pred_fallthru
    _
  // Predicated region
  $region10: #{image_transformer_forward.19} parent=0 // pred_check
    _
  $region11: #{image_transformer_forward.19} parent=0 // pred_check_branch
    %16 = sbr.rel (0) target = $region13
  $region12: #{image_transformer_forward.19} parent=0 // pred_region
    _
  $region13: #{image_transformer_forward.19} parent=0 // pred_fallthru
    _
  // Predicated region
  $region14: #{image_transformer_forward.19} parent=0 // pred_check
    _
  $region15: #{image_transformer_forward.19} parent=0 // pred_check_branch
    %18 = sbr.rel (0) target = $region17
  $region16: #{image_transformer_forward.19} parent=0 // pred_region
    _
  $region17: #{image_transformer_forward.19} parent=0 // pred_fallthru
    _
  // Predicated region
  $region18: #{image_transformer_forward.19} parent=0 // pred_check
    _
  $region19: #{image_transformer_forward.19} parent=0 // pred_check_branch
    %20 = sbr.rel (0) target = $region21
  $region20: #{image_transformer_forward.19} parent=0 // pred_region
    _
  $region21: #{image_transformer_forward.19} parent=0 // pred_fallthru
    _
  // Predicated region
  $region22: #{image_transformer_forward.19} parent=0 // pred_check
    _
  $region23: #{image_transformer_forward.19} parent=0 // pred_check_branch
    %22 = sbr.rel (0) target = $region25
  $region24: #{image_transformer_forward.19} parent=0 // pred_region
    _
  $region25: #{image_transformer_forward.19} parent=0 // pred_fallthru
    _
  %p23 = scmp.eq.s32.totalorder 0, 0
  // Predicated region
  $region26: #{image_transformer_forward.19} parent=0 // pred_check
    %p24 = pneg %p23
  $region27: #{image_transformer_forward.19} parent=0 // pred_check_branch
    %26 = sbr.rel (%p24) target = $region29
  $region28: #{image_transformer_forward.19} parent=0 // pred_region
    %27 = vst [vmem:[#allocation2] sm:$0xff] 0.0
    %28 = vst [vmem:[#allocation2 + $0x8] sm:$0xff] 0.0
    %29 = vst [vmem:[#allocation2 + $0x10] sm:$0xff] 0.0
    %30 = vst [vmem:[#allocation2 + $0x18] sm:$0xff] 0.0
  $region29: #{image_transformer_forward.19} parent=0 // pred_fallthru
    _
  %v31 = vld [vmem:[#allocation2] sm:$0xff]
  %v32 = vld [vmem:[#allocation2 + $0x8] sm:$0xff]
  %v33 = vld [vmem:[#allocation2 + $0x10] sm:$0xff]
  %v34 = vld [vmem:[#allocation2 + $0x18] sm:$0xff]
  %v35 = vld [vmem:[%s0] sm:$0xff]
  %v36 = vld [vmem:[%s0 + $0x8] sm:$0xff]
  %v37 = vld [vmem:[%s0 + $0x10] sm:$0xff]
  %v38 = vld [vmem:[%s0 + $0x18] sm:$0xff]
  %v39 = vld [vmem:[%s1] sm:$0xff]
  %v40 = vld [vmem:[%s1 + $0x8] sm:$0xff]
  %v41 = vld [vmem:[%s1 + $0x10] sm:$0xff]
  %v42 = vld [vmem:[%s1 + $0x18] sm:$0xff]
  %v43 = vld [vmem:[%s1 + $0x20] sm:$0xff]
  %v44 = vld [vmem:[%s1 + $0x28] sm:$0xff]
  %v45 = vld [vmem:[%s1 + $0x30] sm:$0xff]
  %v46 = vld [vmem:[%s1 + $0x38] sm:$0xff]
  %v47 = vld [vmem:[%s1 + $0x40] sm:$0xff]
  %v48 = vld [vmem:[%s1 + $0x48] sm:$0xff]
  %v49 = vld [vmem:[%s1 + $0x50] sm:$0xff]
  %v50 = vld [vmem:[%s1 + $0x58] sm:$0xff]
  %v51 = vld [vmem:[%s1 + $0x60] sm:$0xff]
  %v52 = vld [vmem:[%s1 + $0x68] sm:$0xff]
  %v53 = vld [vmem:[%s1 + $0x70] sm:$0xff]
  %v54 = vld [vmem:[%s1 + $0x78] sm:$0xff]
  %v55 = vld [vmem:[%s1 + $0x80] sm:$0xff]
  %v56 = vld [vmem:[%s1 + $0x88] sm:$0xff]
  %v57 = vld [vmem:[%s1 + $0x90] sm:$0xff]
  %v58 = vld [vmem:[%s1 + $0x98] sm:$0xff]
  %v59 = vld [vmem:[%s1 + $0xa0] sm:$0xff]
  %v60 = vld [vmem:[%s1 + $0xa8] sm:$0xff]
  %v61 = vld [vmem:[%s1 + $0xb0] sm:$0xff]
  %v62 = vld [vmem:[%s1 + $0xb8] sm:$0xff]
  %v63 = vld [vmem:[%s1 + $0xc0] sm:$0xff]
  %v64 = vld [vmem:[%s1 + $0xc8] sm:$0xff]
  %v65 = vld [vmem:[%s1 + $0xd0] sm:$0xff]
  %v66 = vld [vmem:[%s1 + $0xd8] sm:$0xff]
  %v67 = vld [vmem:[%s1 + $0xe0] sm:$0xff]
  %v68 = vld [vmem:[%s1 + $0xe8] sm:$0xff]
  %v69 = vld [vmem:[%s1 + $0xf0] sm:$0xff]
  %v70 = vld [vmem:[%s1 + $0xf8] sm:$0xff]
  %v71 = vld [vmem:[%s1 + $0x100] sm:$0xff]
  %v72 = vld [vmem:[%s1 + $0x108] sm:$0xff]
  %v73 = vld [vmem:[%s1 + $0x110] sm:$0xff]
  %v74 = vld [vmem:[%s1 + $0x118] sm:$0xff]
  %v75 = vld [vmem:[%s1 + $0x120] sm:$0xff]
  %v76 = vld [vmem:[%s1 + $0x128] sm:$0xff]
  %v77 = vld [vmem:[%s1 + $0x130] sm:$0xff]
  %v78 = vld [vmem:[%s1 + $0x138] sm:$0xff]
  %v79 = vld [vmem:[%s1 + $0x140] sm:$0xff]
  %v80 = vld [vmem:[%s1 + $0x148] sm:$0xff]
  %v81 = vld [vmem:[%s1 + $0x150] sm:$0xff]
  %v82 = vld [vmem:[%s1 + $0x158] sm:$0xff]
  %v83 = vld [vmem:[%s1 + $0x160] sm:$0xff]
  %v84 = vld [vmem:[%s1 + $0x168] sm:$0xff]
  %v85 = vld [vmem:[%s1 + $0x170] sm:$0xff]
  %v86 = vld [vmem:[%s1 + $0x178] sm:$0xff]
  %v87 = vld [vmem:[%s1 + $0x180] sm:$0xff]
  %v88 = vld [vmem:[%s1 + $0x188] sm:$0xff]
  %v89 = vld [vmem:[%s1 + $0x190] sm:$0xff]
  %v90 = vld [vmem:[%s1 + $0x198] sm:$0xff]
  %v91 = vld [vmem:[%s1 + $0x1a0] sm:$0xff]
  %v92 = vld [vmem:[%s1 + $0x1a8] sm:$0xff]
  %v93 = vld [vmem:[%s1 + $0x1b0] sm:$0xff]
  %v94 = vld [vmem:[%s1 + $0x1b8] sm:$0xff]
  %v95 = vld [vmem:[%s1 + $0x1c0] sm:$0xff]
  %v96 = vld [vmem:[%s1 + $0x1c8] sm:$0xff]
  %v97 = vld [vmem:[%s1 + $0x1d0] sm:$0xff]
  %v98 = vld [vmem:[%s1 + $0x1d8] sm:$0xff]
  %v99 = vld [vmem:[%s1 + $0x1e0] sm:$0xff]
  %v100 = vld [vmem:[%s1 + $0x1e8] sm:$0xff]
  %v101 = vld [vmem:[%s1 + $0x1f0] sm:$0xff]
  %v102 = vld [vmem:[%s1 + $0x1f8] sm:$0xff]
  %v107 = vunpack.c.l.b16 %v35
  %v108 = vunpack.c.h.b16 %v35
  %v109 = vunpack.c.l.b16 %v36
  %v110 = vunpack.c.h.b16 %v36
  %v111 = vunpack.c.l.b16 %v37
  %v112 = vunpack.c.h.b16 %v37
  %v113 = vunpack.c.l.b16 %v38
  %v114 = vunpack.c.h.b16 %v38
  %v115 = vpack.c.b16 %v111, %v107
  %v116 = vpack.c.b16 %v112, %v108
  %v117 = vpack.c.b16 %v113, %v109
  %v118 = vpack.c.b16 %v114, %v110
  %v187 = vunpack.c.l.b16 %v39
  %v188 = vunpack.c.h.b16 %v39
  %v189 = vunpack.c.l.b16 %v40
  %v190 = vunpack.c.h.b16 %v40
  %v191 = vunpack.c.l.b16 %v41
  %v192 = vunpack.c.h.b16 %v41
  %v193 = vunpack.c.l.b16 %v42
  %v194 = vunpack.c.h.b16 %v42
  %v195 = vunpack.c.l.b16 %v43
  %v196 = vunpack.c.h.b16 %v43
  %v197 = vunpack.c.l.b16 %v44
  %v198 = vunpack.c.h.b16 %v44
  %v199 = vunpack.c.l.b16 %v45
  %v200 = vunpack.c.h.b16 %v45
  %v201 = vunpack.c.l.b16 %v46
  %v202 = vunpack.c.h.b16 %v46
  %v203 = vunpack.c.l.b16 %v47
  %v204 = vunpack.c.h.b16 %v47
  %v205 = vunpack.c.l.b16 %v48
  %v206 = vunpack.c.h.b16 %v48
  %v207 = vunpack.c.l.b16 %v49
  %v208 = vunpack.c.h.b16 %v49
  %v209 = vunpack.c.l.b16 %v50
  %v210 = vunpack.c.h.b16 %v50
  %v211 = vunpack.c.l.b16 %v51
  %v212 = vunpack.c.h.b16 %v51
  %v213 = vunpack.c.l.b16 %v52
  %v214 = vunpack.c.h.b16 %v52
  %v215 = vunpack.c.l.b16 %v53
  %v216 = vunpack.c.h.b16 %v53
  %v217 = vunpack.c.l.b16 %v54
  %v218 = vunpack.c.h.b16 %v54
  %v219 = vunpack.c.l.b16 %v55
  %v220 = vunpack.c.h.b16 %v55
  %v221 = vunpack.c.l.b16 %v56
  %v222 = vunpack.c.h.b16 %v56
  %v223 = vunpack.c.l.b16 %v57
  %v224 = vunpack.c.h.b16 %v57
  %v225 = vunpack.c.l.b16 %v58
  %v226 = vunpack.c.h.b16 %v58
  %v227 = vunpack.c.l.b16 %v59
  %v228 = vunpack.c.h.b16 %v59
  %v229 = vunpack.c.l.b16 %v60
  %v230 = vunpack.c.h.b16 %v60
  %v231 = vunpack.c.l.b16 %v61
  %v232 = vunpack.c.h.b16 %v61
  %v233 = vunpack.c.l.b16 %v62
  %v234 = vunpack.c.h.b16 %v62
  %v235 = vunpack.c.l.b16 %v63
  %v236 = vunpack.c.h.b16 %v63
  %v237 = vunpack.c.l.b16 %v64
  %v238 = vunpack.c.h.b16 %v64
  %v239 = vunpack.c.l.b16 %v65
  %v240 = vunpack.c.h.b16 %v65
  %v241 = vunpack.c.l.b16 %v66
  %v242 = vunpack.c.h.b16 %v66
  %v243 = vunpack.c.l.b16 %v67
  %v244 = vunpack.c.h.b16 %v67
  %v245 = vunpack.c.l.b16 %v68
  %v246 = vunpack.c.h.b16 %v68
  %v247 = vunpack.c.l.b16 %v69
  %v248 = vunpack.c.h.b16 %v69
  %v249 = vunpack.c.l.b16 %v70
  %v250 = vunpack.c.h.b16 %v70
  %v251 = vunpack.c.l.b16 %v71
  %v252 = vunpack.c.h.b16 %v71
  %v253 = vunpack.c.l.b16 %v72
  %v254 = vunpack.c.h.b16 %v72
  %v255 = vunpack.c.l.b16 %v73
  %v256 = vunpack.c.h.b16 %v73
  %v257 = vunpack.c.l.b16 %v74
  %v258 = vunpack.c.h.b16 %v74
  %v259 = vunpack.c.l.b16 %v75
  %v260 = vunpack.c.h.b16 %v75
  %v261 = vunpack.c.l.b16 %v76
  %v262 = vunpack.c.h.b16 %v76
  %v263 = vunpack.c.l.b16 %v77
  %v264 = vunpack.c.h.b16 %v77
  %v265 = vunpack.c.l.b16 %v78
  %v266 = vunpack.c.h.b16 %v78
  %v267 = vunpack.c.l.b16 %v79
  %v268 = vunpack.c.h.b16 %v79
  %v269 = vunpack.c.l.b16 %v80
  %v270 = vunpack.c.h.b16 %v80
  %v271 = vunpack.c.l.b16 %v81
  %v272 = vunpack.c.h.b16 %v81
  %v273 = vunpack.c.l.b16 %v82
  %v274 = vunpack.c.h.b16 %v82
  %v275 = vunpack.c.l.b16 %v83
  %v276 = vunpack.c.h.b16 %v83
  %v277 = vunpack.c.l.b16 %v84
  %v278 = vunpack.c.h.b16 %v84
  %v279 = vunpack.c.l.b16 %v85
  %v280 = vunpack.c.h.b16 %v85
  %v281 = vunpack.c.l.b16 %v86
  %v282 = vunpack.c.h.b16 %v86
  %v283 = vunpack.c.l.b16 %v87
  %v284 = vunpack.c.h.b16 %v87
  %v285 = vunpack.c.l.b16 %v88
  %v286 = vunpack.c.h.b16 %v88
  %v287 = vunpack.c.l.b16 %v89
  %v288 = vunpack.c.h.b16 %v89
  %v289 = vunpack.c.l.b16 %v90
  %v290 = vunpack.c.h.b16 %v90
  %v291 = vunpack.c.l.b16 %v91
  %v292 = vunpack.c.h.b16 %v91
  %v293 = vunpack.c.l.b16 %v92
  %v294 = vunpack.c.h.b16 %v92
  %v295 = vunpack.c.l.b16 %v93
  %v296 = vunpack.c.h.b16 %v93
  %v297 = vunpack.c.l.b16 %v94
  %v298 = vunpack.c.h.b16 %v94
  %v299 = vunpack.c.l.b16 %v95
  %v300 = vunpack.c.h.b16 %v95
  %v301 = vunpack.c.l.b16 %v96
  %v302 = vunpack.c.h.b16 %v96
  %v303 = vunpack.c.l.b16 %v97
  %v304 = vunpack.c.h.b16 %v97
  %v305 = vunpack.c.l.b16 %v98
  %v306 = vunpack.c.h.b16 %v98
  %v307 = vunpack.c.l.b16 %v99
  %v308 = vunpack.c.h.b16 %v99
  %v309 = vunpack.c.l.b16 %v100
  %v310 = vunpack.c.h.b16 %v100
  %v311 = vunpack.c.l.b16 %v101
  %v312 = vunpack.c.h.b16 %v101
  %v313 = vunpack.c.l.b16 %v102
  %v314 = vunpack.c.h.b16 %v102
  %v315 = vpack.c.b16 %v189, %v187
  %v316 = vpack.c.b16 %v190, %v188
  %v317 = vpack.c.b16 %v193, %v191
  %v318 = vpack.c.b16 %v194, %v192
  %v319 = vpack.c.b16 %v197, %v195
  %v320 = vpack.c.b16 %v198, %v196
  %v321 = vpack.c.b16 %v201, %v199
  %v322 = vpack.c.b16 %v202, %v200
  %v323 = vpack.c.b16 %v205, %v203
  %v324 = vpack.c.b16 %v206, %v204
  %v325 = vpack.c.b16 %v209, %v207
  %v326 = vpack.c.b16 %v210, %v208
  %v327 = vpack.c.b16 %v213, %v211
  %v328 = vpack.c.b16 %v214, %v212
  %v329 = vpack.c.b16 %v217, %v215
  %v330 = vpack.c.b16 %v218, %v216
  %v331 = vpack.c.b16 %v221, %v219
  %v332 = vpack.c.b16 %v222, %v220
  %v333 = vpack.c.b16 %v225, %v223
  %v334 = vpack.c.b16 %v226, %v224
  %v335 = vpack.c.b16 %v229, %v227
  %v336 = vpack.c.b16 %v230, %v228
  %v337 = vpack.c.b16 %v233, %v231
  %v338 = vpack.c.b16 %v234, %v232
  %v339 = vpack.c.b16 %v237, %v235
  %v340 = vpack.c.b16 %v238, %v236
  %v341 = vpack.c.b16 %v241, %v239
  %v342 = vpack.c.b16 %v242, %v240
  %v343 = vpack.c.b16 %v245, %v243
  %v344 = vpack.c.b16 %v246, %v244
  %v345 = vpack.c.b16 %v249, %v247
  %v346 = vpack.c.b16 %v250, %v248
  %v347 = vpack.c.b16 %v253, %v251
  %v348 = vpack.c.b16 %v254, %v252
  %v349 = vpack.c.b16 %v257, %v255
  %v350 = vpack.c.b16 %v258, %v256
  %v351 = vpack.c.b16 %v261, %v259
  %v352 = vpack.c.b16 %v262, %v260
  %v353 = vpack.c.b16 %v265, %v263
  %v354 = vpack.c.b16 %v266, %v264
  %v355 = vpack.c.b16 %v269, %v267
  %v356 = vpack.c.b16 %v270, %v268
  %v357 = vpack.c.b16 %v273, %v271
  %v358 = vpack.c.b16 %v274, %v272
  %v359 = vpack.c.b16 %v277, %v275
  %v360 = vpack.c.b16 %v278, %v276
  %v361 = vpack.c.b16 %v281, %v279
  %v362 = vpack.c.b16 %v282, %v280
  %v363 = vpack.c.b16 %v285, %v283
  %v364 = vpack.c.b16 %v286, %v284
  %v365 = vpack.c.b16 %v289, %v287
  %v366 = vpack.c.b16 %v290, %v288
  %v367 = vpack.c.b16 %v293, %v291
  %v368 = vpack.c.b16 %v294, %v292
  %v369 = vpack.c.b16 %v297, %v295
  %v370 = vpack.c.b16 %v298, %v296
  %v371 = vpack.c.b16 %v301, %v299
  %v372 = vpack.c.b16 %v302, %v300
  %v373 = vpack.c.b16 %v305, %v303
  %v374 = vpack.c.b16 %v306, %v304
  %v375 = vpack.c.b16 %v309, %v307
  %v376 = vpack.c.b16 %v310, %v308
  %v377 = vpack.c.b16 %v313, %v311
  %v378 = vpack.c.b16 %v314, %v312
  %443 = vmatprep.subr.bf16.mxu0 %v330
  %444 = vmatpush1.bf16.msra.mxu0 %v329
  %445 = vmatprep.subr.bf16.mxu0 %v328
  %446 = vmatpush1.bf16.msra.mxu0 %v327
  %447 = vmatprep.subr.bf16.mxu0 %v326
  %448 = vmatpush1.bf16.msra.mxu0 %v325
  %449 = vmatprep.subr.bf16.mxu0 %v324
  %450 = vmatpush1.bf16.msra.mxu0 %v323
  %451 = vmatprep.subr.bf16.mxu0 %v322
  %452 = vmatpush1.bf16.msra.mxu0 %v321
  %453 = vmatprep.subr.bf16.mxu0 %v320
  %454 = vmatpush1.bf16.msra.mxu0 %v319
  %455 = vmatprep.subr.bf16.mxu0 %v318
  %456 = vmatpush1.bf16.msra.mxu0 %v317
  %457 = vmatprep.subr.bf16.mxu0 %v316
  %458 = vmatpush1.bf16.msra.mxu0 %v315
  %459 = vmatprep.subr.bf16.mxu0 %v346
  %460 = vmatpush2.bf16.msra.mxu0 %v345
  %461 = vmatprep.subr.bf16.mxu0 %v344
  %462 = vmatpush2.bf16.msra.mxu0 %v343
  %463 = vmatprep.subr.bf16.mxu0 %v342
  %464 = vmatpush2.bf16.msra.mxu0 %v341
  %465 = vmatprep.subr.bf16.mxu0 %v340
  %466 = vmatpush2.bf16.msra.mxu0 %v339
  %467 = vmatprep.subr.bf16.mxu0 %v338
  %468 = vmatpush2.bf16.msra.mxu0 %v337
  %469 = vmatprep.subr.bf16.mxu0 %v336
  %470 = vmatpush2.bf16.msra.mxu0 %v335
  %471 = vmatprep.subr.bf16.mxu0 %v334
  %472 = vmatpush2.bf16.msra.mxu0 %v333
  %473 = vmatprep.subr.bf16.mxu0 %v332
  %474 = vmatpush2.bf16.msra.mxu0 %v331
  %475 = vmatprep.mubr.bf16.mxu0 %v116
  %476 = vmatmul.mubr.bf16.gmra.mxu0 %v115
  %v477 = vpop.f32.mrf.mxu0
  %v478 = vadd.f32 0.0, %v477
  %v479 = vpop.f32.mrf.mxu0
  %v480 = vadd.f32 0.0, %v479
  %v481 = vpop.f32.mrf.mxu0
  %v482 = vadd.f32 0.0, %v481
  %v483 = vpop.f32.mrf.mxu0
  %v484 = vadd.f32 0.0, %v483
  %485 = vdwg.mxu0
  %486 = vmatprep.subr.bf16.mxu0 %v362
  %487 = vmatpush1.bf16.msra.mxu0 %v361
  %488 = vmatprep.subr.bf16.mxu0 %v360
  %489 = vmatpush1.bf16.msra.mxu0 %v359
  %490 = vmatprep.subr.bf16.mxu0 %v358
  %491 = vmatpush1.bf16.msra.mxu0 %v357
  %492 = vmatprep.subr.bf16.mxu0 %v356
  %493 = vmatpush1.bf16.msra.mxu0 %v355
  %494 = vmatprep.subr.bf16.mxu0 %v354
  %495 = vmatpush1.bf16.msra.mxu0 %v353
  %496 = vmatprep.subr.bf16.mxu0 %v352
  %497 = vmatpush1.bf16.msra.mxu0 %v351
  %498 = vmatprep.subr.bf16.mxu0 %v350
  %499 = vmatpush1.bf16.msra.mxu0 %v349
  %500 = vmatprep.subr.bf16.mxu0 %v348
  %501 = vmatpush1.bf16.msra.mxu0 %v347
  %502 = vmatprep.subr.bf16.mxu0 %v378
  %503 = vmatpush2.bf16.msra.mxu0 %v377
  %504 = vmatprep.subr.bf16.mxu0 %v376
  %505 = vmatpush2.bf16.msra.mxu0 %v375
  %506 = vmatprep.subr.bf16.mxu0 %v374
  %507 = vmatpush2.bf16.msra.mxu0 %v373
  %508 = vmatprep.subr.bf16.mxu0 %v372
  %509 = vmatpush2.bf16.msra.mxu0 %v371
  %510 = vmatprep.subr.bf16.mxu0 %v370
  %511 = vmatpush2.bf16.msra.mxu0 %v369
  %512 = vmatprep.subr.bf16.mxu0 %v368
  %513 = vmatpush2.bf16.msra.mxu0 %v367
  %514 = vmatprep.subr.bf16.mxu0 %v366
  %515 = vmatpush2.bf16.msra.mxu0 %v365
  %516 = vmatprep.subr.bf16.mxu0 %v364
  %517 = vmatpush2.bf16.msra.mxu0 %v363
  %518 = vmatprep.mubr.bf16.mxu0 %v118
  %519 = vmatmul.mubr.bf16.gmra.mxu0 %v117
  %v520 = vpop.f32.mrf.mxu0
  %v521 = vadd.f32 %v478, %v520
  %v522 = vpop.f32.mrf.mxu0
  %v523 = vadd.f32 %v480, %v522
  %v524 = vpop.f32.mrf.mxu0
  %v525 = vadd.f32 %v482, %v524
  %v526 = vpop.f32.mrf.mxu0
  %v527 = vadd.f32 %v484, %v526
  %528 = vdwg.mxu0
  %v529 = vadd.f32 %v31, %v521
  %v530 = vadd.f32 %v32, %v523
  %v531 = vadd.f32 %v33, %v525
  %v532 = vadd.f32 %v34, %v527
  %533 = vst [vmem:[#allocation2] sm:$0xff] %v529
  %534 = vst [vmem:[#allocation2 + $0x8] sm:$0xff] %v530
  %535 = vst [vmem:[#allocation2 + $0x10] sm:$0xff] %v531
  %536 = vst [vmem:[#allocation2 + $0x18] sm:$0xff] %v532
  // Predicated region
  $region30: #{image_transformer_forward.19} parent=0 // pred_check
    %p537 = pneg %p23
  $region31: #{image_transformer_forward.19} parent=0 // pred_check_branch
    %539 = sbr.rel (%p537) target = $region33
  $region32: #{image_transformer_forward.19} parent=0 // pred_region
    %v540 = vld [vmem:[#allocation2] sm:$0xff]
    %v541 = vld [vmem:[#allocation2 + $0x8] sm:$0xff]
    %v542 = vld [vmem:[#allocation2 + $0x10] sm:$0xff]
    %v543 = vld [vmem:[#allocation2 + $0x18] sm:$0xff]
    %v544 = vld [vmem:[%s2] sm:$0x3]
    %v546 = vlaneseq
    %v547 = vshrl.u32 %v546, 7
    %v548 = vsub.s32 0, %v547
    %v549 = vrot.slane %v544, %v548
    %v550 = vlaneseq
    %v551 = vshrl.u32 %v550, 7
    %v552 = vsub.s32 1, %v551
    %v553 = vrot.slane %v544, %v552
    %v556 = vadd.f32 %v540, %v549
    %v557 = vadd.f32 %v541, %v553
    %v558 = vadd.f32 %v542, %v549
    %v559 = vadd.f32 %v543, %v553
    %v560 = vld [vmem:[%s3] sm:$0xff]
    %v561 = vld [vmem:[%s3 + $0x8] sm:$0xff]
    %v562 = vunpack.c.l.bf16 %v560
    %v563 = vunpack.c.h.bf16 %v560
    %v564 = vunpack.c.l.bf16 %v561
    %v565 = vunpack.c.h.bf16 %v561
    %v566 = vadd.f32 %v556, %v562
    %v567 = vadd.f32 %v557, %v563
    %v568 = vadd.f32 %v558, %v564
    %v569 = vadd.f32 %v559, %v565
    %v570 = vadd.f32 %v566, %v567
    %571 = vadd.xlane.f32.xlu0 %v570
    %v572 = vpop.xlane.xlu0 %571
    %v573 = vadd.f32 %v568, %v569
    %574 = vadd.xlane.f32.xlu0 %v573
    %v575 = vpop.xlane.xlu0 %574
    %v576 = vrcp.pop 256.0
    %v577 = vmul.f32 %v572, %v576
    %v578 = vmul.f32 %v575, %v576
    %v579 = vsub.f32 %v566, %v577
    %v580 = vsub.f32 %v567, %v577
    %v581 = vsub.f32 %v568, %v578
    %v582 = vsub.f32 %v569, %v578
    %v583 = vmul.f32 %v579, %v579
    %v584 = vmul.f32 %v580, %v580
    %v585 = vmul.f32 %v581, %v581
    %v586 = vmul.f32 %v582, %v582
    %v587 = vadd.f32 %v583, %v584
    %588 = vadd.xlane.f32.xlu0 %v587
    %v589 = vpop.xlane.xlu0 %588
    %v590 = vadd.f32 %v585, %v586
    %591 = vadd.xlane.f32.xlu0 %v590
    %v592 = vpop.xlane.xlu0 %591
    %v593 = vmul.f32 %v589, %v576
    %v594 = vmul.f32 %v592, %v576
    %v595 = vadd.f32 %v593, 1e-05
    %v596 = vadd.f32 %v594, 1e-05
    %v597 = vrsqrt.pop %v595
    %v598 = vrsqrt.pop %v596
    %v599 = vmul.f32 %v579, %v597
    %v600 = vmul.f32 %v580, %v597
    %v601 = vmul.f32 %v581, %v598
    %v602 = vmul.f32 %v582, %v598
    %v603 = vld [vmem:[%s4] sm:$0x3]
    %v605 = vlaneseq
    %v606 = vshrl.u32 %v605, 7
    %v607 = vsub.s32 0, %v606
    %v608 = vrot.slane %v603, %v607
    %v609 = vlaneseq
    %v610 = vshrl.u32 %v609, 7
    %v611 = vsub.s32 1, %v610
    %v612 = vrot.slane %v603, %v611
    %v615 = vmul.f32 %v599, %v608
    %v616 = vmul.f32 %v600, %v612
    %v617 = vmul.f32 %v601, %v608
    %v618 = vmul.f32 %v602, %v612
    %v619 = vld [vmem:[%s5] sm:$0x3]
    %v621 = vlaneseq
    %v622 = vshrl.u32 %v621, 7
    %v623 = vsub.s32 0, %v622
    %v624 = vrot.slane %v619, %v623
    %v625 = vlaneseq
    %v626 = vshrl.u32 %v625, 7
    %v627 = vsub.s32 1, %v626
    %v628 = vrot.slane %v619, %v627
    %v631 = vadd.f32 %v615, %v624
    %v632 = vadd.f32 %v616, %v628
    %v633 = vadd.f32 %v617, %v624
    %v634 = vadd.f32 %v618, %v628
    %v635 = vpack.c.bf16 %v633, %v631
    %v636 = vpack.c.bf16 %v634, %v632
    %v639 = vunpack.c.l.b16 %v635
    %v640 = vunpack.c.l.b16 %v636
    %v641 = vunpack.c.h.b16 %v635
    %v642 = vunpack.c.h.b16 %v636
    %v643 = vpack.c.b16 %v640, %v639
    %v644 = vpack.c.b16 %v642, %v641
    %647 = vst [vmem:[%s6] sm:$0xff] %v643
    %648 = vst [vmem:[%s6 + $0x8] sm:$0xff] %v644
  $region33: #{image_transformer_forward.19} parent=0 // pred_fallthru
    _
  // Predicated region
  $region34: #{image_transformer_forward.19} parent=0 // pred_check
    _
  $region35: #{image_transformer_forward.19} parent=0 // pred_check_branch
    %650 = sbr.rel (0) target = $region37
  $region36: #{image_transformer_forward.19} parent=0 // pred_region
    _
  $region37: #{image_transformer_forward.19} parent=0 // pred_fallthru
    _
  // Predicated region
  $region38: #{image_transformer_forward.19} parent=0 // pred_check
    _
  $region39: #{image_transformer_forward.19} parent=0 // pred_check_branch
    %652 = sbr.rel (0) target = $region41
  $region40: #{image_transformer_forward.19} parent=0 // pred_region
    _
  $region41: #{image_transformer_forward.19} parent=0 // pred_fallthru
    _

// kernel: image_transformer_forward.25
$region0: #{image_transformer_forward.25}
  #allocation0 [shape = 'u32[]', space=smem, size = 0x4, offset = 0x4, fixed_abs, tag = 'smem constant byte address 0x4 - core index']
  #allocation1 [shape = 'u32[144,128]{1,0:T(1,128)}', space=vmem, size = 0x12000, scoped, tag = 'internal scratch']
  #allocation2 [shape = 'f32[2,256]{1,0:T(2,128)}', space=vmem, size = 0x800, scoped, tag = 'scratch operand']
  %s0 = inlined_call_operand.vmem [shape: bf16[2,8,256], index: 0, kind: input, shape index: {}]
  %s1 = inlined_call_operand.vmem [shape: bf16[2,256], index: 1, kind: output, shape index: {}]
  %s2 = sld [smem:[#allocation0]]
  $region22: #{image_transformer_forward.25} parent=0
    _
  %s4 = ssub.s32 1, %s2
  %s5 = scalar_select 0, %s4, %s2
  // Predicated region
  $region2: #{image_transformer_forward.25} parent=0 // pred_check
    _
  $region3: #{image_transformer_forward.25} parent=0 // pred_check_branch
    %7 = sbr.rel (0) target = $region5
  $region4: #{image_transformer_forward.25} parent=0 // pred_region
    _
  $region5: #{image_transformer_forward.25} parent=0 // pred_fallthru
    _
  %p8 = scmp.eq.s32.totalorder 0, 0
  // Predicated region
  $region6: #{image_transformer_forward.25} parent=0 // pred_check
    %p9 = pneg %p8
  $region7: #{image_transformer_forward.25} parent=0 // pred_check_branch
    %11 = sbr.rel (%p9) target = $region9
  $region8: #{image_transformer_forward.25} parent=0 // pred_region
    %12 = vst [vmem:[#allocation2] sm:$0xf] 0.0
  $region9: #{image_transformer_forward.25} parent=0 // pred_fallthru
    _
  %v13 = vld [vmem:[#allocation2] sm:$0xf]
  %v14 = vld [vmem:[%s0] sm:$0xff]
  %v15 = vld [vmem:[%s0 + $0x8] sm:$0xff]
  %v16 = vunpack.c.l.bf16 %v14
  %v17 = vunpack.c.h.bf16 %v14
  %v18 = vunpack.c.l.bf16 %v15
  %v19 = vunpack.c.h.bf16 %v15
  %v20 = vrot.slane %v16, 4
  %v21 = vadd.f32 %v16, %v20
  %v22 = vrot.slane %v21, 2
  %v23 = vadd.f32 %v21, %v22
  %v24 = vrot.slane %v23, 1
  %v25 = vadd.f32 %v23, %v24
  %v26 = vrot.slane %v17, 4
  %v27 = vadd.f32 %v17, %v26
  %v28 = vrot.slane %v27, 2
  %v29 = vadd.f32 %v27, %v28
  %v30 = vrot.slane %v29, 1
  %v31 = vadd.f32 %v29, %v30
  %v32 = vrot.slane %v18, 4
  %v33 = vadd.f32 %v18, %v32
  %v34 = vrot.slane %v33, 2
  %v35 = vadd.f32 %v33, %v34
  %v36 = vrot.slane %v35, 1
  %v37 = vadd.f32 %v35, %v36
  %v38 = vrot.slane %v19, 4
  %v39 = vadd.f32 %v19, %v38
  %v40 = vrot.slane %v39, 2
  %v41 = vadd.f32 %v39, %v40
  %v42 = vrot.slane %v41, 1
  %v43 = vadd.f32 %v41, %v42
  %v48 = vcombine.low %v25, %v31
  %v50 = vunpack.c.l.s4 1983009808
  %v51 = vunpack.c.0.s8 %v50
  %v52 = vlaneseq
  %v53 = vshrl.u32 %v52, 7
  %v54 = vsub.s32 %v51, %v53
  %v55 = vrot.slane %v48, %v54
  %v56 = vcombine.low %v37, %v43
  %v58 = vunpack.c.l.s4 1983009808
  %v59 = vunpack.c.0.s8 %v58
  %v60 = vlaneseq
  %v61 = vshrl.u32 %v60, 7
  %v62 = vsub.s32 %v59, %v61
  %v63 = vrot.slane %v56, %v62
  %vm64 = vcmask 1044484
  %v65 = vsel %vm64, %v55, %v55
  %vm66 = vcmask 1046534
  %v67 = vsel %vm66, %v55, %v65
  %v68 = vrot.slane %v63, 7
  %vm69 = vcmask 1041409
  %v70 = vsel %vm69, %v68, %v67
  %vm71 = vcmask 1043459
  %v72 = vsel %vm71, %v68, %v70
  %vm73 = vcmask 1045509
  %v74 = vsel %vm73, %v68, %v72
  %vm75 = vcmask 1047559
  %v76 = vsel %vm75, %v68, %v74
  %v78 = vadd.f32 %v13, %v76
  %79 = vst [vmem:[#allocation2] sm:$0xf] %v78
  // Predicated region
  $region10: #{image_transformer_forward.25} parent=0 // pred_check
    %p80 = pneg %p8
  $region11: #{image_transformer_forward.25} parent=0 // pred_check_branch
    %82 = sbr.rel (%p80) target = $region13
  $region12: #{image_transformer_forward.25} parent=0 // pred_region
    %v83 = vld [vmem:[#allocation2] sm:$0xf]
    %v84 = vmul.f32 %v83, 0.125
    %v87 = vunpack.c.l.s4 1983009808
    %v88 = vunpack.c.0.s8 %v87
    %v89 = vlaneseq
    %v90 = vshrl.u32 %v89, 7
    %v91 = vsub.s32 %v88, %v90
    %v92 = vrot.slane %v84, %v91
    %v93 = vcombine.high %v92, %v92
    %v96 = vpack.c.bf16 %v92, %v92
    %v97 = vpack.c.bf16 %v93, %v93
    %v100 = vcombine.low %v96, %v97
    %v102 = vunpack.c.l.s4 1966171168
    %v103 = vunpack.c.0.s8 %v102
    %v104 = vlaneseq
    %v105 = vshrl.u32 %v104, 7
    %v106 = vsub.s32 %v103, %v105
    %v107 = vrot.slane %v100, %v106
    %v109 = vunpack.c.l.s4 1966171168
    %v110 = vunpack.c.0.s8 %v109
    %v111 = vlaneseq
    %v112 = vshrl.u32 %v111, 7
    %v113 = vsub.s32 %v110, %v112
    %v114 = vrot.slane %v107, %v113
    %116 = vst [vmem:[%s1] sm:$0x3] %v114
  $region13: #{image_transformer_forward.25} parent=0 // pred_fallthru
    _
  // Predicated region
  $region14: #{image_transformer_forward.25} parent=0 // pred_check
    _
  $region15: #{image_transformer_forward.25} parent=0 // pred_check_branch
    %118 = sbr.rel (0) target = $region17
  $region16: #{image_transformer_forward.25} parent=0 // pred_region
    _
  $region17: #{image_transformer_forward.25} parent=0 // pred_fallthru
    _
  // Predicated region
  $region18: #{image_transformer_forward.25} parent=0 // pred_check
    _
  $region19: #{image_transformer_forward.25} parent=0 // pred_check_branch
    %120 = sbr.rel (0) target = $region21
  $region20: #{image_transformer_forward.25} parent=0 // pred_region
    _
  $region21: #{image_transformer_forward.25} parent=0 // pred_fallthru
    _

// kernel: image_transformer_forward.26
$region0: #{image_transformer_forward.26}
  #allocation0 [shape = 'u32[]', space=smem, size = 0x4, offset = 0x4, fixed_abs, tag = 'smem constant byte address 0x4 - core index']
  #allocation1 [shape = 'u32[144,128]{1,0:T(1,128)}', space=vmem, size = 0x12000, scoped, tag = 'internal scratch']
  #allocation2 [shape = 'f32[2,512]{1,0:T(2,128)}', space=vmem, size = 0x1000, scoped, tag = 'scratch operand']
  %s0 = inlined_call_operand.vmem [shape: bf16[2,256], index: 0, kind: input, shape index: {}]
  %s1 = inlined_call_operand.vmem [shape: bf16[256,512], index: 1, kind: input, shape index: {}]
  %s2 = inlined_call_operand.vmem [shape: f32[1,512], index: 2, kind: input, shape index: {}]
  %s3 = inlined_call_operand.vmem [shape: bf16[2,512], index: 3, kind: output, shape index: {}]
  %s4 = sld [smem:[#allocation0]]
  $region30: #{image_transformer_forward.26} parent=0
    _
  %s6 = ssub.s32 1, %s4
  %s7 = scalar_select 0, %s6, %s4
  // Predicated region
  $region2: #{image_transformer_forward.26} parent=0 // pred_check
    _
  $region3: #{image_transformer_forward.26} parent=0 // pred_check_branch
    %9 = sbr.rel (0) target = $region5
  $region4: #{image_transformer_forward.26} parent=0 // pred_region
    _
  $region5: #{image_transformer_forward.26} parent=0 // pred_fallthru
    _
  // Predicated region
  $region6: #{image_transformer_forward.26} parent=0 // pred_check
    _
  $region7: #{image_transformer_forward.26} parent=0 // pred_check_branch
    %11 = sbr.rel (0) target = $region9
  $region8: #{image_transformer_forward.26} parent=0 // pred_region
    _
  $region9: #{image_transformer_forward.26} parent=0 // pred_fallthru
    _
  // Predicated region
  $region10: #{image_transformer_forward.26} parent=0 // pred_check
    _
  $region11: #{image_transformer_forward.26} parent=0 // pred_check_branch
    %13 = sbr.rel (0) target = $region13
  $region12: #{image_transformer_forward.26} parent=0 // pred_region
    _
  $region13: #{image_transformer_forward.26} parent=0 // pred_fallthru
    _
  %p14 = scmp.eq.s32.totalorder 0, 0
  // Predicated region
  $region14: #{image_transformer_forward.26} parent=0 // pred_check
    %p15 = pneg %p14
  $region15: #{image_transformer_forward.26} parent=0 // pred_check_branch
    %17 = sbr.rel (%p15) target = $region17
  $region16: #{image_transformer_forward.26} parent=0 // pred_region
    %18 = vst [vmem:[#allocation2] sm:$0xff] 0.0
  $region17: #{image_transformer_forward.26} parent=0 // pred_fallthru
    _
  %v19 = vld [vmem:[%s0] sm:$0x3]
  %v20 = vld [vmem:[#allocation2] sm:$0xff]
  %v21 = vld [vmem:[%s1] sm:$0xff]
  %v22 = vld [vmem:[%s1 + $0x8] sm:$0xff]
  %v23 = vld [vmem:[%s1 + $0x10] sm:$0xff]
  %v24 = vld [vmem:[%s1 + $0x18] sm:$0xff]
  %v25 = vld [vmem:[%s1 + $0x20] sm:$0xff]
  %v26 = vld [vmem:[%s1 + $0x28] sm:$0xff]
  %v27 = vld [vmem:[%s1 + $0x30] sm:$0xff]
  %v28 = vld [vmem:[%s1 + $0x38] sm:$0xff]
  %v29 = vld [vmem:[%s1 + $0x40] sm:$0xff]
  %v30 = vld [vmem:[%s1 + $0x48] sm:$0xff]
  %v31 = vld [vmem:[%s1 + $0x50] sm:$0xff]
  %v32 = vld [vmem:[%s1 + $0x58] sm:$0xff]
  %v33 = vld [vmem:[%s1 + $0x60] sm:$0xff]
  %v34 = vld [vmem:[%s1 + $0x68] sm:$0xff]
  %v35 = vld [vmem:[%s1 + $0x70] sm:$0xff]
  %v36 = vld [vmem:[%s1 + $0x78] sm:$0xff]
  %v37 = vld [vmem:[%s1 + $0x80] sm:$0xff]
  %v38 = vld [vmem:[%s1 + $0x88] sm:$0xff]
  %v39 = vld [vmem:[%s1 + $0x90] sm:$0xff]
  %v40 = vld [vmem:[%s1 + $0x98] sm:$0xff]
  %v41 = vld [vmem:[%s1 + $0xa0] sm:$0xff]
  %v42 = vld [vmem:[%s1 + $0xa8] sm:$0xff]
  %v43 = vld [vmem:[%s1 + $0xb0] sm:$0xff]
  %v44 = vld [vmem:[%s1 + $0xb8] sm:$0xff]
  %v45 = vld [vmem:[%s1 + $0xc0] sm:$0xff]
  %v46 = vld [vmem:[%s1 + $0xc8] sm:$0xff]
  %v47 = vld [vmem:[%s1 + $0xd0] sm:$0xff]
  %v48 = vld [vmem:[%s1 + $0xd8] sm:$0xff]
  %v49 = vld [vmem:[%s1 + $0xe0] sm:$0xff]
  %v50 = vld [vmem:[%s1 + $0xe8] sm:$0xff]
  %v51 = vld [vmem:[%s1 + $0xf0] sm:$0xff]
  %v52 = vld [vmem:[%s1 + $0xf8] sm:$0xff]
  %v53 = vld [vmem:[%s1 + $0x100] sm:$0xff]
  %v54 = vld [vmem:[%s1 + $0x108] sm:$0xff]
  %v55 = vld [vmem:[%s1 + $0x110] sm:$0xff]
  %v56 = vld [vmem:[%s1 + $0x118] sm:$0xff]
  %v57 = vld [vmem:[%s1 + $0x120] sm:$0xff]
  %v58 = vld [vmem:[%s1 + $0x128] sm:$0xff]
  %v59 = vld [vmem:[%s1 + $0x130] sm:$0xff]
  %v60 = vld [vmem:[%s1 + $0x138] sm:$0xff]
  %v61 = vld [vmem:[%s1 + $0x140] sm:$0xff]
  %v62 = vld [vmem:[%s1 + $0x148] sm:$0xff]
  %v63 = vld [vmem:[%s1 + $0x150] sm:$0xff]
  %v64 = vld [vmem:[%s1 + $0x158] sm:$0xff]
  %v65 = vld [vmem:[%s1 + $0x160] sm:$0xff]
  %v66 = vld [vmem:[%s1 + $0x168] sm:$0xff]
  %v67 = vld [vmem:[%s1 + $0x170] sm:$0xff]
  %v68 = vld [vmem:[%s1 + $0x178] sm:$0xff]
  %v69 = vld [vmem:[%s1 + $0x180] sm:$0xff]
  %v70 = vld [vmem:[%s1 + $0x188] sm:$0xff]
  %v71 = vld [vmem:[%s1 + $0x190] sm:$0xff]
  %v72 = vld [vmem:[%s1 + $0x198] sm:$0xff]
  %v73 = vld [vmem:[%s1 + $0x1a0] sm:$0xff]
  %v74 = vld [vmem:[%s1 + $0x1a8] sm:$0xff]
  %v75 = vld [vmem:[%s1 + $0x1b0] sm:$0xff]
  %v76 = vld [vmem:[%s1 + $0x1b8] sm:$0xff]
  %v77 = vld [vmem:[%s1 + $0x1c0] sm:$0xff]
  %v78 = vld [vmem:[%s1 + $0x1c8] sm:$0xff]
  %v79 = vld [vmem:[%s1 + $0x1d0] sm:$0xff]
  %v80 = vld [vmem:[%s1 + $0x1d8] sm:$0xff]
  %v81 = vld [vmem:[%s1 + $0x1e0] sm:$0xff]
  %v82 = vld [vmem:[%s1 + $0x1e8] sm:$0xff]
  %v83 = vld [vmem:[%s1 + $0x1f0] sm:$0xff]
  %v84 = vld [vmem:[%s1 + $0x1f8] sm:$0xff]
  %v87 = vunpack.c.l.s4 1966171168
  %v88 = vunpack.c.0.s8 %v87
  %v89 = vlaneseq
  %v90 = vshrl.u32 %v89, 7
  %v91 = vsub.s32 %v88, %v90
  %v92 = vrot.slane %v19, %v91
  %v93 = vcombine.high %v92, %v92
  %v95 = vunpack.c.l.s4 1966171168
  %v96 = vunpack.c.0.s8 %v95
  %v97 = vlaneseq
  %v98 = vshrl.u32 %v97, 7
  %v99 = vsub.s32 %v96, %v98
  %v100 = vrot.slane %v92, %v99
  %v102 = vunpack.c.l.s4 1966171168
  %v103 = vunpack.c.0.s8 %v102
  %v104 = vlaneseq
  %v105 = vshrl.u32 %v104, 7
  %v106 = vsub.s32 %v103, %v105
  %v107 = vrot.slane %v93, %v106
  %v174 = vunpack.c.l.b16 %v21
  %v175 = vunpack.c.h.b16 %v21
  %v176 = vunpack.c.l.b16 %v22
  %v177 = vunpack.c.h.b16 %v22
  %v178 = vunpack.c.l.b16 %v23
  %v179 = vunpack.c.h.b16 %v23
  %v180 = vunpack.c.l.b16 %v24
  %v181 = vunpack.c.h.b16 %v24
  %v182 = vunpack.c.l.b16 %v25
  %v183 = vunpack.c.h.b16 %v25
  %v184 = vunpack.c.l.b16 %v26
  %v185 = vunpack.c.h.b16 %v26
  %v186 = vunpack.c.l.b16 %v27
  %v187 = vunpack.c.h.b16 %v27
  %v188 = vunpack.c.l.b16 %v28
  %v189 = vunpack.c.h.b16 %v28
  %v190 = vunpack.c.l.b16 %v29
  %v191 = vunpack.c.h.b16 %v29
  %v192 = vunpack.c.l.b16 %v30
  %v193 = vunpack.c.h.b16 %v30
  %v194 = vunpack.c.l.b16 %v31
  %v195 = vunpack.c.h.b16 %v31
  %v196 = vunpack.c.l.b16 %v32
  %v197 = vunpack.c.h.b16 %v32
  %v198 = vunpack.c.l.b16 %v33
  %v199 = vunpack.c.h.b16 %v33
  %v200 = vunpack.c.l.b16 %v34
  %v201 = vunpack.c.h.b16 %v34
  %v202 = vunpack.c.l.b16 %v35
  %v203 = vunpack.c.h.b16 %v35
  %v204 = vunpack.c.l.b16 %v36
  %v205 = vunpack.c.h.b16 %v36
  %v206 = vunpack.c.l.b16 %v37
  %v207 = vunpack.c.h.b16 %v37
  %v208 = vunpack.c.l.b16 %v38
  %v209 = vunpack.c.h.b16 %v38
  %v210 = vunpack.c.l.b16 %v39
  %v211 = vunpack.c.h.b16 %v39
  %v212 = vunpack.c.l.b16 %v40
  %v213 = vunpack.c.h.b16 %v40
  %v214 = vunpack.c.l.b16 %v41
  %v215 = vunpack.c.h.b16 %v41
  %v216 = vunpack.c.l.b16 %v42
  %v217 = vunpack.c.h.b16 %v42
  %v218 = vunpack.c.l.b16 %v43
  %v219 = vunpack.c.h.b16 %v43
  %v220 = vunpack.c.l.b16 %v44
  %v221 = vunpack.c.h.b16 %v44
  %v222 = vunpack.c.l.b16 %v45
  %v223 = vunpack.c.h.b16 %v45
  %v224 = vunpack.c.l.b16 %v46
  %v225 = vunpack.c.h.b16 %v46
  %v226 = vunpack.c.l.b16 %v47
  %v227 = vunpack.c.h.b16 %v47
  %v228 = vunpack.c.l.b16 %v48
  %v229 = vunpack.c.h.b16 %v48
  %v230 = vunpack.c.l.b16 %v49
  %v231 = vunpack.c.h.b16 %v49
  %v232 = vunpack.c.l.b16 %v50
  %v233 = vunpack.c.h.b16 %v50
  %v234 = vunpack.c.l.b16 %v51
  %v235 = vunpack.c.h.b16 %v51
  %v236 = vunpack.c.l.b16 %v52
  %v237 = vunpack.c.h.b16 %v52
  %v238 = vunpack.c.l.b16 %v53
  %v239 = vunpack.c.h.b16 %v53
  %v240 = vunpack.c.l.b16 %v54
  %v241 = vunpack.c.h.b16 %v54
  %v242 = vunpack.c.l.b16 %v55
  %v243 = vunpack.c.h.b16 %v55
  %v244 = vunpack.c.l.b16 %v56
  %v245 = vunpack.c.h.b16 %v56
  %v246 = vunpack.c.l.b16 %v57
  %v247 = vunpack.c.h.b16 %v57
  %v248 = vunpack.c.l.b16 %v58
  %v249 = vunpack.c.h.b16 %v58
  %v250 = vunpack.c.l.b16 %v59
  %v251 = vunpack.c.h.b16 %v59
  %v252 = vunpack.c.l.b16 %v60
  %v253 = vunpack.c.h.b16 %v60
  %v254 = vunpack.c.l.b16 %v61
  %v255 = vunpack.c.h.b16 %v61
  %v256 = vunpack.c.l.b16 %v62
  %v257 = vunpack.c.h.b16 %v62
  %v258 = vunpack.c.l.b16 %v63
  %v259 = vunpack.c.h.b16 %v63
  %v260 = vunpack.c.l.b16 %v64
  %v261 = vunpack.c.h.b16 %v64
  %v262 = vunpack.c.l.b16 %v65
  %v263 = vunpack.c.h.b16 %v65
  %v264 = vunpack.c.l.b16 %v66
  %v265 = vunpack.c.h.b16 %v66
  %v266 = vunpack.c.l.b16 %v67
  %v267 = vunpack.c.h.b16 %v67
  %v268 = vunpack.c.l.b16 %v68
  %v269 = vunpack.c.h.b16 %v68
  %v270 = vunpack.c.l.b16 %v69
  %v271 = vunpack.c.h.b16 %v69
  %v272 = vunpack.c.l.b16 %v70
  %v273 = vunpack.c.h.b16 %v70
  %v274 = vunpack.c.l.b16 %v71
  %v275 = vunpack.c.h.b16 %v71
  %v276 = vunpack.c.l.b16 %v72
  %v277 = vunpack.c.h.b16 %v72
  %v278 = vunpack.c.l.b16 %v73
  %v279 = vunpack.c.h.b16 %v73
  %v280 = vunpack.c.l.b16 %v74
  %v281 = vunpack.c.h.b16 %v74
  %v282 = vunpack.c.l.b16 %v75
  %v283 = vunpack.c.h.b16 %v75
  %v284 = vunpack.c.l.b16 %v76
  %v285 = vunpack.c.h.b16 %v76
  %v286 = vunpack.c.l.b16 %v77
  %v287 = vunpack.c.h.b16 %v77
  %v288 = vunpack.c.l.b16 %v78
  %v289 = vunpack.c.h.b16 %v78
  %v290 = vunpack.c.l.b16 %v79
  %v291 = vunpack.c.h.b16 %v79
  %v292 = vunpack.c.l.b16 %v80
  %v293 = vunpack.c.h.b16 %v80
  %v294 = vunpack.c.l.b16 %v81
  %v295 = vunpack.c.h.b16 %v81
  %v296 = vunpack.c.l.b16 %v82
  %v297 = vunpack.c.h.b16 %v82
  %v298 = vunpack.c.l.b16 %v83
  %v299 = vunpack.c.h.b16 %v83
  %v300 = vunpack.c.l.b16 %v84
  %v301 = vunpack.c.h.b16 %v84
  %v302 = vpack.c.b16 %v178, %v174
  %v303 = vpack.c.b16 %v179, %v175
  %v304 = vpack.c.b16 %v180, %v176
  %v305 = vpack.c.b16 %v181, %v177
  %v306 = vpack.c.b16 %v186, %v182
  %v307 = vpack.c.b16 %v187, %v183
  %v308 = vpack.c.b16 %v188, %v184
  %v309 = vpack.c.b16 %v189, %v185
  %v310 = vpack.c.b16 %v194, %v190
  %v311 = vpack.c.b16 %v195, %v191
  %v312 = vpack.c.b16 %v196, %v192
  %v313 = vpack.c.b16 %v197, %v193
  %v314 = vpack.c.b16 %v202, %v198
  %v315 = vpack.c.b16 %v203, %v199
  %v316 = vpack.c.b16 %v204, %v200
  %v317 = vpack.c.b16 %v205, %v201
  %v318 = vpack.c.b16 %v210, %v206
  %v319 = vpack.c.b16 %v211, %v207
  %v320 = vpack.c.b16 %v212, %v208
  %v321 = vpack.c.b16 %v213, %v209
  %v322 = vpack.c.b16 %v218, %v214
  %v323 = vpack.c.b16 %v219, %v215
  %v324 = vpack.c.b16 %v220, %v216
  %v325 = vpack.c.b16 %v221, %v217
  %v326 = vpack.c.b16 %v226, %v222
  %v327 = vpack.c.b16 %v227, %v223
  %v328 = vpack.c.b16 %v228, %v224
  %v329 = vpack.c.b16 %v229, %v225
  %v330 = vpack.c.b16 %v234, %v230
  %v331 = vpack.c.b16 %v235, %v231
  %v332 = vpack.c.b16 %v236, %v232
  %v333 = vpack.c.b16 %v237, %v233
  %v334 = vpack.c.b16 %v242, %v238
  %v335 = vpack.c.b16 %v243, %v239
  %v336 = vpack.c.b16 %v244, %v240
  %v337 = vpack.c.b16 %v245, %v241
  %v338 = vpack.c.b16 %v250, %v246
  %v339 = vpack.c.b16 %v251, %v247
  %v340 = vpack.c.b16 %v252, %v248
  %v341 = vpack.c.b16 %v253, %v249
  %v342 = vpack.c.b16 %v258, %v254
  %v343 = vpack.c.b16 %v259, %v255
  %v344 = vpack.c.b16 %v260, %v256
  %v345 = vpack.c.b16 %v261, %v257
  %v346 = vpack.c.b16 %v266, %v262
  %v347 = vpack.c.b16 %v267, %v263
  %v348 = vpack.c.b16 %v268, %v264
  %v349 = vpack.c.b16 %v269, %v265
  %v350 = vpack.c.b16 %v274, %v270
  %v351 = vpack.c.b16 %v275, %v271
  %v352 = vpack.c.b16 %v276, %v272
  %v353 = vpack.c.b16 %v277, %v273
  %v354 = vpack.c.b16 %v282, %v278
  %v355 = vpack.c.b16 %v283, %v279
  %v356 = vpack.c.b16 %v284, %v280
  %v357 = vpack.c.b16 %v285, %v281
  %v358 = vpack.c.b16 %v290, %v286
  %v359 = vpack.c.b16 %v291, %v287
  %v360 = vpack.c.b16 %v292, %v288
  %v361 = vpack.c.b16 %v293, %v289
  %v362 = vpack.c.b16 %v298, %v294
  %v363 = vpack.c.b16 %v299, %v295
  %v364 = vpack.c.b16 %v300, %v296
  %v365 = vpack.c.b16 %v301, %v297
  %430 = vmatprep.subr.bf16.mxu0 %v331
  %431 = vmatpush1.bf16.msra.mxu0 %v330
  %432 = vmatprep.subr.bf16.mxu0 %v327
  %433 = vmatpush1.bf16.msra.mxu0 %v326
  %434 = vmatprep.subr.bf16.mxu0 %v323
  %435 = vmatpush1.bf16.msra.mxu0 %v322
  %436 = vmatprep.subr.bf16.mxu0 %v319
  %437 = vmatpush1.bf16.msra.mxu0 %v318
  %438 = vmatprep.subr.bf16.mxu0 %v315
  %439 = vmatpush1.bf16.msra.mxu0 %v314
  %440 = vmatprep.subr.bf16.mxu0 %v311
  %441 = vmatpush1.bf16.msra.mxu0 %v310
  %442 = vmatprep.subr.bf16.mxu0 %v307
  %443 = vmatpush1.bf16.msra.mxu0 %v306
  %444 = vmatprep.subr.bf16.mxu0 %v303
  %445 = vmatpush1.bf16.msra.mxu0 %v302
  %446 = vmatprep.subr.bf16.mxu0 %v363
  %447 = vmatpush2.bf16.msra.mxu0 %v362
  %448 = vmatprep.subr.bf16.mxu0 %v359
  %449 = vmatpush2.bf16.msra.mxu0 %v358
  %450 = vmatprep.subr.bf16.mxu0 %v355
  %451 = vmatpush2.bf16.msra.mxu0 %v354
  %452 = vmatprep.subr.bf16.mxu0 %v351
  %453 = vmatpush2.bf16.msra.mxu0 %v350
  %454 = vmatprep.subr.bf16.mxu0 %v347
  %455 = vmatpush2.bf16.msra.mxu0 %v346
  %456 = vmatprep.subr.bf16.mxu0 %v343
  %457 = vmatpush2.bf16.msra.mxu0 %v342
  %458 = vmatprep.subr.bf16.mxu0 %v339
  %459 = vmatpush2.bf16.msra.mxu0 %v338
  %460 = vmatprep.subr.bf16.mxu0 %v335
  %461 = vmatpush2.bf16.msra.mxu0 %v334
  %462 = vmatprep.mubr.bf16.mxu0 %v107
  %463 = vmatmul.mubr.bf16.gmra.mxu0 %v100
  %v464 = vpop.f32.mrf.mxu0
  %v465 = vadd.f32 0.0, %v464
  %v466 = vpop.f32.mrf.mxu0
  %v467 = vadd.f32 0.0, %v466
  %v468 = vpop.f32.mrf.mxu0
  %v469 = vpop.f32.mrf.mxu0
  %470 = vdwg.mxu0
  %471 = vmatprep.subr.bf16.mxu0 %v333
  %472 = vmatpush1.bf16.msra.mxu0 %v332
  %473 = vmatprep.subr.bf16.mxu0 %v329
  %474 = vmatpush1.bf16.msra.mxu0 %v328
  %475 = vmatprep.subr.bf16.mxu0 %v325
  %476 = vmatpush1.bf16.msra.mxu0 %v324
  %477 = vmatprep.subr.bf16.mxu0 %v321
  %478 = vmatpush1.bf16.msra.mxu0 %v320
  %479 = vmatprep.subr.bf16.mxu0 %v317
  %480 = vmatpush1.bf16.msra.mxu0 %v316
  %481 = vmatprep.subr.bf16.mxu0 %v313
  %482 = vmatpush1.bf16.msra.mxu0 %v312
  %483 = vmatprep.subr.bf16.mxu0 %v309
  %484 = vmatpush1.bf16.msra.mxu0 %v308
  %485 = vmatprep.subr.bf16.mxu0 %v305
  %486 = vmatpush1.bf16.msra.mxu0 %v304
  %487 = vmatprep.subr.bf16.mxu0 %v365
  %488 = vmatpush2.bf16.msra.mxu0 %v364
  %489 = vmatprep.subr.bf16.mxu0 %v361
  %490 = vmatpush2.bf16.msra.mxu0 %v360
  %491 = vmatprep.subr.bf16.mxu0 %v357
  %492 = vmatpush2.bf16.msra.mxu0 %v356
  %493 = vmatprep.subr.bf16.mxu0 %v353
  %494 = vmatpush2.bf16.msra.mxu0 %v352
  %495 = vmatprep.subr.bf16.mxu0 %v349
  %496 = vmatpush2.bf16.msra.mxu0 %v348
  %497 = vmatprep.subr.bf16.mxu0 %v345
  %498 = vmatpush2.bf16.msra.mxu0 %v344
  %499 = vmatprep.subr.bf16.mxu0 %v341
  %500 = vmatpush2.bf16.msra.mxu0 %v340
  %501 = vmatprep.subr.bf16.mxu0 %v337
  %502 = vmatpush2.bf16.msra.mxu0 %v336
  %503 = vmatprep.mubr.bf16.mxu0 %v107
  %504 = vmatmul.mubr.bf16.gmra.mxu0 %v100
  %v505 = vpop.f32.mrf.mxu0
  %v506 = vadd.f32 0.0, %v505
  %v507 = vpop.f32.mrf.mxu0
  %v508 = vadd.f32 0.0, %v507
  %v509 = vpop.f32.mrf.mxu0
  %v510 = vpop.f32.mrf.mxu0
  %511 = vdwg.mxu0
  %v516 = vcombine.low %v465, %v467
  %v517 = vcombine.low %v506, %v508
  %v519 = vunpack.c.l.s4 1983009808
  %v520 = vunpack.c.0.s8 %v519
  %v521 = vlaneseq
  %v522 = vshrl.u32 %v521, 7
  %v523 = vsub.s32 %v520, %v522
  %v524 = vrot.slane %v516, %v523
  %v526 = vunpack.c.l.s4 1983009808
  %v527 = vunpack.c.0.s8 %v526
  %v528 = vlaneseq
  %v529 = vshrl.u32 %v528, 7
  %v530 = vsub.s32 %v527, %v529
  %v531 = vrot.slane %v517, %v530
  %v532 = vcombine.low %v524, %v531
  %v534 = vadd.f32 %v20, %v532
  %535 = vst [vmem:[#allocation2] sm:$0xff] %v534
  // Predicated region
  $region18: #{image_transformer_forward.26} parent=0 // pred_check
    %p536 = pneg %p14
  $region19: #{image_transformer_forward.26} parent=0 // pred_check_branch
    %538 = sbr.rel (%p536) target = $region21
  $region20: #{image_transformer_forward.26} parent=0 // pred_region
    %v539 = vld [vmem:[#allocation2] sm:$0xff]
    %v540 = vld [vmem:[%s2] sm:$0xf]
    %v542 = vlaneseq
    %v543 = vshrl.u32 %v542, 7
    %v544 = vsub.s32 0, %v543
    %v545 = vrot.slane %v540, %v544
    %v546 = vlaneseq
    %v547 = vshrl.u32 %v546, 7
    %v548 = vsub.s32 1, %v547
    %v549 = vrot.slane %v540, %v548
    %v550 = vlaneseq
    %v551 = vshrl.u32 %v550, 7
    %v552 = vsub.s32 2, %v551
    %v553 = vrot.slane %v540, %v552
    %v554 = vlaneseq
    %v555 = vshrl.u32 %v554, 7
    %v556 = vsub.s32 3, %v555
    %v557 = vrot.slane %v540, %v556
    %v558 = vcombine.low %v545, %v549
    %v559 = vcombine.low %v553, %v557
    %v561 = vunpack.c.l.s4 1983009808
    %v562 = vunpack.c.0.s8 %v561
    %v563 = vlaneseq
    %v564 = vshrl.u32 %v563, 7
    %v565 = vsub.s32 %v562, %v564
    %v566 = vrot.slane %v558, %v565
    %v568 = vunpack.c.l.s4 1983009808
    %v569 = vunpack.c.0.s8 %v568
    %v570 = vlaneseq
    %v571 = vshrl.u32 %v570, 7
    %v572 = vsub.s32 %v569, %v571
    %v573 = vrot.slane %v559, %v572
    %v574 = vcombine.low %v566, %v573
    %v576 = vadd.f32 %v539, %v574
    %v577 = vmax.f32 %v576, 0.0
    %v579 = vcombine.high %v577, %v577
    %v581 = vunpack.c.l.s4 1983009808
    %v582 = vunpack.c.0.s8 %v581
    %v583 = vlaneseq
    %v584 = vshrl.u32 %v583, 7
    %v585 = vsub.s32 %v582, %v584
    %v586 = vrot.slane %v577, %v585
    %v588 = vunpack.c.l.s4 1983009808
    %v589 = vunpack.c.0.s8 %v588
    %v590 = vlaneseq
    %v591 = vshrl.u32 %v590, 7
    %v592 = vsub.s32 %v589, %v591
    %v593 = vrot.slane %v579, %v592
    %v594 = vcombine.high %v586, %v586
    %v595 = vcombine.high %v593, %v593
    %v600 = vpack.c.bf16 %v586, %v586
    %v601 = vpack.c.bf16 %v594, %v594
    %v602 = vpack.c.bf16 %v593, %v593
    %v603 = vpack.c.bf16 %v595, %v595
    %v608 = vcombine.low %v600, %v601
    %v609 = vcombine.low %v602, %v603
    %v611 = vunpack.c.l.s4 1966171168
    %v612 = vunpack.c.0.s8 %v611
    %v613 = vlaneseq
    %v614 = vshrl.u32 %v613, 7
    %v615 = vsub.s32 %v612, %v614
    %v616 = vrot.slane %v608, %v615
    %v618 = vunpack.c.l.s4 1966171168
    %v619 = vunpack.c.0.s8 %v618
    %v620 = vlaneseq
    %v621 = vshrl.u32 %v620, 7
    %v622 = vsub.s32 %v619, %v621
    %v623 = vrot.slane %v609, %v622
    %v624 = vcombine.low %v616, %v623
    %v626 = vunpack.c.l.s4 1966171168
    %v627 = vunpack.c.0.s8 %v626
    %v628 = vlaneseq
    %v629 = vshrl.u32 %v628, 7
    %v630 = vsub.s32 %v627, %v629
    %v631 = vrot.slane %v624, %v630
    %633 = vst [vmem:[%s3] sm:$0xf] %v631
  $region21: #{image_transformer_forward.26} parent=0 // pred_fallthru
    _
  // Predicated region
  $region22: #{image_transformer_forward.26} parent=0 // pred_check
    _
  $region23: #{image_transformer_forward.26} parent=0 // pred_check_branch
    %635 = sbr.rel (0) target = $region25
  $region24: #{image_transformer_forward.26} parent=0 // pred_region
    _
  $region25: #{image_transformer_forward.26} parent=0 // pred_fallthru
    _
  // Predicated region
  $region26: #{image_transformer_forward.26} parent=0 // pred_check
    _
  $region27: #{image_transformer_forward.26} parent=0 // pred_check_branch
    %637 = sbr.rel (0) target = $region29
  $region28: #{image_transformer_forward.26} parent=0 // pred_region
    _
  $region29: #{image_transformer_forward.26} parent=0 // pred_fallthru
    _

// kernel: image_transformer_forward.20
$region0: #{image_transformer_forward.20}
  #allocation0 [shape = 'u32[]', space=smem, size = 0x4, offset = 0x4, fixed_abs, tag = 'smem constant byte address 0x4 - core index']
  #allocation1 [shape = 'u32[144,128]{1,0:T(1,128)}', space=vmem, size = 0x12000, scoped, tag = 'internal scratch']
  #allocation2 [shape = 'f32[16,768]{1,0:T(8,128)}', space=vmem, size = 0xc000, scoped, tag = 'scratch operand']
  %s0 = inlined_call_operand.vmem [shape: bf16[16,256], index: 0, kind: input, shape index: {}]
  %s1 = inlined_call_operand.vmem [shape: bf16[256,768], index: 1, kind: input, shape index: {}]
  %s2 = inlined_call_operand.vmem [shape: f32[1,768], index: 2, kind: input, shape index: {}]
  %s3 = inlined_call_operand.vmem [shape: bf16[16,768], index: 3, kind: output, shape index: {}]
  %s4 = sld [smem:[#allocation0]]
  $region30: #{image_transformer_forward.20} parent=0
    _
  %s6 = ssub.s32 1, %s4
  %s7 = scalar_select 0, %s6, %s4
  // Predicated region
  $region2: #{image_transformer_forward.20} parent=0 // pred_check
    _
  $region3: #{image_transformer_forward.20} parent=0 // pred_check_branch
    %9 = sbr.rel (0) target = $region5
  $region4: #{image_transformer_forward.20} parent=0 // pred_region
    _
  $region5: #{image_transformer_forward.20} parent=0 // pred_fallthru
    _
  // Predicated region
  $region6: #{image_transformer_forward.20} parent=0 // pred_check
    _
  $region7: #{image_transformer_forward.20} parent=0 // pred_check_branch
    %11 = sbr.rel (0) target = $region9
  $region8: #{image_transformer_forward.20} parent=0 // pred_region
    _
  $region9: #{image_transformer_forward.20} parent=0 // pred_fallthru
    _
  // Predicated region
  $region10: #{image_transformer_forward.20} parent=0 // pred_check
    _
  $region11: #{image_transformer_forward.20} parent=0 // pred_check_branch
    %13 = sbr.rel (0) target = $region13
  $region12: #{image_transformer_forward.20} parent=0 // pred_region
    _
  $region13: #{image_transformer_forward.20} parent=0 // pred_fallthru
    _
  %p14 = scmp.eq.s32.totalorder 0, 0
  // Predicated region
  $region14: #{image_transformer_forward.20} parent=0 // pred_check
    %p15 = pneg %p14
  $region15: #{image_transformer_forward.20} parent=0 // pred_check_branch
    %17 = sbr.rel (%p15) target = $region17
  $region16: #{image_transformer_forward.20} parent=0 // pred_region
    %18 = vst [vmem:[#allocation2] sm:$0xff] 0.0
    %19 = vst [vmem:[#allocation2 + $0x8] sm:$0xff] 0.0
    %20 = vst [vmem:[#allocation2 + $0x10] sm:$0xff] 0.0
    %21 = vst [vmem:[#allocation2 + $0x18] sm:$0xff] 0.0
    %22 = vst [vmem:[#allocation2 + $0x20] sm:$0xff] 0.0
    %23 = vst [vmem:[#allocation2 + $0x28] sm:$0xff] 0.0
    %24 = vst [vmem:[#allocation2 + $0x30] sm:$0xff] 0.0
    %25 = vst [vmem:[#allocation2 + $0x38] sm:$0xff] 0.0
    %26 = vst [vmem:[#allocation2 + $0x40] sm:$0xff] 0.0
    %27 = vst [vmem:[#allocation2 + $0x48] sm:$0xff] 0.0
    %28 = vst [vmem:[#allocation2 + $0x50] sm:$0xff] 0.0
    %29 = vst [vmem:[#allocation2 + $0x58] sm:$0xff] 0.0
  $region17: #{image_transformer_forward.20} parent=0 // pred_fallthru
    _
  %v30 = vld [vmem:[%s0] sm:$0xff]
  %v31 = vld [vmem:[%s0 + $0x8] sm:$0xff]
  %v32 = vld [vmem:[#allocation2] sm:$0xff]
  %v33 = vld [vmem:[#allocation2 + $0x8] sm:$0xff]
  %v34 = vld [vmem:[#allocation2 + $0x10] sm:$0xff]
  %v35 = vld [vmem:[#allocation2 + $0x18] sm:$0xff]
  %v36 = vld [vmem:[#allocation2 + $0x20] sm:$0xff]
  %v37 = vld [vmem:[#allocation2 + $0x28] sm:$0xff]
  %v38 = vld [vmem:[#allocation2 + $0x30] sm:$0xff]
  %v39 = vld [vmem:[#allocation2 + $0x38] sm:$0xff]
  %v40 = vld [vmem:[#allocation2 + $0x40] sm:$0xff]
  %v41 = vld [vmem:[#allocation2 + $0x48] sm:$0xff]
  %v42 = vld [vmem:[#allocation2 + $0x50] sm:$0xff]
  %v43 = vld [vmem:[#allocation2 + $0x58] sm:$0xff]
  %v44 = vld [vmem:[%s1] sm:$0xff]
  %v45 = vld [vmem:[%s1 + $0x8] sm:$0xff]
  %v46 = vld [vmem:[%s1 + $0x10] sm:$0xff]
  %v47 = vld [vmem:[%s1 + $0x18] sm:$0xff]
  %v48 = vld [vmem:[%s1 + $0x20] sm:$0xff]
  %v49 = vld [vmem:[%s1 + $0x28] sm:$0xff]
  %v50 = vld [vmem:[%s1 + $0x30] sm:$0xff]
  %v51 = vld [vmem:[%s1 + $0x38] sm:$0xff]
  %v52 = vld [vmem:[%s1 + $0x40] sm:$0xff]
  %v53 = vld [vmem:[%s1 + $0x48] sm:$0xff]
  %v54 = vld [vmem:[%s1 + $0x50] sm:$0xff]
  %v55 = vld [vmem:[%s1 + $0x58] sm:$0xff]
  %v56 = vld [vmem:[%s1 + $0x60] sm:$0xff]
  %v57 = vld [vmem:[%s1 + $0x68] sm:$0xff]
  %v58 = vld [vmem:[%s1 + $0x70] sm:$0xff]
  %v59 = vld [vmem:[%s1 + $0x78] sm:$0xff]
  %v60 = vld [vmem:[%s1 + $0x80] sm:$0xff]
  %v61 = vld [vmem:[%s1 + $0x88] sm:$0xff]
  %v62 = vld [vmem:[%s1 + $0x90] sm:$0xff]
  %v63 = vld [vmem:[%s1 + $0x98] sm:$0xff]
  %v64 = vld [vmem:[%s1 + $0xa0] sm:$0xff]
  %v65 = vld [vmem:[%s1 + $0xa8] sm:$0xff]
  %v66 = vld [vmem:[%s1 + $0xb0] sm:$0xff]
  %v67 = vld [vmem:[%s1 + $0xb8] sm:$0xff]
  %v68 = vld [vmem:[%s1 + $0xc0] sm:$0xff]
  %v69 = vld [vmem:[%s1 + $0xc8] sm:$0xff]
  %v70 = vld [vmem:[%s1 + $0xd0] sm:$0xff]
  %v71 = vld [vmem:[%s1 + $0xd8] sm:$0xff]
  %v72 = vld [vmem:[%s1 + $0xe0] sm:$0xff]
  %v73 = vld [vmem:[%s1 + $0xe8] sm:$0xff]
  %v74 = vld [vmem:[%s1 + $0xf0] sm:$0xff]
  %v75 = vld [vmem:[%s1 + $0xf8] sm:$0xff]
  %v76 = vld [vmem:[%s1 + $0x100] sm:$0xff]
  %v77 = vld [vmem:[%s1 + $0x108] sm:$0xff]
  %v78 = vld [vmem:[%s1 + $0x110] sm:$0xff]
  %v79 = vld [vmem:[%s1 + $0x118] sm:$0xff]
  %v80 = vld [vmem:[%s1 + $0x120] sm:$0xff]
  %v81 = vld [vmem:[%s1 + $0x128] sm:$0xff]
  %v82 = vld [vmem:[%s1 + $0x130] sm:$0xff]
  %v83 = vld [vmem:[%s1 + $0x138] sm:$0xff]
  %v84 = vld [vmem:[%s1 + $0x140] sm:$0xff]
  %v85 = vld [vmem:[%s1 + $0x148] sm:$0xff]
  %v86 = vld [vmem:[%s1 + $0x150] sm:$0xff]
  %v87 = vld [vmem:[%s1 + $0x158] sm:$0xff]
  %v88 = vld [vmem:[%s1 + $0x160] sm:$0xff]
  %v89 = vld [vmem:[%s1 + $0x168] sm:$0xff]
  %v90 = vld [vmem:[%s1 + $0x170] sm:$0xff]
  %v91 = vld [vmem:[%s1 + $0x178] sm:$0xff]
  %v92 = vld [vmem:[%s1 + $0x180] sm:$0xff]
  %v93 = vld [vmem:[%s1 + $0x188] sm:$0xff]
  %v94 = vld [vmem:[%s1 + $0x190] sm:$0xff]
  %v95 = vld [vmem:[%s1 + $0x198] sm:$0xff]
  %v96 = vld [vmem:[%s1 + $0x1a0] sm:$0xff]
  %v97 = vld [vmem:[%s1 + $0x1a8] sm:$0xff]
  %v98 = vld [vmem:[%s1 + $0x1b0] sm:$0xff]
  %v99 = vld [vmem:[%s1 + $0x1b8] sm:$0xff]
  %v100 = vld [vmem:[%s1 + $0x1c0] sm:$0xff]
  %v101 = vld [vmem:[%s1 + $0x1c8] sm:$0xff]
  %v102 = vld [vmem:[%s1 + $0x1d0] sm:$0xff]
  %v103 = vld [vmem:[%s1 + $0x1d8] sm:$0xff]
  %v104 = vld [vmem:[%s1 + $0x1e0] sm:$0xff]
  %v105 = vld [vmem:[%s1 + $0x1e8] sm:$0xff]
  %v106 = vld [vmem:[%s1 + $0x1f0] sm:$0xff]
  %v107 = vld [vmem:[%s1 + $0x1f8] sm:$0xff]
  %v108 = vld [vmem:[%s1 + $0x200] sm:$0xff]
  %v109 = vld [vmem:[%s1 + $0x208] sm:$0xff]
  %v110 = vld [vmem:[%s1 + $0x210] sm:$0xff]
  %v111 = vld [vmem:[%s1 + $0x218] sm:$0xff]
  %v112 = vld [vmem:[%s1 + $0x220] sm:$0xff]
  %v113 = vld [vmem:[%s1 + $0x228] sm:$0xff]
  %v114 = vld [vmem:[%s1 + $0x230] sm:$0xff]
  %v115 = vld [vmem:[%s1 + $0x238] sm:$0xff]
  %v116 = vld [vmem:[%s1 + $0x240] sm:$0xff]
  %v117 = vld [vmem:[%s1 + $0x248] sm:$0xff]
  %v118 = vld [vmem:[%s1 + $0x250] sm:$0xff]
  %v119 = vld [vmem:[%s1 + $0x258] sm:$0xff]
  %v120 = vld [vmem:[%s1 + $0x260] sm:$0xff]
  %v121 = vld [vmem:[%s1 + $0x268] sm:$0xff]
  %v122 = vld [vmem:[%s1 + $0x270] sm:$0xff]
  %v123 = vld [vmem:[%s1 + $0x278] sm:$0xff]
  %v124 = vld [vmem:[%s1 + $0x280] sm:$0xff]
  %v125 = vld [vmem:[%s1 + $0x288] sm:$0xff]
  %v126 = vld [vmem:[%s1 + $0x290] sm:$0xff]
  %v127 = vld [vmem:[%s1 + $0x298] sm:$0xff]
  %v128 = vld [vmem:[%s1 + $0x2a0] sm:$0xff]
  %v129 = vld [vmem:[%s1 + $0x2a8] sm:$0xff]
  %v130 = vld [vmem:[%s1 + $0x2b0] sm:$0xff]
  %v131 = vld [vmem:[%s1 + $0x2b8] sm:$0xff]
  %v132 = vld [vmem:[%s1 + $0x2c0] sm:$0xff]
  %v133 = vld [vmem:[%s1 + $0x2c8] sm:$0xff]
  %v134 = vld [vmem:[%s1 + $0x2d0] sm:$0xff]
  %v135 = vld [vmem:[%s1 + $0x2d8] sm:$0xff]
  %v136 = vld [vmem:[%s1 + $0x2e0] sm:$0xff]
  %v137 = vld [vmem:[%s1 + $0x2e8] sm:$0xff]
  %v138 = vld [vmem:[%s1 + $0x2f0] sm:$0xff]
  %v139 = vld [vmem:[%s1 + $0x2f8] sm:$0xff]
  %v142 = vunpack.c.l.b16 %v30
  %v143 = vunpack.c.h.b16 %v30
  %v144 = vunpack.c.l.b16 %v31
  %v145 = vunpack.c.h.b16 %v31
  %v146 = vpack.c.b16 %v144, %v142
  %v147 = vpack.c.b16 %v145, %v143
  %v246 = vunpack.c.l.b16 %v44
  %v247 = vunpack.c.h.b16 %v44
  %v248 = vunpack.c.l.b16 %v45
  %v249 = vunpack.c.h.b16 %v45
  %v250 = vunpack.c.l.b16 %v46
  %v251 = vunpack.c.h.b16 %v46
  %v252 = vunpack.c.l.b16 %v47
  %v253 = vunpack.c.h.b16 %v47
  %v254 = vunpack.c.l.b16 %v48
  %v255 = vunpack.c.h.b16 %v48
  %v256 = vunpack.c.l.b16 %v49
  %v257 = vunpack.c.h.b16 %v49
  %v258 = vunpack.c.l.b16 %v50
  %v259 = vunpack.c.h.b16 %v50
  %v260 = vunpack.c.l.b16 %v51
  %v261 = vunpack.c.h.b16 %v51
  %v262 = vunpack.c.l.b16 %v52
  %v263 = vunpack.c.h.b16 %v52
  %v264 = vunpack.c.l.b16 %v53
  %v265 = vunpack.c.h.b16 %v53
  %v266 = vunpack.c.l.b16 %v54
  %v267 = vunpack.c.h.b16 %v54
  %v268 = vunpack.c.l.b16 %v55
  %v269 = vunpack.c.h.b16 %v55
  %v270 = vunpack.c.l.b16 %v56
  %v271 = vunpack.c.h.b16 %v56
  %v272 = vunpack.c.l.b16 %v57
  %v273 = vunpack.c.h.b16 %v57
  %v274 = vunpack.c.l.b16 %v58
  %v275 = vunpack.c.h.b16 %v58
  %v276 = vunpack.c.l.b16 %v59
  %v277 = vunpack.c.h.b16 %v59
  %v278 = vunpack.c.l.b16 %v60
  %v279 = vunpack.c.h.b16 %v60
  %v280 = vunpack.c.l.b16 %v61
  %v281 = vunpack.c.h.b16 %v61
  %v282 = vunpack.c.l.b16 %v62
  %v283 = vunpack.c.h.b16 %v62
  %v284 = vunpack.c.l.b16 %v63
  %v285 = vunpack.c.h.b16 %v63
  %v286 = vunpack.c.l.b16 %v64
  %v287 = vunpack.c.h.b16 %v64
  %v288 = vunpack.c.l.b16 %v65
  %v289 = vunpack.c.h.b16 %v65
  %v290 = vunpack.c.l.b16 %v66
  %v291 = vunpack.c.h.b16 %v66
  %v292 = vunpack.c.l.b16 %v67
  %v293 = vunpack.c.h.b16 %v67
  %v294 = vunpack.c.l.b16 %v68
  %v295 = vunpack.c.h.b16 %v68
  %v296 = vunpack.c.l.b16 %v69
  %v297 = vunpack.c.h.b16 %v69
  %v298 = vunpack.c.l.b16 %v70
  %v299 = vunpack.c.h.b16 %v70
  %v300 = vunpack.c.l.b16 %v71
  %v301 = vunpack.c.h.b16 %v71
  %v302 = vunpack.c.l.b16 %v72
  %v303 = vunpack.c.h.b16 %v72
  %v304 = vunpack.c.l.b16 %v73
  %v305 = vunpack.c.h.b16 %v73
  %v306 = vunpack.c.l.b16 %v74
  %v307 = vunpack.c.h.b16 %v74
  %v308 = vunpack.c.l.b16 %v75
  %v309 = vunpack.c.h.b16 %v75
  %v310 = vunpack.c.l.b16 %v76
  %v311 = vunpack.c.h.b16 %v76
  %v312 = vunpack.c.l.b16 %v77
  %v313 = vunpack.c.h.b16 %v77
  %v314 = vunpack.c.l.b16 %v78
  %v315 = vunpack.c.h.b16 %v78
  %v316 = vunpack.c.l.b16 %v79
  %v317 = vunpack.c.h.b16 %v79
  %v318 = vunpack.c.l.b16 %v80
  %v319 = vunpack.c.h.b16 %v80
  %v320 = vunpack.c.l.b16 %v81
  %v321 = vunpack.c.h.b16 %v81
  %v322 = vunpack.c.l.b16 %v82
  %v323 = vunpack.c.h.b16 %v82
  %v324 = vunpack.c.l.b16 %v83
  %v325 = vunpack.c.h.b16 %v83
  %v326 = vunpack.c.l.b16 %v84
  %v327 = vunpack.c.h.b16 %v84
  %v328 = vunpack.c.l.b16 %v85
  %v329 = vunpack.c.h.b16 %v85
  %v330 = vunpack.c.l.b16 %v86
  %v331 = vunpack.c.h.b16 %v86
  %v332 = vunpack.c.l.b16 %v87
  %v333 = vunpack.c.h.b16 %v87
  %v334 = vunpack.c.l.b16 %v88
  %v335 = vunpack.c.h.b16 %v88
  %v336 = vunpack.c.l.b16 %v89
  %v337 = vunpack.c.h.b16 %v89
  %v338 = vunpack.c.l.b16 %v90
  %v339 = vunpack.c.h.b16 %v90
  %v340 = vunpack.c.l.b16 %v91
  %v341 = vunpack.c.h.b16 %v91
  %v342 = vunpack.c.l.b16 %v92
  %v343 = vunpack.c.h.b16 %v92
  %v344 = vunpack.c.l.b16 %v93
  %v345 = vunpack.c.h.b16 %v93
  %v346 = vunpack.c.l.b16 %v94
  %v347 = vunpack.c.h.b16 %v94
  %v348 = vunpack.c.l.b16 %v95
  %v349 = vunpack.c.h.b16 %v95
  %v350 = vunpack.c.l.b16 %v96
  %v351 = vunpack.c.h.b16 %v96
  %v352 = vunpack.c.l.b16 %v97
  %v353 = vunpack.c.h.b16 %v97
  %v354 = vunpack.c.l.b16 %v98
  %v355 = vunpack.c.h.b16 %v98
  %v356 = vunpack.c.l.b16 %v99
  %v357 = vunpack.c.h.b16 %v99
  %v358 = vunpack.c.l.b16 %v100
  %v359 = vunpack.c.h.b16 %v100
  %v360 = vunpack.c.l.b16 %v101
  %v361 = vunpack.c.h.b16 %v101
  %v362 = vunpack.c.l.b16 %v102
  %v363 = vunpack.c.h.b16 %v102
  %v364 = vunpack.c.l.b16 %v103
  %v365 = vunpack.c.h.b16 %v103
  %v366 = vunpack.c.l.b16 %v104
  %v367 = vunpack.c.h.b16 %v104
  %v368 = vunpack.c.l.b16 %v105
  %v369 = vunpack.c.h.b16 %v105
  %v370 = vunpack.c.l.b16 %v106
  %v371 = vunpack.c.h.b16 %v106
  %v372 = vunpack.c.l.b16 %v107
  %v373 = vunpack.c.h.b16 %v107
  %v374 = vunpack.c.l.b16 %v108
  %v375 = vunpack.c.h.b16 %v108
  %v376 = vunpack.c.l.b16 %v109
  %v377 = vunpack.c.h.b16 %v109
  %v378 = vunpack.c.l.b16 %v110
  %v379 = vunpack.c.h.b16 %v110
  %v380 = vunpack.c.l.b16 %v111
  %v381 = vunpack.c.h.b16 %v111
  %v382 = vunpack.c.l.b16 %v112
  %v383 = vunpack.c.h.b16 %v112
  %v384 = vunpack.c.l.b16 %v113
  %v385 = vunpack.c.h.b16 %v113
  %v386 = vunpack.c.l.b16 %v114
  %v387 = vunpack.c.h.b16 %v114
  %v388 = vunpack.c.l.b16 %v115
  %v389 = vunpack.c.h.b16 %v115
  %v390 = vunpack.c.l.b16 %v116
  %v391 = vunpack.c.h.b16 %v116
  %v392 = vunpack.c.l.b16 %v117
  %v393 = vunpack.c.h.b16 %v117
  %v394 = vunpack.c.l.b16 %v118
  %v395 = vunpack.c.h.b16 %v118
  %v396 = vunpack.c.l.b16 %v119
  %v397 = vunpack.c.h.b16 %v119
  %v398 = vunpack.c.l.b16 %v120
  %v399 = vunpack.c.h.b16 %v120
  %v400 = vunpack.c.l.b16 %v121
  %v401 = vunpack.c.h.b16 %v121
  %v402 = vunpack.c.l.b16 %v122
  %v403 = vunpack.c.h.b16 %v122
  %v404 = vunpack.c.l.b16 %v123
  %v405 = vunpack.c.h.b16 %v123
  %v406 = vunpack.c.l.b16 %v124
  %v407 = vunpack.c.h.b16 %v124
  %v408 = vunpack.c.l.b16 %v125
  %v409 = vunpack.c.h.b16 %v125
  %v410 = vunpack.c.l.b16 %v126
  %v411 = vunpack.c.h.b16 %v126
  %v412 = vunpack.c.l.b16 %v127
  %v413 = vunpack.c.h.b16 %v127
  %v414 = vunpack.c.l.b16 %v128
  %v415 = vunpack.c.h.b16 %v128
  %v416 = vunpack.c.l.b16 %v129
  %v417 = vunpack.c.h.b16 %v129
  %v418 = vunpack.c.l.b16 %v130
  %v419 = vunpack.c.h.b16 %v130
  %v420 = vunpack.c.l.b16 %v131
  %v421 = vunpack.c.h.b16 %v131
  %v422 = vunpack.c.l.b16 %v132
  %v423 = vunpack.c.h.b16 %v132
  %v424 = vunpack.c.l.b16 %v133
  %v425 = vunpack.c.h.b16 %v133
  %v426 = vunpack.c.l.b16 %v134
  %v427 = vunpack.c.h.b16 %v134
  %v428 = vunpack.c.l.b16 %v135
  %v429 = vunpack.c.h.b16 %v135
  %v430 = vunpack.c.l.b16 %v136
  %v431 = vunpack.c.h.b16 %v136
  %v432 = vunpack.c.l.b16 %v137
  %v433 = vunpack.c.h.b16 %v137
  %v434 = vunpack.c.l.b16 %v138
  %v435 = vunpack.c.h.b16 %v138
  %v436 = vunpack.c.l.b16 %v139
  %v437 = vunpack.c.h.b16 %v139
  %v438 = vpack.c.b16 %v252, %v246
  %v439 = vpack.c.b16 %v253, %v247
  %v440 = vpack.c.b16 %v254, %v248
  %v441 = vpack.c.b16 %v255, %v249
  %v442 = vpack.c.b16 %v256, %v250
  %v443 = vpack.c.b16 %v257, %v251
  %v444 = vpack.c.b16 %v264, %v258
  %v445 = vpack.c.b16 %v265, %v259
  %v446 = vpack.c.b16 %v266, %v260
  %v447 = vpack.c.b16 %v267, %v261
  %v448 = vpack.c.b16 %v268, %v262
  %v449 = vpack.c.b16 %v269, %v263
  %v450 = vpack.c.b16 %v276, %v270
  %v451 = vpack.c.b16 %v277, %v271
  %v452 = vpack.c.b16 %v278, %v272
  %v453 = vpack.c.b16 %v279, %v273
  %v454 = vpack.c.b16 %v280, %v274
  %v455 = vpack.c.b16 %v281, %v275
  %v456 = vpack.c.b16 %v288, %v282
  %v457 = vpack.c.b16 %v289, %v283
  %v458 = vpack.c.b16 %v290, %v284
  %v459 = vpack.c.b16 %v291, %v285
  %v460 = vpack.c.b16 %v292, %v286
  %v461 = vpack.c.b16 %v293, %v287
  %v462 = vpack.c.b16 %v300, %v294
  %v463 = vpack.c.b16 %v301, %v295
  %v464 = vpack.c.b16 %v302, %v296
  %v465 = vpack.c.b16 %v303, %v297
  %v466 = vpack.c.b16 %v304, %v298
  %v467 = vpack.c.b16 %v305, %v299
  %v468 = vpack.c.b16 %v312, %v306
  %v469 = vpack.c.b16 %v313, %v307
  %v470 = vpack.c.b16 %v314, %v308
  %v471 = vpack.c.b16 %v315, %v309
  %v472 = vpack.c.b16 %v316, %v310
  %v473 = vpack.c.b16 %v317, %v311
  %v474 = vpack.c.b16 %v324, %v318
  %v475 = vpack.c.b16 %v325, %v319
  %v476 = vpack.c.b16 %v326, %v320
  %v477 = vpack.c.b16 %v327, %v321
  %v478 = vpack.c.b16 %v328, %v322
  %v479 = vpack.c.b16 %v329, %v323
  %v480 = vpack.c.b16 %v336, %v330
  %v481 = vpack.c.b16 %v337, %v331
  %v482 = vpack.c.b16 %v338, %v332
  %v483 = vpack.c.b16 %v339, %v333
  %v484 = vpack.c.b16 %v340, %v334
  %v485 = vpack.c.b16 %v341, %v335
  %v486 = vpack.c.b16 %v348, %v342
  %v487 = vpack.c.b16 %v349, %v343
  %v488 = vpack.c.b16 %v350, %v344
  %v489 = vpack.c.b16 %v351, %v345
  %v490 = vpack.c.b16 %v352, %v346
  %v491 = vpack.c.b16 %v353, %v347
  %v492 = vpack.c.b16 %v360, %v354
  %v493 = vpack.c.b16 %v361, %v355
  %v494 = vpack.c.b16 %v362, %v356
  %v495 = vpack.c.b16 %v363, %v357
  %v496 = vpack.c.b16 %v364, %v358
  %v497 = vpack.c.b16 %v365, %v359
  %v498 = vpack.c.b16 %v372, %v366
  %v499 = vpack.c.b16 %v373, %v367
  %v500 = vpack.c.b16 %v374, %v368
  %v501 = vpack.c.b16 %v375, %v369
  %v502 = vpack.c.b16 %v376, %v370
  %v503 = vpack.c.b16 %v377, %v371
  %v504 = vpack.c.b16 %v384, %v378
  %v505 = vpack.c.b16 %v385, %v379
  %v506 = vpack.c.b16 %v386, %v380
  %v507 = vpack.c.b16 %v387, %v381
  %v508 = vpack.c.b16 %v388, %v382
  %v509 = vpack.c.b16 %v389, %v383
  %v510 = vpack.c.b16 %v396, %v390
  %v511 = vpack.c.b16 %v397, %v391
  %v512 = vpack.c.b16 %v398, %v392
  %v513 = vpack.c.b16 %v399, %v393
  %v514 = vpack.c.b16 %v400, %v394
  %v515 = vpack.c.b16 %v401, %v395
  %v516 = vpack.c.b16 %v408, %v402
  %v517 = vpack.c.b16 %v409, %v403
  %v518 = vpack.c.b16 %v410, %v404
  %v519 = vpack.c.b16 %v411, %v405
  %v520 = vpack.c.b16 %v412, %v406
  %v521 = vpack.c.b16 %v413, %v407
  %v522 = vpack.c.b16 %v420, %v414
  %v523 = vpack.c.b16 %v421, %v415
  %v524 = vpack.c.b16 %v422, %v416
  %v525 = vpack.c.b16 %v423, %v417
  %v526 = vpack.c.b16 %v424, %v418
  %v527 = vpack.c.b16 %v425, %v419
  %v528 = vpack.c.b16 %v432, %v426
  %v529 = vpack.c.b16 %v433, %v427
  %v530 = vpack.c.b16 %v434, %v428
  %v531 = vpack.c.b16 %v435, %v429
  %v532 = vpack.c.b16 %v436, %v430
  %v533 = vpack.c.b16 %v437, %v431
  %630 = vmatprep.subr.bf16.mxu0 %v481
  %631 = vmatpush1.bf16.msra.mxu0 %v480
  %632 = vmatprep.subr.bf16.mxu0 %v475
  %633 = vmatpush1.bf16.msra.mxu0 %v474
  %634 = vmatprep.subr.bf16.mxu0 %v469
  %635 = vmatpush1.bf16.msra.mxu0 %v468
  %636 = vmatprep.subr.bf16.mxu0 %v463
  %637 = vmatpush1.bf16.msra.mxu0 %v462
  %638 = vmatprep.subr.bf16.mxu0 %v457
  %639 = vmatpush1.bf16.msra.mxu0 %v456
  %640 = vmatprep.subr.bf16.mxu0 %v451
  %641 = vmatpush1.bf16.msra.mxu0 %v450
  %642 = vmatprep.subr.bf16.mxu0 %v445
  %643 = vmatpush1.bf16.msra.mxu0 %v444
  %644 = vmatprep.subr.bf16.mxu0 %v439
  %645 = vmatpush1.bf16.msra.mxu0 %v438
  %646 = vmatprep.subr.bf16.mxu0 %v529
  %647 = vmatpush2.bf16.msra.mxu0 %v528
  %648 = vmatprep.subr.bf16.mxu0 %v523
  %649 = vmatpush2.bf16.msra.mxu0 %v522
  %650 = vmatprep.subr.bf16.mxu0 %v517
  %651 = vmatpush2.bf16.msra.mxu0 %v516
  %652 = vmatprep.subr.bf16.mxu0 %v511
  %653 = vmatpush2.bf16.msra.mxu0 %v510
  %654 = vmatprep.subr.bf16.mxu0 %v505
  %655 = vmatpush2.bf16.msra.mxu0 %v504
  %656 = vmatprep.subr.bf16.mxu0 %v499
  %657 = vmatpush2.bf16.msra.mxu0 %v498
  %658 = vmatprep.subr.bf16.mxu0 %v493
  %659 = vmatpush2.bf16.msra.mxu0 %v492
  %660 = vmatprep.subr.bf16.mxu0 %v487
  %661 = vmatpush2.bf16.msra.mxu0 %v486
  %662 = vmatprep.mubr.bf16.mxu0 %v147
  %663 = vmatmul.mubr.bf16.gmra.mxu0 %v146
  %v664 = vpop.f32.mrf.mxu0
  %v665 = vadd.f32 0.0, %v664
  %v666 = vpop.f32.mrf.mxu0
  %v667 = vadd.f32 0.0, %v666
  %v668 = vpop.f32.mrf.mxu0
  %v669 = vadd.f32 0.0, %v668
  %v670 = vpop.f32.mrf.mxu0
  %v671 = vadd.f32 0.0, %v670
  %672 = vdwg.mxu0
  %673 = vmatprep.subr.bf16.mxu0 %v483
  %674 = vmatpush1.bf16.msra.mxu0 %v482
  %675 = vmatprep.subr.bf16.mxu0 %v477
  %676 = vmatpush1.bf16.msra.mxu0 %v476
  %677 = vmatprep.subr.bf16.mxu0 %v471
  %678 = vmatpush1.bf16.msra.mxu0 %v470
  %679 = vmatprep.subr.bf16.mxu0 %v465
  %680 = vmatpush1.bf16.msra.mxu0 %v464
  %681 = vmatprep.subr.bf16.mxu0 %v459
  %682 = vmatpush1.bf16.msra.mxu0 %v458
  %683 = vmatprep.subr.bf16.mxu0 %v453
  %684 = vmatpush1.bf16.msra.mxu0 %v452
  %685 = vmatprep.subr.bf16.mxu0 %v447
  %686 = vmatpush1.bf16.msra.mxu0 %v446
  %687 = vmatprep.subr.bf16.mxu0 %v441
  %688 = vmatpush1.bf16.msra.mxu0 %v440
  %689 = vmatprep.subr.bf16.mxu0 %v531
  %690 = vmatpush2.bf16.msra.mxu0 %v530
  %691 = vmatprep.subr.bf16.mxu0 %v525
  %692 = vmatpush2.bf16.msra.mxu0 %v524
  %693 = vmatprep.subr.bf16.mxu0 %v519
  %694 = vmatpush2.bf16.msra.mxu0 %v518
  %695 = vmatprep.subr.bf16.mxu0 %v513
  %696 = vmatpush2.bf16.msra.mxu0 %v512
  %697 = vmatprep.subr.bf16.mxu0 %v507
  %698 = vmatpush2.bf16.msra.mxu0 %v506
  %699 = vmatprep.subr.bf16.mxu0 %v501
  %700 = vmatpush2.bf16.msra.mxu0 %v500
  %701 = vmatprep.subr.bf16.mxu0 %v495
  %702 = vmatpush2.bf16.msra.mxu0 %v494
  %703 = vmatprep.subr.bf16.mxu0 %v489
  %704 = vmatpush2.bf16.msra.mxu0 %v488
  %705 = vmatprep.mubr.bf16.mxu0 %v147
  %706 = vmatmul.mubr.bf16.gmra.mxu0 %v146
  %v707 = vpop.f32.mrf.mxu0
  %v708 = vadd.f32 0.0, %v707
  %v709 = vpop.f32.mrf.mxu0
  %v710 = vadd.f32 0.0, %v709
  %v711 = vpop.f32.mrf.mxu0
  %v712 = vadd.f32 0.0, %v711
  %v713 = vpop.f32.mrf.mxu0
  %v714 = vadd.f32 0.0, %v713
  %715 = vdwg.mxu0
  %716 = vmatprep.subr.bf16.mxu0 %v485
  %717 = vmatpush1.bf16.msra.mxu0 %v484
  %718 = vmatprep.subr.bf16.mxu0 %v479
  %719 = vmatpush1.bf16.msra.mxu0 %v478
  %720 = vmatprep.subr.bf16.mxu0 %v473
  %721 = vmatpush1.bf16.msra.mxu0 %v472
  %722 = vmatprep.subr.bf16.mxu0 %v467
  %723 = vmatpush1.bf16.msra.mxu0 %v466
  %724 = vmatprep.subr.bf16.mxu0 %v461
  %725 = vmatpush1.bf16.msra.mxu0 %v460
  %726 = vmatprep.subr.bf16.mxu0 %v455
  %727 = vmatpush1.bf16.msra.mxu0 %v454
  %728 = vmatprep.subr.bf16.mxu0 %v449
  %729 = vmatpush1.bf16.msra.mxu0 %v448
  %730 = vmatprep.subr.bf16.mxu0 %v443
  %731 = vmatpush1.bf16.msra.mxu0 %v442
  %732 = vmatprep.subr.bf16.mxu0 %v533
  %733 = vmatpush2.bf16.msra.mxu0 %v532
  %734 = vmatprep.subr.bf16.mxu0 %v527
  %735 = vmatpush2.bf16.msra.mxu0 %v526
  %736 = vmatprep.subr.bf16.mxu0 %v521
  %737 = vmatpush2.bf16.msra.mxu0 %v520
  %738 = vmatprep.subr.bf16.mxu0 %v515
  %739 = vmatpush2.bf16.msra.mxu0 %v514
  %740 = vmatprep.subr.bf16.mxu0 %v509
  %741 = vmatpush2.bf16.msra.mxu0 %v508
  %742 = vmatprep.subr.bf16.mxu0 %v503
  %743 = vmatpush2.bf16.msra.mxu0 %v502
  %744 = vmatprep.subr.bf16.mxu0 %v497
  %745 = vmatpush2.bf16.msra.mxu0 %v496
  %746 = vmatprep.subr.bf16.mxu0 %v491
  %747 = vmatpush2.bf16.msra.mxu0 %v490
  %748 = vmatprep.mubr.bf16.mxu0 %v147
  %749 = vmatmul.mubr.bf16.gmra.mxu0 %v146
  %v750 = vpop.f32.mrf.mxu0
  %v751 = vadd.f32 0.0, %v750
  %v752 = vpop.f32.mrf.mxu0
  %v753 = vadd.f32 0.0, %v752
  %v754 = vpop.f32.mrf.mxu0
  %v755 = vadd.f32 0.0, %v754
  %v756 = vpop.f32.mrf.mxu0
  %v757 = vadd.f32 0.0, %v756
  %758 = vdwg.mxu0
  %v759 = vadd.f32 %v32, %v665
  %v760 = vadd.f32 %v33, %v667
  %v761 = vadd.f32 %v34, %v708
  %v762 = vadd.f32 %v35, %v710
  %v763 = vadd.f32 %v36, %v751
  %v764 = vadd.f32 %v37, %v753
  %v765 = vadd.f32 %v38, %v669
  %v766 = vadd.f32 %v39, %v671
  %v767 = vadd.f32 %v40, %v712
  %v768 = vadd.f32 %v41, %v714
  %v769 = vadd.f32 %v42, %v755
  %v770 = vadd.f32 %v43, %v757
  %771 = vst [vmem:[#allocation2] sm:$0xff] %v759
  %772 = vst [vmem:[#allocation2 + $0x8] sm:$0xff] %v760
  %773 = vst [vmem:[#allocation2 + $0x10] sm:$0xff] %v761
  %774 = vst [vmem:[#allocation2 + $0x18] sm:$0xff] %v762
  %775 = vst [vmem:[#allocation2 + $0x20] sm:$0xff] %v763
  %776 = vst [vmem:[#allocation2 + $0x28] sm:$0xff] %v764
  %777 = vst [vmem:[#allocation2 + $0x30] sm:$0xff] %v765
  %778 = vst [vmem:[#allocation2 + $0x38] sm:$0xff] %v766
  %779 = vst [vmem:[#allocation2 + $0x40] sm:$0xff] %v767
  %780 = vst [vmem:[#allocation2 + $0x48] sm:$0xff] %v768
  %781 = vst [vmem:[#allocation2 + $0x50] sm:$0xff] %v769
  %782 = vst [vmem:[#allocation2 + $0x58] sm:$0xff] %v770
  // Predicated region
  $region18: #{image_transformer_forward.20} parent=0 // pred_check
    %p783 = pneg %p14
  $region19: #{image_transformer_forward.20} parent=0 // pred_check_branch
    %785 = sbr.rel (%p783) target = $region21
  $region20: #{image_transformer_forward.20} parent=0 // pred_region
    %v786 = vld [vmem:[#allocation2] sm:$0xff]
    %v787 = vld [vmem:[#allocation2 + $0x8] sm:$0xff]
    %v788 = vld [vmem:[#allocation2 + $0x10] sm:$0xff]
    %v789 = vld [vmem:[#allocation2 + $0x18] sm:$0xff]
    %v790 = vld [vmem:[#allocation2 + $0x20] sm:$0xff]
    %v791 = vld [vmem:[#allocation2 + $0x28] sm:$0xff]
    %v792 = vld [vmem:[#allocation2 + $0x30] sm:$0xff]
    %v793 = vld [vmem:[#allocation2 + $0x38] sm:$0xff]
    %v794 = vld [vmem:[#allocation2 + $0x40] sm:$0xff]
    %v795 = vld [vmem:[#allocation2 + $0x48] sm:$0xff]
    %v796 = vld [vmem:[#allocation2 + $0x50] sm:$0xff]
    %v797 = vld [vmem:[#allocation2 + $0x58] sm:$0xff]
    %v798 = vld [vmem:[%s2] sm:$0x3f]
    %v800 = vlaneseq
    %v801 = vshrl.u32 %v800, 7
    %v802 = vsub.s32 0, %v801
    %v803 = vrot.slane %v798, %v802
    %v804 = vlaneseq
    %v805 = vshrl.u32 %v804, 7
    %v806 = vsub.s32 1, %v805
    %v807 = vrot.slane %v798, %v806
    %v808 = vlaneseq
    %v809 = vshrl.u32 %v808, 7
    %v810 = vsub.s32 2, %v809
    %v811 = vrot.slane %v798, %v810
    %v812 = vlaneseq
    %v813 = vshrl.u32 %v812, 7
    %v814 = vsub.s32 3, %v813
    %v815 = vrot.slane %v798, %v814
    %v816 = vlaneseq
    %v817 = vshrl.u32 %v816, 7
    %v818 = vsub.s32 4, %v817
    %v819 = vrot.slane %v798, %v818
    %v820 = vlaneseq
    %v821 = vshrl.u32 %v820, 7
    %v822 = vsub.s32 5, %v821
    %v823 = vrot.slane %v798, %v822
    %v830 = vadd.f32 %v786, %v803
    %v831 = vadd.f32 %v787, %v807
    %v832 = vadd.f32 %v788, %v811
    %v833 = vadd.f32 %v789, %v815
    %v834 = vadd.f32 %v790, %v819
    %v835 = vadd.f32 %v791, %v823
    %v836 = vadd.f32 %v792, %v803
    %v837 = vadd.f32 %v793, %v807
    %v838 = vadd.f32 %v794, %v811
    %v839 = vadd.f32 %v795, %v815
    %v840 = vadd.f32 %v796, %v819
    %v841 = vadd.f32 %v797, %v823
    %v842 = vpack.c.bf16 %v836, %v830
    %v843 = vpack.c.bf16 %v837, %v831
    %v844 = vpack.c.bf16 %v838, %v832
    %v845 = vpack.c.bf16 %v839, %v833
    %v846 = vpack.c.bf16 %v840, %v834
    %v847 = vpack.c.bf16 %v841, %v835
    %v854 = vunpack.c.l.b16 %v842
    %v855 = vunpack.c.l.b16 %v843
    %v856 = vunpack.c.l.b16 %v844
    %v857 = vunpack.c.l.b16 %v845
    %v858 = vunpack.c.l.b16 %v846
    %v859 = vunpack.c.l.b16 %v847
    %v860 = vunpack.c.h.b16 %v842
    %v861 = vunpack.c.h.b16 %v843
    %v862 = vunpack.c.h.b16 %v844
    %v863 = vunpack.c.h.b16 %v845
    %v864 = vunpack.c.h.b16 %v846
    %v865 = vunpack.c.h.b16 %v847
    %v866 = vpack.c.b16 %v855, %v854
    %v867 = vpack.c.b16 %v857, %v856
    %v868 = vpack.c.b16 %v859, %v858
    %v869 = vpack.c.b16 %v861, %v860
    %v870 = vpack.c.b16 %v863, %v862
    %v871 = vpack.c.b16 %v865, %v864
    %878 = vst [vmem:[%s3] sm:$0xff] %v866
    %879 = vst [vmem:[%s3 + $0x8] sm:$0xff] %v867
    %880 = vst [vmem:[%s3 + $0x10] sm:$0xff] %v868
    %881 = vst [vmem:[%s3 + $0x18] sm:$0xff] %v869
    %882 = vst [vmem:[%s3 + $0x20] sm:$0xff] %v870
    %883 = vst [vmem:[%s3 + $0x28] sm:$0xff] %v871
  $region21: #{image_transformer_forward.20} parent=0 // pred_fallthru
    _
  // Predicated region
  $region22: #{image_transformer_forward.20} parent=0 // pred_check
    _
  $region23: #{image_transformer_forward.20} parent=0 // pred_check_branch
    %885 = sbr.rel (0) target = $region25
  $region24: #{image_transformer_forward.20} parent=0 // pred_region
    _
  $region25: #{image_transformer_forward.20} parent=0 // pred_fallthru
    _
  // Predicated region
  $region26: #{image_transformer_forward.20} parent=0 // pred_check
    _
  $region27: #{image_transformer_forward.20} parent=0 // pred_check_branch
    %887 = sbr.rel (0) target = $region29
  $region28: #{image_transformer_forward.20} parent=0 // pred_region
    _
  $region29: #{image_transformer_forward.20} parent=0 // pred_fallthru
    _

// kernel: image_transformer_forward.27
$region0: #{image_transformer_forward.27}
  #allocation0 [shape = 'u32[]', space=smem, size = 0x4, offset = 0x4, fixed_abs, tag = 'smem constant byte address 0x4 - core index']
  #allocation1 [shape = 'u32[144,128]{1,0:T(1,128)}', space=vmem, size = 0x12000, scoped, tag = 'internal scratch']
  #allocation2 [shape = 'f32[2,256]{1,0:T(2,128)}', space=vmem, size = 0x800, scoped, tag = 'scratch operand']
  %s0 = inlined_call_operand.vmem [shape: bf16[2,512], index: 0, kind: input, shape index: {}]
  %s1 = inlined_call_operand.vmem [shape: bf16[512,256], index: 1, kind: input, shape index: {}]
  %s2 = inlined_call_operand.vmem [shape: f32[1,256], index: 2, kind: input, shape index: {}]
  %s3 = inlined_call_operand.hbm [shape: f32[2,256], index: 3, kind: output, shape index: {}]
  %s4 = sld [smem:[#allocation0]]
  $region30: #{image_transformer_forward.27} parent=0
    _
  %s6 = ssub.s32 1, %s4
  %s7 = scalar_select 0, %s6, %s4
  $region1: #{image_transformer_forward.27} parent=0
    #allocation3 [shape = 'u8[2048]{0}', space=vmem, size = 0x800, scoped, tag = 'output window, operand 0, single buffered']
    #allocation4 [shape = 's32[1]{0}', space=sflag, size = 0x4, scoped, tag = 'scoped memory for image_transformer_forward.27']
    %8 = vsyncpa [#allocation4], 0
    // Predicated region
    $region2: #{image_transformer_forward.27} parent=1 // pred_check
      _
    $region3: #{image_transformer_forward.27} parent=1 // pred_check_branch
      %10 = sbr.rel (0) target = $region5
    $region4: #{image_transformer_forward.27} parent=1 // pred_region
      _
    $region5: #{image_transformer_forward.27} parent=1 // pred_fallthru
      _
    // Predicated region
    $region6: #{image_transformer_forward.27} parent=1 // pred_check
      _
    $region7: #{image_transformer_forward.27} parent=1 // pred_check_branch
      %12 = sbr.rel (0) target = $region9
    $region8: #{image_transformer_forward.27} parent=1 // pred_region
      _
    $region9: #{image_transformer_forward.27} parent=1 // pred_fallthru
      _
    // Predicated region
    $region10: #{image_transformer_forward.27} parent=1 // pred_check
      _
    $region11: #{image_transformer_forward.27} parent=1 // pred_check_branch
      %14 = sbr.rel (0) target = $region13
    $region12: #{image_transformer_forward.27} parent=1 // pred_region
      _
    $region13: #{image_transformer_forward.27} parent=1 // pred_fallthru
      _
    %p15 = scmp.eq.s32.totalorder 0, 0
    // Predicated region
    $region14: #{image_transformer_forward.27} parent=1 // pred_check
      %p16 = pneg %p15
    $region15: #{image_transformer_forward.27} parent=1 // pred_check_branch
      %18 = sbr.rel (%p16) target = $region17
    $region16: #{image_transformer_forward.27} parent=1 // pred_region
      %19 = vst [vmem:[#allocation2] sm:$0xf] 0.0
    $region17: #{image_transformer_forward.27} parent=1 // pred_fallthru
      _
    %v20 = vld [vmem:[%s0] sm:$0xf]
    %v21 = vld [vmem:[#allocation2] sm:$0xf]
    %v22 = vld [vmem:[%s1] sm:$0xff]
    %v23 = vld [vmem:[%s1 + $0x8] sm:$0xff]
    %v24 = vld [vmem:[%s1 + $0x10] sm:$0xff]
    %v25 = vld [vmem:[%s1 + $0x18] sm:$0xff]
    %v26 = vld [vmem:[%s1 + $0x20] sm:$0xff]
    %v27 = vld [vmem:[%s1 + $0x28] sm:$0xff]
    %v28 = vld [vmem:[%s1 + $0x30] sm:$0xff]
    %v29 = vld [vmem:[%s1 + $0x38] sm:$0xff]
    %v30 = vld [vmem:[%s1 + $0x40] sm:$0xff]
    %v31 = vld [vmem:[%s1 + $0x48] sm:$0xff]
    %v32 = vld [vmem:[%s1 + $0x50] sm:$0xff]
    %v33 = vld [vmem:[%s1 + $0x58] sm:$0xff]
    %v34 = vld [vmem:[%s1 + $0x60] sm:$0xff]
    %v35 = vld [vmem:[%s1 + $0x68] sm:$0xff]
    %v36 = vld [vmem:[%s1 + $0x70] sm:$0xff]
    %v37 = vld [vmem:[%s1 + $0x78] sm:$0xff]
    %v38 = vld [vmem:[%s1 + $0x80] sm:$0xff]
    %v39 = vld [vmem:[%s1 + $0x88] sm:$0xff]
    %v40 = vld [vmem:[%s1 + $0x90] sm:$0xff]
    %v41 = vld [vmem:[%s1 + $0x98] sm:$0xff]
    %v42 = vld [vmem:[%s1 + $0xa0] sm:$0xff]
    %v43 = vld [vmem:[%s1 + $0xa8] sm:$0xff]
    %v44 = vld [vmem:[%s1 + $0xb0] sm:$0xff]
    %v45 = vld [vmem:[%s1 + $0xb8] sm:$0xff]
    %v46 = vld [vmem:[%s1 + $0xc0] sm:$0xff]
    %v47 = vld [vmem:[%s1 + $0xc8] sm:$0xff]
    %v48 = vld [vmem:[%s1 + $0xd0] sm:$0xff]
    %v49 = vld [vmem:[%s1 + $0xd8] sm:$0xff]
    %v50 = vld [vmem:[%s1 + $0xe0] sm:$0xff]
    %v51 = vld [vmem:[%s1 + $0xe8] sm:$0xff]
    %v52 = vld [vmem:[%s1 + $0xf0] sm:$0xff]
    %v53 = vld [vmem:[%s1 + $0xf8] sm:$0xff]
    %v54 = vld [vmem:[%s1 + $0x100] sm:$0xff]
    %v55 = vld [vmem:[%s1 + $0x108] sm:$0xff]
    %v56 = vld [vmem:[%s1 + $0x110] sm:$0xff]
    %v57 = vld [vmem:[%s1 + $0x118] sm:$0xff]
    %v58 = vld [vmem:[%s1 + $0x120] sm:$0xff]
    %v59 = vld [vmem:[%s1 + $0x128] sm:$0xff]
    %v60 = vld [vmem:[%s1 + $0x130] sm:$0xff]
    %v61 = vld [vmem:[%s1 + $0x138] sm:$0xff]
    %v62 = vld [vmem:[%s1 + $0x140] sm:$0xff]
    %v63 = vld [vmem:[%s1 + $0x148] sm:$0xff]
    %v64 = vld [vmem:[%s1 + $0x150] sm:$0xff]
    %v65 = vld [vmem:[%s1 + $0x158] sm:$0xff]
    %v66 = vld [vmem:[%s1 + $0x160] sm:$0xff]
    %v67 = vld [vmem:[%s1 + $0x168] sm:$0xff]
    %v68 = vld [vmem:[%s1 + $0x170] sm:$0xff]
    %v69 = vld [vmem:[%s1 + $0x178] sm:$0xff]
    %v70 = vld [vmem:[%s1 + $0x180] sm:$0xff]
    %v71 = vld [vmem:[%s1 + $0x188] sm:$0xff]
    %v72 = vld [vmem:[%s1 + $0x190] sm:$0xff]
    %v73 = vld [vmem:[%s1 + $0x198] sm:$0xff]
    %v74 = vld [vmem:[%s1 + $0x1a0] sm:$0xff]
    %v75 = vld [vmem:[%s1 + $0x1a8] sm:$0xff]
    %v76 = vld [vmem:[%s1 + $0x1b0] sm:$0xff]
    %v77 = vld [vmem:[%s1 + $0x1b8] sm:$0xff]
    %v78 = vld [vmem:[%s1 + $0x1c0] sm:$0xff]
    %v79 = vld [vmem:[%s1 + $0x1c8] sm:$0xff]
    %v80 = vld [vmem:[%s1 + $0x1d0] sm:$0xff]
    %v81 = vld [vmem:[%s1 + $0x1d8] sm:$0xff]
    %v82 = vld [vmem:[%s1 + $0x1e0] sm:$0xff]
    %v83 = vld [vmem:[%s1 + $0x1e8] sm:$0xff]
    %v84 = vld [vmem:[%s1 + $0x1f0] sm:$0xff]
    %v85 = vld [vmem:[%s1 + $0x1f8] sm:$0xff]
    %v88 = vunpack.c.l.s4 1966171168
    %v89 = vunpack.c.0.s8 %v88
    %v90 = vlaneseq
    %v91 = vshrl.u32 %v90, 7
    %v92 = vsub.s32 %v89, %v91
    %v93 = vrot.slane %v20, %v92
    %v94 = vcombine.high %v93, %v93
    %v96 = vunpack.c.l.s4 1966171168
    %v97 = vunpack.c.0.s8 %v96
    %v98 = vlaneseq
    %v99 = vshrl.u32 %v98, 7
    %v100 = vsub.s32 %v97, %v99
    %v101 = vrot.slane %v93, %v100
    %v103 = vunpack.c.l.s4 1966171168
    %v104 = vunpack.c.0.s8 %v103
    %v105 = vlaneseq
    %v106 = vshrl.u32 %v105, 7
    %v107 = vsub.s32 %v104, %v106
    %v108 = vrot.slane %v94, %v107
    %v109 = vcombine.high %v101, %v101
    %v110 = vcombine.high %v108, %v108
    %v179 = vunpack.c.l.b16 %v22
    %v180 = vunpack.c.h.b16 %v22
    %v181 = vunpack.c.l.b16 %v23
    %v182 = vunpack.c.h.b16 %v23
    %v183 = vunpack.c.l.b16 %v24
    %v184 = vunpack.c.h.b16 %v24
    %v185 = vunpack.c.l.b16 %v25
    %v186 = vunpack.c.h.b16 %v25
    %v187 = vunpack.c.l.b16 %v26
    %v188 = vunpack.c.h.b16 %v26
    %v189 = vunpack.c.l.b16 %v27
    %v190 = vunpack.c.h.b16 %v27
    %v191 = vunpack.c.l.b16 %v28
    %v192 = vunpack.c.h.b16 %v28
    %v193 = vunpack.c.l.b16 %v29
    %v194 = vunpack.c.h.b16 %v29
    %v195 = vunpack.c.l.b16 %v30
    %v196 = vunpack.c.h.b16 %v30
    %v197 = vunpack.c.l.b16 %v31
    %v198 = vunpack.c.h.b16 %v31
    %v199 = vunpack.c.l.b16 %v32
    %v200 = vunpack.c.h.b16 %v32
    %v201 = vunpack.c.l.b16 %v33
    %v202 = vunpack.c.h.b16 %v33
    %v203 = vunpack.c.l.b16 %v34
    %v204 = vunpack.c.h.b16 %v34
    %v205 = vunpack.c.l.b16 %v35
    %v206 = vunpack.c.h.b16 %v35
    %v207 = vunpack.c.l.b16 %v36
    %v208 = vunpack.c.h.b16 %v36
    %v209 = vunpack.c.l.b16 %v37
    %v210 = vunpack.c.h.b16 %v37
    %v211 = vunpack.c.l.b16 %v38
    %v212 = vunpack.c.h.b16 %v38
    %v213 = vunpack.c.l.b16 %v39
    %v214 = vunpack.c.h.b16 %v39
    %v215 = vunpack.c.l.b16 %v40
    %v216 = vunpack.c.h.b16 %v40
    %v217 = vunpack.c.l.b16 %v41
    %v218 = vunpack.c.h.b16 %v41
    %v219 = vunpack.c.l.b16 %v42
    %v220 = vunpack.c.h.b16 %v42
    %v221 = vunpack.c.l.b16 %v43
    %v222 = vunpack.c.h.b16 %v43
    %v223 = vunpack.c.l.b16 %v44
    %v224 = vunpack.c.h.b16 %v44
    %v225 = vunpack.c.l.b16 %v45
    %v226 = vunpack.c.h.b16 %v45
    %v227 = vunpack.c.l.b16 %v46
    %v228 = vunpack.c.h.b16 %v46
    %v229 = vunpack.c.l.b16 %v47
    %v230 = vunpack.c.h.b16 %v47
    %v231 = vunpack.c.l.b16 %v48
    %v232 = vunpack.c.h.b16 %v48
    %v233 = vunpack.c.l.b16 %v49
    %v234 = vunpack.c.h.b16 %v49
    %v235 = vunpack.c.l.b16 %v50
    %v236 = vunpack.c.h.b16 %v50
    %v237 = vunpack.c.l.b16 %v51
    %v238 = vunpack.c.h.b16 %v51
    %v239 = vunpack.c.l.b16 %v52
    %v240 = vunpack.c.h.b16 %v52
    %v241 = vunpack.c.l.b16 %v53
    %v242 = vunpack.c.h.b16 %v53
    %v243 = vunpack.c.l.b16 %v54
    %v244 = vunpack.c.h.b16 %v54
    %v245 = vunpack.c.l.b16 %v55
    %v246 = vunpack.c.h.b16 %v55
    %v247 = vunpack.c.l.b16 %v56
    %v248 = vunpack.c.h.b16 %v56
    %v249 = vunpack.c.l.b16 %v57
    %v250 = vunpack.c.h.b16 %v57
    %v251 = vunpack.c.l.b16 %v58
    %v252 = vunpack.c.h.b16 %v58
    %v253 = vunpack.c.l.b16 %v59
    %v254 = vunpack.c.h.b16 %v59
    %v255 = vunpack.c.l.b16 %v60
    %v256 = vunpack.c.h.b16 %v60
    %v257 = vunpack.c.l.b16 %v61
    %v258 = vunpack.c.h.b16 %v61
    %v259 = vunpack.c.l.b16 %v62
    %v260 = vunpack.c.h.b16 %v62
    %v261 = vunpack.c.l.b16 %v63
    %v262 = vunpack.c.h.b16 %v63
    %v263 = vunpack.c.l.b16 %v64
    %v264 = vunpack.c.h.b16 %v64
    %v265 = vunpack.c.l.b16 %v65
    %v266 = vunpack.c.h.b16 %v65
    %v267 = vunpack.c.l.b16 %v66
    %v268 = vunpack.c.h.b16 %v66
    %v269 = vunpack.c.l.b16 %v67
    %v270 = vunpack.c.h.b16 %v67
    %v271 = vunpack.c.l.b16 %v68
    %v272 = vunpack.c.h.b16 %v68
    %v273 = vunpack.c.l.b16 %v69
    %v274 = vunpack.c.h.b16 %v69
    %v275 = vunpack.c.l.b16 %v70
    %v276 = vunpack.c.h.b16 %v70
    %v277 = vunpack.c.l.b16 %v71
    %v278 = vunpack.c.h.b16 %v71
    %v279 = vunpack.c.l.b16 %v72
    %v280 = vunpack.c.h.b16 %v72
    %v281 = vunpack.c.l.b16 %v73
    %v282 = vunpack.c.h.b16 %v73
    %v283 = vunpack.c.l.b16 %v74
    %v284 = vunpack.c.h.b16 %v74
    %v285 = vunpack.c.l.b16 %v75
    %v286 = vunpack.c.h.b16 %v75
    %v287 = vunpack.c.l.b16 %v76
    %v288 = vunpack.c.h.b16 %v76
    %v289 = vunpack.c.l.b16 %v77
    %v290 = vunpack.c.h.b16 %v77
    %v291 = vunpack.c.l.b16 %v78
    %v292 = vunpack.c.h.b16 %v78
    %v293 = vunpack.c.l.b16 %v79
    %v294 = vunpack.c.h.b16 %v79
    %v295 = vunpack.c.l.b16 %v80
    %v296 = vunpack.c.h.b16 %v80
    %v297 = vunpack.c.l.b16 %v81
    %v298 = vunpack.c.h.b16 %v81
    %v299 = vunpack.c.l.b16 %v82
    %v300 = vunpack.c.h.b16 %v82
    %v301 = vunpack.c.l.b16 %v83
    %v302 = vunpack.c.h.b16 %v83
    %v303 = vunpack.c.l.b16 %v84
    %v304 = vunpack.c.h.b16 %v84
    %v305 = vunpack.c.l.b16 %v85
    %v306 = vunpack.c.h.b16 %v85
    %v307 = vpack.c.b16 %v181, %v179
    %v308 = vpack.c.b16 %v182, %v180
    %v309 = vpack.c.b16 %v185, %v183
    %v310 = vpack.c.b16 %v186, %v184
    %v311 = vpack.c.b16 %v189, %v187
    %v312 = vpack.c.b16 %v190, %v188
    %v313 = vpack.c.b16 %v193, %v191
    %v314 = vpack.c.b16 %v194, %v192
    %v315 = vpack.c.b16 %v197, %v195
    %v316 = vpack.c.b16 %v198, %v196
    %v317 = vpack.c.b16 %v201, %v199
    %v318 = vpack.c.b16 %v202, %v200
    %v319 = vpack.c.b16 %v205, %v203
    %v320 = vpack.c.b16 %v206, %v204
    %v321 = vpack.c.b16 %v209, %v207
    %v322 = vpack.c.b16 %v210, %v208
    %v323 = vpack.c.b16 %v213, %v211
    %v324 = vpack.c.b16 %v214, %v212
    %v325 = vpack.c.b16 %v217, %v215
    %v326 = vpack.c.b16 %v218, %v216
    %v327 = vpack.c.b16 %v221, %v219
    %v328 = vpack.c.b16 %v222, %v220
    %v329 = vpack.c.b16 %v225, %v223
    %v330 = vpack.c.b16 %v226, %v224
    %v331 = vpack.c.b16 %v229, %v227
    %v332 = vpack.c.b16 %v230, %v228
    %v333 = vpack.c.b16 %v233, %v231
    %v334 = vpack.c.b16 %v234, %v232
    %v335 = vpack.c.b16 %v237, %v235
    %v336 = vpack.c.b16 %v238, %v236
    %v337 = vpack.c.b16 %v241, %v239
    %v338 = vpack.c.b16 %v242, %v240
    %v339 = vpack.c.b16 %v245, %v243
    %v340 = vpack.c.b16 %v246, %v244
    %v341 = vpack.c.b16 %v249, %v247
    %v342 = vpack.c.b16 %v250, %v248
    %v343 = vpack.c.b16 %v253, %v251
    %v344 = vpack.c.b16 %v254, %v252
    %v345 = vpack.c.b16 %v257, %v255
    %v346 = vpack.c.b16 %v258, %v256
    %v347 = vpack.c.b16 %v261, %v259
    %v348 = vpack.c.b16 %v262, %v260
    %v349 = vpack.c.b16 %v265, %v263
    %v350 = vpack.c.b16 %v266, %v264
    %v351 = vpack.c.b16 %v269, %v267
    %v352 = vpack.c.b16 %v270, %v268
    %v353 = vpack.c.b16 %v273, %v271
    %v354 = vpack.c.b16 %v274, %v272
    %v355 = vpack.c.b16 %v277, %v275
    %v356 = vpack.c.b16 %v278, %v276
    %v357 = vpack.c.b16 %v281, %v279
    %v358 = vpack.c.b16 %v282, %v280
    %v359 = vpack.c.b16 %v285, %v283
    %v360 = vpack.c.b16 %v286, %v284
    %v361 = vpack.c.b16 %v289, %v287
    %v362 = vpack.c.b16 %v290, %v288
    %v363 = vpack.c.b16 %v293, %v291
    %v364 = vpack.c.b16 %v294, %v292
    %v365 = vpack.c.b16 %v297, %v295
    %v366 = vpack.c.b16 %v298, %v296
    %v367 = vpack.c.b16 %v301, %v299
    %v368 = vpack.c.b16 %v302, %v300
    %v369 = vpack.c.b16 %v305, %v303
    %v370 = vpack.c.b16 %v306, %v304
    %435 = vmatprep.subr.bf16.mxu0 %v322
    %436 = vmatpush1.bf16.msra.mxu0 %v321
    %437 = vmatprep.subr.bf16.mxu0 %v320
    %438 = vmatpush1.bf16.msra.mxu0 %v319
    %439 = vmatprep.subr.bf16.mxu0 %v318
    %440 = vmatpush1.bf16.msra.mxu0 %v317
    %441 = vmatprep.subr.bf16.mxu0 %v316
    %442 = vmatpush1.bf16.msra.mxu0 %v315
    %443 = vmatprep.subr.bf16.mxu0 %v314
    %444 = vmatpush1.bf16.msra.mxu0 %v313
    %445 = vmatprep.subr.bf16.mxu0 %v312
    %446 = vmatpush1.bf16.msra.mxu0 %v311
    %447 = vmatprep.subr.bf16.mxu0 %v310
    %448 = vmatpush1.bf16.msra.mxu0 %v309
    %449 = vmatprep.subr.bf16.mxu0 %v308
    %450 = vmatpush1.bf16.msra.mxu0 %v307
    %451 = vmatprep.subr.bf16.mxu0 %v338
    %452 = vmatpush2.bf16.msra.mxu0 %v337
    %453 = vmatprep.subr.bf16.mxu0 %v336
    %454 = vmatpush2.bf16.msra.mxu0 %v335
    %455 = vmatprep.subr.bf16.mxu0 %v334
    %456 = vmatpush2.bf16.msra.mxu0 %v333
    %457 = vmatprep.subr.bf16.mxu0 %v332
    %458 = vmatpush2.bf16.msra.mxu0 %v331
    %459 = vmatprep.subr.bf16.mxu0 %v330
    %460 = vmatpush2.bf16.msra.mxu0 %v329
    %461 = vmatprep.subr.bf16.mxu0 %v328
    %462 = vmatpush2.bf16.msra.mxu0 %v327
    %463 = vmatprep.subr.bf16.mxu0 %v326
    %464 = vmatpush2.bf16.msra.mxu0 %v325
    %465 = vmatprep.subr.bf16.mxu0 %v324
    %466 = vmatpush2.bf16.msra.mxu0 %v323
    %467 = vmatprep.mubr.bf16.mxu0 %v108
    %468 = vmatmul.mubr.bf16.gmra.mxu0 %v101
    %v469 = vpop.f32.mrf.mxu0
    %v470 = vadd.f32 0.0, %v469
    %v471 = vpop.f32.mrf.mxu0
    %v472 = vadd.f32 0.0, %v471
    %v473 = vpop.f32.mrf.mxu0
    %v474 = vpop.f32.mrf.mxu0
    %475 = vdwg.mxu0
    %476 = vmatprep.subr.bf16.mxu0 %v354
    %477 = vmatpush1.bf16.msra.mxu0 %v353
    %478 = vmatprep.subr.bf16.mxu0 %v352
    %479 = vmatpush1.bf16.msra.mxu0 %v351
    %480 = vmatprep.subr.bf16.mxu0 %v350
    %481 = vmatpush1.bf16.msra.mxu0 %v349
    %482 = vmatprep.subr.bf16.mxu0 %v348
    %483 = vmatpush1.bf16.msra.mxu0 %v347
    %484 = vmatprep.subr.bf16.mxu0 %v346
    %485 = vmatpush1.bf16.msra.mxu0 %v345
    %486 = vmatprep.subr.bf16.mxu0 %v344
    %487 = vmatpush1.bf16.msra.mxu0 %v343
    %488 = vmatprep.subr.bf16.mxu0 %v342
    %489 = vmatpush1.bf16.msra.mxu0 %v341
    %490 = vmatprep.subr.bf16.mxu0 %v340
    %491 = vmatpush1.bf16.msra.mxu0 %v339
    %492 = vmatprep.subr.bf16.mxu0 %v370
    %493 = vmatpush2.bf16.msra.mxu0 %v369
    %494 = vmatprep.subr.bf16.mxu0 %v368
    %495 = vmatpush2.bf16.msra.mxu0 %v367
    %496 = vmatprep.subr.bf16.mxu0 %v366
    %497 = vmatpush2.bf16.msra.mxu0 %v365
    %498 = vmatprep.subr.bf16.mxu0 %v364
    %499 = vmatpush2.bf16.msra.mxu0 %v363
    %500 = vmatprep.subr.bf16.mxu0 %v362
    %501 = vmatpush2.bf16.msra.mxu0 %v361
    %502 = vmatprep.subr.bf16.mxu0 %v360
    %503 = vmatpush2.bf16.msra.mxu0 %v359
    %504 = vmatprep.subr.bf16.mxu0 %v358
    %505 = vmatpush2.bf16.msra.mxu0 %v357
    %506 = vmatprep.subr.bf16.mxu0 %v356
    %507 = vmatpush2.bf16.msra.mxu0 %v355
    %508 = vmatprep.mubr.bf16.mxu0 %v110
    %509 = vmatmul.mubr.bf16.gmra.mxu0 %v109
    %v510 = vpop.f32.mrf.mxu0
    %v511 = vadd.f32 %v470, %v510
    %v512 = vpop.f32.mrf.mxu0
    %v513 = vadd.f32 %v472, %v512
    %v514 = vpop.f32.mrf.mxu0
    %v515 = vpop.f32.mrf.mxu0
    %516 = vdwg.mxu0
    %v519 = vcombine.low %v511, %v513
    %v521 = vunpack.c.l.s4 1983009808
    %v522 = vunpack.c.0.s8 %v521
    %v523 = vlaneseq
    %v524 = vshrl.u32 %v523, 7
    %v525 = vsub.s32 %v522, %v524
    %v526 = vrot.slane %v519, %v525
    %v528 = vadd.f32 %v21, %v526
    %529 = vst [vmem:[#allocation2] sm:$0xf] %v528
    // Predicated region
    $region18: #{image_transformer_forward.27} parent=1 // pred_check
      %p530 = pneg %p15
    $region19: #{image_transformer_forward.27} parent=1 // pred_check_branch
      %532 = sbr.rel (%p530) target = $region21
    $region20: #{image_transformer_forward.27} parent=1 // pred_region
      %v533 = vld [vmem:[#allocation2] sm:$0xf]
      %v534 = vld [vmem:[%s2] sm:$0x3]
      %v536 = vlaneseq
      %v537 = vshrl.u32 %v536, 7
      %v538 = vsub.s32 0, %v537
      %v539 = vrot.slane %v534, %v538
      %v540 = vlaneseq
      %v541 = vshrl.u32 %v540, 7
      %v542 = vsub.s32 1, %v541
      %v543 = vrot.slane %v534, %v542
      %v544 = vcombine.low %v539, %v543
      %v546 = vunpack.c.l.s4 1983009808
      %v547 = vunpack.c.0.s8 %v546
      %v548 = vlaneseq
      %v549 = vshrl.u32 %v548, 7
      %v550 = vsub.s32 %v547, %v549
      %v551 = vrot.slane %v544, %v550
      %v553 = vadd.f32 %v533, %v551
      %554 = vst [vmem:[#allocation3] sm:$0xf] %v553
    $region21: #{image_transformer_forward.27} parent=1 // pred_fallthru
      _
    // Predicated region
    $region22: #{image_transformer_forward.27} parent=1 // pred_check
      _
    $region23: #{image_transformer_forward.27} parent=1 // pred_check_branch
      %556 = sbr.rel (0) target = $region25
    $region24: #{image_transformer_forward.27} parent=1 // pred_region
      %s558 = ssub.s32 64, 64
      %559 = vsyncadd [#allocation4], %s558
      %s561 = sshll.u32 [#allocation3], 4
      %s562 = int_to_ptr.vmem [resolvable:$true] %s561
      %564 = dma.vmem_to_hbm [thread:$0]  %s562, 64, %s3, [#allocation4]
    $region25: #{image_transformer_forward.27} parent=1 // pred_fallthru
      _
    // Predicated region
    $region26: #{image_transformer_forward.27} parent=1 // pred_check
      _
    $region27: #{image_transformer_forward.27} parent=1 // pred_check_branch
      %566 = sbr.rel (0) target = $region29
    $region28: #{image_transformer_forward.27} parent=1 // pred_region
      %567 = dma.done [#allocation4], 64
    $region29: #{image_transformer_forward.27} parent=1 // pred_fallthru
      _
    %568 = vsyncpa [#allocation4], 1

</llo_original>
